<compile_context>
chip_gen: v5e
topology: v5e:2x2
jax: 0.10.0
libtpu: 0.0.40
codegen_flags: <defaults>
</compile_context>

<pallas_src>
import functools
import math

import jax
import jax.numpy as jnp
from jax.experimental import pallas as pl
from jax.experimental.pallas import tpu as pltpu

_NEG_BIG = -1.0e30  # large finite negative: avoids -inf/NaN corner cases in online softmax


def mha_kernel(xq_ref, xkv_ref, wq_ref, wkv_ref, wo_ref, bo_ref, o_ref,
               m_sc, l_sc, acc_sc,
               *, num_heads, head_dim, d_out, scale, q_tile, kv_tile, seq_len):
    # Grid: (batch, q_tile index). This kernel instance handles one q-tile of one batch row.
    qi = pl.program_id(1)
    q_start = qi * q_tile

    x_q = xq_ref[0]    # (TQ, d_in)  rows of x belonging to this query tile
    x_kv = xkv_ref[0]  # (T,  d_in)  all rows of x (needed to build K/V)

    # ---- projections on the MXU (f32 accumulate) ----
    # Q only for the query tile; K and V fused into a single matmul over the full sequence.
    q = jnp.dot(x_q, wq_ref[...], preferred_element_type=jnp.float32)     # (TQ, d_out)
    kv = jnp.dot(x_kv, wkv_ref[...], preferred_element_type=jnp.float32)  # (T, 2*d_out)
    k = kv[:, :d_out]
    v = kv[:, d_out:]

    # ---- head-batched layout: (H, T, hd) — no per-head lane slices / concat ----
    qh = q.reshape(q_tile, num_heads, head_dim).transpose(1, 0, 2)    # (H, TQ, hd)
    kh = k.reshape(seq_len, num_heads, head_dim).transpose(1, 0, 2)   # (H, T,  hd)
    vh = v.reshape(seq_len, num_heads, head_dim).transpose(1, 0, 2)   # (H, T,  hd)

    # ---- online-softmax state (VMEM scratch, re-initialized every grid step) ----
    m_sc[...] = jnp.full_like(m_sc, _NEG_BIG)
    l_sc[...] = jnp.zeros_like(l_sc)
    acc_sc[...] = jnp.zeros_like(acc_sc)

    q_rows = q_start + jax.lax.broadcasted_iota(jnp.int32, (q_tile, kv_tile), 0)

    # Static unrolled loop over KV chunks (flash-style).
    for j in range(seq_len // kv_tile):
        k_start = j * kv_tile

        # Causal skipping: a chunk whose first key index is past the last query row of
        # this tile contributes nothing — skip it entirely.
        @pl.when(k_start < q_start + q_tile)
        def _(k_start=k_start):
            kj = kh[:, k_start:k_start + kv_tile, :]   # (H, TKV, hd)
            vj = vh[:, k_start:k_start + kv_tile, :]   # (H, TKV, hd)

            s = jnp.einsum('hqd,hkd->hqk', qh, kj,
                           preferred_element_type=jnp.float32) * scale   # (H, TQ, TKV)

            cols = k_start + jax.lax.broadcasted_iota(jnp.int32, (q_tile, kv_tile), 1)
            causal = cols <= q_rows                                        # (TQ, TKV)
            s = jnp.where(causal[None, :, :], s, _NEG_BIG)

            m_prev = m_sc[...]
            m_new = jnp.maximum(m_prev, jnp.max(s, axis=-1, keepdims=True))
            alpha = jnp.exp(m_prev - m_new)             # (H, TQ, 1)
            p = jnp.exp(s - m_new)                      # (H, TQ, TKV)  (EUP)

            l_sc[...] = alpha * l_sc[...] + jnp.sum(p, axis=-1, keepdims=True)
            acc_sc[...] = alpha * acc_sc[...] + jnp.einsum(
                'hqk,hkd->hqd', p, vj, preferred_element_type=jnp.float32)
            m_sc[...] = m_new

    # TODO(synk): dropout on attention weights omitted (module forward in eval mode).

    # Normalize with EUP reciprocal instead of a VALU divide.
    # (approx=True would be faster still, at reduced precision.)
    ctx = acc_sc[...] * pl.reciprocal(l_sc[...], approx=False)            # (H, TQ, hd)
    ctx = ctx.transpose(1, 0, 2).reshape(q_tile, d_out)                   # (TQ, d_out)

    # Output projection into the lane-padded (>=128-wide) output slab: lane-dense store.
    out = jnp.dot(ctx, wo_ref[...], preferred_element_type=jnp.float32) + bo_ref[...]
    o_ref[0] = out.astype(o_ref.dtype)


def multi_head_attention(x, wq, wk, wv, wo, bo, *, num_heads, q_tile=None, kv_tile=None):
    """x: (B, T, d_in); wq/wk/wv: (d_in, d_out); wo: (d_out, d_out); bo: (1, d_out).

    Weights are the PyTorch nn.Linear weights pre-transposed to (in, out).
    """
    B, T, d_in = x.shape
    d_out = wq.shape[1]
    assert d_out % num_heads == 0
    head_dim = d_out // num_heads
    scale = 1.0 / math.sqrt(head_dim)

    # Fuse K and V projection weights into one matmul RHS.
    wkv = jnp.concatenate([wk, wv], axis=1)                 # (d_in, 2*d_out)

    # Lane-dense output: pad the out-projection to a multiple of 128 lanes, slice after.
    d_pad = max(128, ((d_out + 127) // 128) * 128)
    wo_p = jnp.pad(wo, ((0, 0), (0, d_pad - d_out)))
    bo_p = jnp.pad(bo, ((0, 0), (0, d_pad - d_out)))

    # Tile sizes (re-sweep per TPU generation; 128 is a good default when T allows).
    if q_tile is None:
        q_tile = 128 if T % 128 == 0 else T
    if kv_tile is None:
        kv_tile = 128 if T % 128 == 0 else T
    assert T % q_tile == 0 and T % kv_tile == 0
    nq = T // q_tile

    kernel = functools.partial(
        mha_kernel, num_heads=num_heads, head_dim=head_dim, d_out=d_out, scale=scale,
        q_tile=q_tile, kv_tile=kv_tile, seq_len=T)

    H = num_heads
    flops = (2 * B * T * d_in * 3 * d_out          # QKV projections
             + 4 * B * H * T * T * head_dim        # scores + PV (upper bound, pre-causal-skip)
             + 2 * B * T * d_out * d_pad)          # output projection
    transcendentals = B * H * T * T
    bytes_accessed = 4 * (x.size * 2 + wq.size + wkv.size + wo_p.size + bo_p.size
                          + B * T * d_pad)

    out_p = pl.pallas_call(
        kernel,
        out_shape=jax.ShapeDtypeStruct((B, T, d_pad), x.dtype),
        grid_spec=pltpu.PrefetchScalarGridSpec(
            num_scalar_prefetch=0,
            grid=(B, nq),
            in_specs=[
                # x rows for this query tile
                pl.BlockSpec((1, q_tile, d_in), lambda b, i: (b, i, 0)),
                # full x row-block for K/V (block index constant in i -> not re-fetched per q-tile)
                pl.BlockSpec((1, T, d_in), lambda b, i: (b, 0, 0)),
                # grid-invariant weights
                pl.BlockSpec((d_in, d_out), lambda b, i: (0, 0)),        # wq
                pl.BlockSpec((d_in, 2 * d_out), lambda b, i: (0, 0)),    # wkv (fused)
                pl.BlockSpec((d_out, d_pad), lambda b, i: (0, 0)),       # wo (lane-padded)
                pl.BlockSpec((1, d_pad), lambda b, i: (0, 0)),           # bo (lane-padded)
            ],
            out_specs=pl.BlockSpec((1, q_tile, d_pad), lambda b, i: (b, i, 0)),
            scratch_shapes=[
                pltpu.VMEM((num_heads, q_tile, 1), jnp.float32),          # running max m
                pltpu.VMEM((num_heads, q_tile, 1), jnp.float32),          # running sum l
                pltpu.VMEM((num_heads, q_tile, head_dim), jnp.float32),   # accumulator
            ],
        ),
        compiler_params=pltpu.CompilerParams(
            dimension_semantics=("parallel", "parallel"),
            # explicit scoped-VMEM budget with headroom; stays < v7x's 64 MiB physical
            vmem_limit_bytes=48 * 1024 * 1024,
        ),
        cost_estimate=pl.CostEstimate(
            flops=flops, transcendentals=transcendentals, bytes_accessed=bytes_accessed),
    )(x, x, wq, wkv, wo_p, bo_p)

    return out_p[..., :d_out]


def mha_reference(x, wq, wk, wv, wo, bo, *, num_heads):
    """Pure-JAX reference mirroring the PyTorch forward (eval mode)."""
    B, T, d_in = x.shape
    d_out = wq.shape[1]
    head_dim = d_out // num_heads
    q = (x @ wq).reshape(B, T, num_heads, head_dim).transpose(0, 2, 1, 3)
    k = (x @ wk).reshape(B, T, num_heads, head_dim).transpose(0, 2, 1, 3)
    v = (x @ wv).reshape(B, T, num_heads, head_dim).transpose(0, 2, 1, 3)
    scores = jnp.einsum("bhqd,bhkd->bhqk", q, k) / math.sqrt(head_dim)
    mask = jnp.triu(jnp.ones((T, T), dtype=bool), k=1)
    scores = jnp.where(mask, -jnp.inf, scores)
    w = jax.nn.softmax(scores, axis=-1)
    ctx = jnp.einsum("bhqk,bhkd->bhqd", w, v).transpose(0, 2, 1, 3).reshape(B, T, d_out)
    return ctx @ wo + bo


if __name__ == "__main__":
    # Module config: MultiHeadAttention(d_in=32, d_out=32, context_length=32, dropout, num_heads=4)
    # (dropout is identity in eval mode). Tiles chosen small so the demo exercises
    # multiple query tiles, multiple KV chunks, and causal chunk skipping.
    B, T = 2, 32
    d_in, d_out = 32, 32
    num_heads = 4

    key = jax.random.PRNGKey(0)
    kx, kq, kk, kv, ko, kb = jax.random.split(key, 6)

    x = jax.random.normal(kx, (B, T, d_in), dtype=jnp.float32)

    # Deterministic "Linear" params (PyTorch stores W as (out, in); pre-transposed to
    # (in, out) so the kernel computes x @ W). qkv_bias=False; out_proj has bias.
    def linear_w(k, fan_in, fan_out):
        bound = 1.0 / math.sqrt(fan_in)
        return jax.random.uniform(k, (fan_in, fan_out), jnp.float32, -bound, bound)

    wq = linear_w(kq, d_in, d_out)
    wk = linear_w(kk, d_in, d_out)
    wv = linear_w(kv, d_in, d_out)
    wo = linear_w(ko, d_out, d_out)
    bo = jax.random.uniform(kb, (1, d_out), jnp.float32,
                            -1.0 / math.sqrt(d_out), 1.0 / math.sqrt(d_out))

    out = multi_head_attention(x, wq, wk, wv, wo, bo, num_heads=num_heads,
                               q_tile=16, kv_tile=16)
    out = jax.block_until_ready(out)

    ref = mha_reference(x, wq, wk, wv, wo, bo, num_heads=num_heads)
    assert out.shape == (B, T, d_out)
    assert jnp.allclose(out, ref, atol=2e-5, rtol=2e-5), "mismatch vs reference"

    print("KERNEL_OK")
</pallas_src>

<mosaic_0001>
module attributes {stable_mosaic.version = 11 : i64} {
  func.func @mha_kernel(%arg0: i32, %arg1: i32, %arg2: memref<1x16x32xf32, #tpu.memory_space<vmem>>, %arg3: memref<1x32x32xf32, #tpu.memory_space<vmem>>, %arg4: memref<32x32xf32, #tpu.memory_space<vmem>>, %arg5: memref<32x64xf32, #tpu.memory_space<vmem>>, %arg6: memref<32x128xf32, #tpu.memory_space<vmem>>, %arg7: memref<1x128xf32, #tpu.memory_space<vmem>>, %arg8: memref<1x16x128xf32, #tpu.memory_space<vmem>>, %arg9: memref<4x16x1xf32, #tpu.memory_space<vmem>>, %arg10: memref<4x16x1xf32, #tpu.memory_space<vmem>>, %arg11: memref<4x16x8xf32, #tpu.memory_space<vmem>>) attributes {dimension_semantics = [#tpu.dimension_semantics<parallel>, #tpu.dimension_semantics<parallel>], iteration_bounds = array<i64: 2, 2>, scalar_prefetch = 0 : i64, scratch_operands = 3 : i64, tpu.core_type = #tpu.core_type<tc>, window_params = [{transform_indices = @transform_0, window_bounds = array<i64: 1, 16, 32>}, {transform_indices = @transform_1, window_bounds = array<i64: 1, 32, 32>}, {pipeline_mode = #tpu.pipeline_mode<synchronous>, transform_indices = @transform_2, window_bounds = array<i64: 32, 32>}, {pipeline_mode = #tpu.pipeline_mode<synchronous>, transform_indices = @transform_3, window_bounds = array<i64: 32, 64>}, {pipeline_mode = #tpu.pipeline_mode<synchronous>, transform_indices = @transform_4, window_bounds = array<i64: 32, 128>}, {pipeline_mode = #tpu.pipeline_mode<synchronous>, transform_indices = @transform_5, window_bounds = array<i64: 1, 128>}, {transform_indices = @transform_6, window_bounds = array<i64: 1, 16, 128>}]} {
    %c16_i32 = arith.constant 16 : i32
    %0 = arith.muli %arg1, %c16_i32 : i32
    %c0 = arith.constant 0 : index
    %c0_0 = arith.constant 0 : index
    %c0_1 = arith.constant 0 : index
    %1 = vector.load %arg2[%c0, %c0_0, %c0_1] : memref<1x16x32xf32, #tpu.memory_space<vmem>>, vector<1x16x32xf32>
    %2 = vector.shape_cast %1 : vector<1x16x32xf32> to vector<16x32xf32>
    %c0_2 = arith.constant 0 : index
    %c0_3 = arith.constant 0 : index
    %c0_4 = arith.constant 0 : index
    %3 = vector.load %arg3[%c0_2, %c0_3, %c0_4] : memref<1x32x32xf32, #tpu.memory_space<vmem>>, vector<1x32x32xf32>
    %4 = vector.shape_cast %3 : vector<1x32x32xf32> to vector<32x32xf32>
    %c0_5 = arith.constant 0 : index
    %c0_6 = arith.constant 0 : index
    %5 = vector.load %arg4[%c0_5, %c0_6] : memref<32x32xf32, #tpu.memory_space<vmem>>, vector<32x32xf32>
    %cst = arith.constant dense<0.000000e+00> : vector<16x32xf32>
    %6 = tpu.matmul %2, %5, %cst {dimension_numbers = #tpu.dot_dimension_numbers<[1], [0], [0], [1], [0, 0, 1, 1], [], []>} : vector<16x32xf32>, vector<32x32xf32>, vector<16x32xf32> -> vector<16x32xf32>
    %c0_7 = arith.constant 0 : index
    %c0_8 = arith.constant 0 : index
    %7 = vector.load %arg5[%c0_7, %c0_8] : memref<32x64xf32, #tpu.memory_space<vmem>>, vector<32x64xf32>
    %cst_9 = arith.constant dense<0.000000e+00> : vector<32x64xf32>
    %8 = tpu.matmul %4, %7, %cst_9 {dimension_numbers = #tpu.dot_dimension_numbers<[1], [0], [0], [1], [0, 0, 1, 1], [], []>} : vector<32x32xf32>, vector<32x64xf32>, vector<32x64xf32> -> vector<32x64xf32>
    %9 = vector.extract_strided_slice %8 {offsets = [0, 0], sizes = [32, 32], strides = [1, 1]} : vector<32x64xf32> to vector<32x32xf32>
    %10 = vector.extract_strided_slice %8 {offsets = [0, 32], sizes = [32, 32], strides = [1, 1]} : vector<32x64xf32> to vector<32x32xf32>
    %11 = vector.shape_cast %6 : vector<16x32xf32> to vector<16x4x8xf32>
    %12 = tpu.transpose %11, [1, 0, 2] : vector<16x4x8xf32> -> vector<4x16x8xf32>
    %13 = vector.shape_cast %9 : vector<32x32xf32> to vector<32x4x8xf32>
    %14 = tpu.transpose %13, [1, 0, 2] : vector<32x4x8xf32> -> vector<4x32x8xf32>
    %15 = vector.shape_cast %10 : vector<32x32xf32> to vector<32x4x8xf32>
    %16 = tpu.transpose %15, [1, 0, 2] : vector<32x4x8xf32> -> vector<4x32x8xf32>
    %cst_10 = arith.constant -1.000000e+30 : f32
    %17 = vector.broadcast %cst_10 : f32 to vector<4x16x1xf32>
    %c0_11 = arith.constant 0 : index
    %c0_12 = arith.constant 0 : index
    %c0_13 = arith.constant 0 : index
    %18 = vector.load %arg9[%c0_11, %c0_12, %c0_13] : memref<4x16x1xf32, #tpu.memory_space<vmem>>, vector<4x16x1xf32>
    tpu.vector_store %arg9[%c0_11, %c0_12, %c0_13], %17 {strides = array<i32>} : memref<4x16x1xf32, #tpu.memory_space<vmem>>, vector<4x16x1xf32>,
    %cst_14 = arith.constant 0.000000e+00 : f32
    %19 = vector.broadcast %cst_14 : f32 to vector<4x16x1xf32>
    %c0_15 = arith.constant 0 : index
    %c0_16 = arith.constant 0 : index
    %c0_17 = arith.constant 0 : index
    %20 = vector.load %arg10[%c0_15, %c0_16, %c0_17] : memref<4x16x1xf32, #tpu.memory_space<vmem>>, vector<4x16x1xf32>
    tpu.vector_store %arg10[%c0_15, %c0_16, %c0_17], %19 {strides = array<i32>} : memref<4x16x1xf32, #tpu.memory_space<vmem>>, vector<4x16x1xf32>,
    %cst_18 = arith.constant 0.000000e+00 : f32
    %21 = vector.broadcast %cst_18 : f32 to vector<4x16x8xf32>
    %c0_19 = arith.constant 0 : index
    %c0_20 = arith.constant 0 : index
    %c0_21 = arith.constant 0 : index
    %22 = vector.load %arg11[%c0_19, %c0_20, %c0_21] : memref<4x16x8xf32, #tpu.memory_space<vmem>>, vector<4x16x8xf32>
    tpu.vector_store %arg11[%c0_19, %c0_20, %c0_21], %21 {strides = array<i32>} : memref<4x16x8xf32, #tpu.memory_space<vmem>>, vector<4x16x8xf32>,
    %23 = tpu.iota {dimensions = array<i32: 0>} : vector<16x16xi32>
    %24 = vector.broadcast %0 : i32 to vector<16x16xi32>
    %25 = arith.addi %24, %23 : vector<16x16xi32>
    %c16_i32_22 = arith.constant 16 : i32
    %26 = arith.addi %0, %c16_i32_22 : i32
    %c0_i32 = arith.constant 0 : i32
    %27 = arith.cmpi sgt, %26, %c0_i32 : i32
    %28 = arith.extui %27 : i1 to i32
    %c0_i32_23 = arith.constant 0 : i32
    %29 = arith.cmpi ne, %28, %c0_i32_23 : i32
    scf.if %29 {
      %49 = vector.extract_strided_slice %14 {offsets = [0, 0, 0], sizes = [4, 16, 8], strides = [1, 1, 1]} : vector<4x32x8xf32> to vector<4x16x8xf32>
      %50 = vector.extract_strided_slice %16 {offsets = [0, 0, 0], sizes = [4, 16, 8], strides = [1, 1, 1]} : vector<4x32x8xf32> to vector<4x16x8xf32>
      "tpu.trace_start"() <{level = 10 : i32, message = "hqd,hkd->hqk"}> : () -> ()
      %cst_41 = arith.constant dense<0.000000e+00> : vector<4x16x16xf32>
      %51 = tpu.matmul %12, %49, %cst_41 {dimension_numbers = #tpu.dot_dimension_numbers<[2], [2], [1], [1], [0, 0, 0, 1, 1, 1], [0], [0]>} : vector<4x16x8xf32>, vector<4x16x8xf32>, vector<4x16x16xf32> -> vector<4x16x16xf32>
      "tpu.trace_stop"() : () -> ()
      %cst_42 = arith.constant 0.353553385 : f32
      %52 = vector.broadcast %cst_42 : f32 to vector<4x16x16xf32>
      %53 = arith.mulf %51, %52 : vector<4x16x16xf32>
      %54 = tpu.iota {dimensions = array<i32: 1>} : vector<16x16xi32>
      %c0_i32_43 = arith.constant 0 : i32
      %55 = vector.broadcast %c0_i32_43 : i32 to vector<16x16xi32>
      %56 = arith.addi %55, %54 : vector<16x16xi32>
      %57 = arith.cmpi sle, %56, %25 : vector<16x16xi32>
      %58 = vector.shape_cast %57 : vector<16x16xi1> to vector<1x16x16xi1>
      %cst_44 = arith.constant -1.000000e+30 : f32
      %59 = vector.shape_cast %58 : vector<1x16x16xi1> to vector<1x16x16xi1>
      %60 = vector.broadcast %59 : vector<1x16x16xi1> to vector<4x16x16xi1>
      %61 = vector.broadcast %cst_44 : f32 to vector<4x16x16xf32>
      %62 = arith.select %60, %53, %61 : vector<4x16x16xi1>, vector<4x16x16xf32>
      %c0_45 = arith.constant 0 : index
      %c0_46 = arith.constant 0 : index
      %c0_47 = arith.constant 0 : index
      %63 = vector.load %arg9[%c0_45, %c0_46, %c0_47] : memref<4x16x1xf32, #tpu.memory_space<vmem>>, vector<4x16x1xf32>
      %cst_48 = arith.constant dense<0xFF800000> : vector<4x16xf32>
      %64 = vector.multi_reduction <maximumf>, %62, %cst_48 [2] : vector<4x16x16xf32> to vector<4x16xf32>
      %65 = vector.shape_cast %64 : vector<4x16xf32> to vector<4x16x1xf32>
      %66 = arith.maximumf %63, %65 : vector<4x16x1xf32>
      %67 = arith.subf %63, %66 : vector<4x16x1xf32>
      %68 = math.exp %67 : vector<4x16x1xf32>
      %69 = vector.broadcast %66 : vector<4x16x1xf32> to vector<4x16x16xf32>
      %70 = arith.subf %62, %69 : vector<4x16x16xf32>
      %71 = math.exp %70 : vector<4x16x16xf32>
      %c0_49 = arith.constant 0 : index
      %c0_50 = arith.constant 0 : index
      %c0_51 = arith.constant 0 : index
      %72 = vector.load %arg10[%c0_49, %c0_50, %c0_51] : memref<4x16x1xf32, #tpu.memory_space<vmem>>, vector<4x16x1xf32>
      %73 = arith.mulf %68, %72 : vector<4x16x1xf32>
      %cst_52 = arith.constant dense<0.000000e+00> : vector<4x16xf32>
      %74 = vector.multi_reduction <add>, %71, %cst_52 [2] : vector<4x16x16xf32> to vector<4x16xf32>
      %75 = vector.shape_cast %74 : vector<4x16xf32> to vector<4x16x1xf32>
      %76 = arith.addf %73, %75 : vector<4x16x1xf32>
      %c0_53 = arith.constant 0 : index
      %c0_54 = arith.constant 0 : index
      %c0_55 = arith.constant 0 : index
      %77 = vector.load %arg10[%c0_53, %c0_54, %c0_55] : memref<4x16x1xf32, #tpu.memory_space<vmem>>, vector<4x16x1xf32>
      tpu.vector_store %arg10[%c0_53, %c0_54, %c0_55], %76 {strides = array<i32>} : memref<4x16x1xf32, #tpu.memory_space<vmem>>, vector<4x16x1xf32>,
      %c0_56 = arith.constant 0 : index
      %c0_57 = arith.constant 0 : index
      %c0_58 = arith.constant 0 : index
      %78 = vector.load %arg11[%c0_56, %c0_57, %c0_58] : memref<4x16x8xf32, #tpu.memory_space<vmem>>, vector<4x16x8xf32>
      %79 = vector.broadcast %68 : vector<4x16x1xf32> to vector<4x16x8xf32>
      %80 = arith.mulf %79, %78 : vector<4x16x8xf32>
      "tpu.trace_start"() <{level = 10 : i32, message = "hqk,hkd->hqd"}> : () -> ()
      %cst_59 = arith.constant dense<0.000000e+00> : vector<4x16x8xf32>
      %81 = tpu.matmul %71, %50, %cst_59 {dimension_numbers = #tpu.dot_dimension_numbers<[2], [1], [1], [2], [0, 0, 0, 1, 1, 2], [0], [0]>} : vector<4x16x16xf32>, vector<4x16x8xf32>, vector<4x16x8xf32> -> vector<4x16x8xf32>
      "tpu.trace_stop"() : () -> ()
      %82 = arith.addf %80, %81 : vector<4x16x8xf32>
      %c0_60 = arith.constant 0 : index
      %c0_61 = arith.constant 0 : index
      %c0_62 = arith.constant 0 : index
      %83 = vector.load %arg11[%c0_60, %c0_61, %c0_62] : memref<4x16x8xf32, #tpu.memory_space<vmem>>, vector<4x16x8xf32>
      tpu.vector_store %arg11[%c0_60, %c0_61, %c0_62], %82 {strides = array<i32>} : memref<4x16x8xf32, #tpu.memory_space<vmem>>, vector<4x16x8xf32>,
      %c0_63 = arith.constant 0 : index
      %c0_64 = arith.constant 0 : index
      %c0_65 = arith.constant 0 : index
      %84 = vector.load %arg9[%c0_63, %c0_64, %c0_65] : memref<4x16x1xf32, #tpu.memory_space<vmem>>, vector<4x16x1xf32>
      tpu.vector_store %arg9[%c0_63, %c0_64, %c0_65], %66 {strides = array<i32>} : memref<4x16x1xf32, #tpu.memory_space<vmem>>, vector<4x16x1xf32>,
    } else {
    }
    %c16_i32_24 = arith.constant 16 : i32
    %30 = arith.addi %0, %c16_i32_24 : i32
    %c16_i32_25 = arith.constant 16 : i32
    %31 = arith.cmpi sgt, %30, %c16_i32_25 : i32
    %32 = arith.extui %31 : i1 to i32
    %c0_i32_26 = arith.constant 0 : i32
    %33 = arith.cmpi ne, %32, %c0_i32_26 : i32
    scf.if %33 {
      %49 = vector.extract_strided_slice %14 {offsets = [0, 16, 0], sizes = [4, 16, 8], strides = [1, 1, 1]} : vector<4x32x8xf32> to vector<4x16x8xf32>
      %50 = vector.extract_strided_slice %16 {offsets = [0, 16, 0], sizes = [4, 16, 8], strides = [1, 1, 1]} : vector<4x32x8xf32> to vector<4x16x8xf32>
      "tpu.trace_start"() <{level = 10 : i32, message = "hqd,hkd->hqk"}> : () -> ()
      %cst_41 = arith.constant dense<0.000000e+00> : vector<4x16x16xf32>
      %51 = tpu.matmul %12, %49, %cst_41 {dimension_numbers = #tpu.dot_dimension_numbers<[2], [2], [1], [1], [0, 0, 0, 1, 1, 1], [0], [0]>} : vector<4x16x8xf32>, vector<4x16x8xf32>, vector<4x16x16xf32> -> vector<4x16x16xf32>
      "tpu.trace_stop"() : () -> ()
      %cst_42 = arith.constant 0.353553385 : f32
      %52 = vector.broadcast %cst_42 : f32 to vector<4x16x16xf32>
      %53 = arith.mulf %51, %52 : vector<4x16x16xf32>
      %54 = tpu.iota {dimensions = array<i32: 1>} : vector<16x16xi32>
      %c16_i32_43 = arith.constant 16 : i32
      %55 = vector.broadcast %c16_i32_43 : i32 to vector<16x16xi32>
      %56 = arith.addi %55, %54 : vector<16x16xi32>
      %57 = arith.cmpi sle, %56, %25 : vector<16x16xi32>
      %58 = vector.shape_cast %57 : vector<16x16xi1> to vector<1x16x16xi1>
      %cst_44 = arith.constant -1.000000e+30 : f32
      %59 = vector.shape_cast %58 : vector<1x16x16xi1> to vector<1x16x16xi1>
      %60 = vector.broadcast %59 : vector<1x16x16xi1> to vector<4x16x16xi1>
      %61 = vector.broadcast %cst_44 : f32 to vector<4x16x16xf32>
      %62 = arith.select %60, %53, %61 : vector<4x16x16xi1>, vector<4x16x16xf32>
      %c0_45 = arith.constant 0 : index
      %c0_46 = arith.constant 0 : index
      %c0_47 = arith.constant 0 : index
      %63 = vector.load %arg9[%c0_45, %c0_46, %c0_47] : memref<4x16x1xf32, #tpu.memory_space<vmem>>, vector<4x16x1xf32>
      %cst_48 = arith.constant dense<0xFF800000> : vector<4x16xf32>
      %64 = vector.multi_reduction <maximumf>, %62, %cst_48 [2] : vector<4x16x16xf32> to vector<4x16xf32>
      %65 = vector.shape_cast %64 : vector<4x16xf32> to vector<4x16x1xf32>
      %66 = arith.maximumf %63, %65 : vector<4x16x1xf32>
      %67 = arith.subf %63, %66 : vector<4x16x1xf32>
      %68 = math.exp %67 : vector<4x16x1xf32>
      %69 = vector.broadcast %66 : vector<4x16x1xf32> to vector<4x16x16xf32>
      %70 = arith.subf %62, %69 : vector<4x16x16xf32>
      %71 = math.exp %70 : vector<4x16x16xf32>
      %c0_49 = arith.constant 0 : index
      %c0_50 = arith.constant 0 : index
      %c0_51 = arith.constant 0 : index
      %72 = vector.load %arg10[%c0_49, %c0_50, %c0_51] : memref<4x16x1xf32, #tpu.memory_space<vmem>>, vector<4x16x1xf32>
      %73 = arith.mulf %68, %72 : vector<4x16x1xf32>
      %cst_52 = arith.constant dense<0.000000e+00> : vector<4x16xf32>
      %74 = vector.multi_reduction <add>, %71, %cst_52 [2] : vector<4x16x16xf32> to vector<4x16xf32>
      %75 = vector.shape_cast %74 : vector<4x16xf32> to vector<4x16x1xf32>
      %76 = arith.addf %73, %75 : vector<4x16x1xf32>
      %c0_53 = arith.constant 0 : index
      %c0_54 = arith.constant 0 : index
      %c0_55 = arith.constant 0 : index
      %77 = vector.load %arg10[%c0_53, %c0_54, %c0_55] : memref<4x16x1xf32, #tpu.memory_space<vmem>>, vector<4x16x1xf32>
      tpu.vector_store %arg10[%c0_53, %c0_54, %c0_55], %76 {strides = array<i32>} : memref<4x16x1xf32, #tpu.memory_space<vmem>>, vector<4x16x1xf32>,
      %c0_56 = arith.constant 0 : index
      %c0_57 = arith.constant 0 : index
      %c0_58 = arith.constant 0 : index
      %78 = vector.load %arg11[%c0_56, %c0_57, %c0_58] : memref<4x16x8xf32, #tpu.memory_space<vmem>>, vector<4x16x8xf32>
      %79 = vector.broadcast %68 : vector<4x16x1xf32> to vector<4x16x8xf32>
      %80 = arith.mulf %79, %78 : vector<4x16x8xf32>
      "tpu.trace_start"() <{level = 10 : i32, message = "hqk,hkd->hqd"}> : () -> ()
      %cst_59 = arith.constant dense<0.000000e+00> : vector<4x16x8xf32>
      %81 = tpu.matmul %71, %50, %cst_59 {dimension_numbers = #tpu.dot_dimension_numbers<[2], [1], [1], [2], [0, 0, 0, 1, 1, 2], [0], [0]>} : vector<4x16x16xf32>, vector<4x16x8xf32>, vector<4x16x8xf32> -> vector<4x16x8xf32>
      "tpu.trace_stop"() : () -> ()
      %82 = arith.addf %80, %81 : vector<4x16x8xf32>
      %c0_60 = arith.constant 0 : index
      %c0_61 = arith.constant 0 : index
      %c0_62 = arith.constant 0 : index
      %83 = vector.load %arg11[%c0_60, %c0_61, %c0_62] : memref<4x16x8xf32, #tpu.memory_space<vmem>>, vector<4x16x8xf32>
      tpu.vector_store %arg11[%c0_60, %c0_61, %c0_62], %82 {strides = array<i32>} : memref<4x16x8xf32, #tpu.memory_space<vmem>>, vector<4x16x8xf32>,
      %c0_63 = arith.constant 0 : index
      %c0_64 = arith.constant 0 : index
      %c0_65 = arith.constant 0 : index
      %84 = vector.load %arg9[%c0_63, %c0_64, %c0_65] : memref<4x16x1xf32, #tpu.memory_space<vmem>>, vector<4x16x1xf32>
      tpu.vector_store %arg9[%c0_63, %c0_64, %c0_65], %66 {strides = array<i32>} : memref<4x16x1xf32, #tpu.memory_space<vmem>>, vector<4x16x1xf32>,
    } else {
    }
    %c0_27 = arith.constant 0 : index
    %c0_28 = arith.constant 0 : index
    %c0_29 = arith.constant 0 : index
    %34 = vector.load %arg11[%c0_27, %c0_28, %c0_29] : memref<4x16x8xf32, #tpu.memory_space<vmem>>, vector<4x16x8xf32>
    %c0_30 = arith.constant 0 : index
    %c0_31 = arith.constant 0 : index
    %c0_32 = arith.constant 0 : index
    %35 = vector.load %arg10[%c0_30, %c0_31, %c0_32] : memref<4x16x1xf32, #tpu.memory_space<vmem>>, vector<4x16x1xf32>
    %36 = tpu.reciprocal %35 : vector<4x16x1xf32> -> vector<4x16x1xf32>
    %37 = vector.broadcast %36 : vector<4x16x1xf32> to vector<4x16x8xf32>
    %38 = arith.mulf %34, %37 : vector<4x16x8xf32>
    %39 = tpu.transpose %38, [1, 0, 2] : vector<4x16x8xf32> -> vector<16x4x8xf32>
    %40 = vector.shape_cast %39 : vector<16x4x8xf32> to vector<16x32xf32>
    %c0_33 = arith.constant 0 : index
    %c0_34 = arith.constant 0 : index
    %41 = vector.load %arg6[%c0_33, %c0_34] : memref<32x128xf32, #tpu.memory_space<vmem>>, vector<32x128xf32>
    %cst_35 = arith.constant dense<0.000000e+00> : vector<16x128xf32>
    %42 = tpu.matmul %40, %41, %cst_35 {dimension_numbers = #tpu.dot_dimension_numbers<[1], [0], [0], [1], [0, 0, 1, 1], [], []>} : vector<16x32xf32>, vector<32x128xf32>, vector<16x128xf32> -> vector<16x128xf32>
    %c0_36 = arith.constant 0 : index
    %c0_37 = arith.constant 0 : index
    %43 = vector.load %arg7[%c0_36, %c0_37] : memref<1x128xf32, #tpu.memory_space<vmem>>, vector<1x128xf32>
    %44 = vector.broadcast %43 : vector<1x128xf32> to vector<16x128xf32>
    %45 = arith.addf %42, %44 : vector<16x128xf32>
    %c0_38 = arith.constant 0 : index
    %c0_39 = arith.constant 0 : index
    %c0_40 = arith.constant 0 : index
    %46 = vector.load %arg8[%c0_38, %c0_39, %c0_40] : memref<1x16x128xf32, #tpu.memory_space<vmem>>, vector<1x16x128xf32>
    %47 = vector.shape_cast %46 : vector<1x16x128xf32> to vector<16x128xf32>
    %48 = vector.shape_cast %45 : vector<16x128xf32> to vector<1x16x128xf32>
    tpu.vector_store %arg8[%c0_38, %c0_39, %c0_40], %48 {strides = array<i32>} : memref<1x16x128xf32, #tpu.memory_space<vmem>>, vector<1x16x128xf32>,
    return
  }
  func.func @transform_0(%arg0: i32, %arg1: i32) -> (i32, i32, i32) {
    %c0_i32 = arith.constant 0 : i32
    %c0_i32_0 = arith.constant 0 : i32
    return %arg0, %arg1, %c0_i32 : i32, i32, i32
  }
  func.func @transform_1(%arg0: i32, %arg1: i32) -> (i32, i32, i32) {
    %c0_i32 = arith.constant 0 : i32
    %c0_i32_0 = arith.constant 0 : i32
    %c0_i32_1 = arith.constant 0 : i32
    return %arg0, %c0_i32, %c0_i32_0 : i32, i32, i32
  }
  func.func @transform_2(%arg0: i32, %arg1: i32) -> (i32, i32) {
    %c0_i32 = arith.constant 0 : i32
    %c0_i32_0 = arith.constant 0 : i32
    %c0_i32_1 = arith.constant 0 : i32
    return %c0_i32, %c0_i32_0 : i32, i32
  }
  func.func @transform_3(%arg0: i32, %arg1: i32) -> (i32, i32) {
    %c0_i32 = arith.constant 0 : i32
    %c0_i32_0 = arith.constant 0 : i32
    %c0_i32_1 = arith.constant 0 : i32
    return %c0_i32, %c0_i32_0 : i32, i32
  }
  func.func @transform_4(%arg0: i32, %arg1: i32) -> (i32, i32) {
    %c0_i32 = arith.constant 0 : i32
    %c0_i32_0 = arith.constant 0 : i32
    %c0_i32_1 = arith.constant 0 : i32
    return %c0_i32, %c0_i32_0 : i32, i32
  }
  func.func @transform_5(%arg0: i32, %arg1: i32) -> (i32, i32) {
    %c0_i32 = arith.constant 0 : i32
    %c0_i32_0 = arith.constant 0 : i32
    %c0_i32_1 = arith.constant 0 : i32
    return %c0_i32, %c0_i32_0 : i32, i32
  }
  func.func @transform_6(%arg0: i32, %arg1: i32) -> (i32, i32, i32) {
    %c0_i32 = arith.constant 0 : i32
    %c0_i32_0 = arith.constant 0 : i32
    return %arg0, %arg1, %c0_i32 : i32, i32, i32
  }
}

</mosaic_0001>

<llo_original>
// kernel: tpu_custom_call.1
$region0: #{tpu_custom_call.1}
  #allocation0 [shape = 'u32[]', space=smem, size = 0x4, offset = 0x4, fixed_abs, tag = 'smem constant byte address 0x4 - core index']
  #allocation1 [shape = 'u32[72,128]{1,0:T(1,128)}', space=vmem, size = 0x9000, scoped, tag = 'internal scratch']
  #allocation2 [shape = 'f32[4,16,1]{2,1,0:T(8,128)}', space=vmem, size = 0x8000, scoped, tag = 'scratch operand']
  #allocation3 [shape = 'f32[4,16,1]{2,1,0:T(8,128)}', space=vmem, size = 0x8000, scoped, tag = 'scratch operand']
  #allocation4 [shape = 'f32[4,16,8]{2,1,0:T(8,128)}', space=vmem, size = 0x8000, scoped, tag = 'scratch operand']
  %s0 = inlined_call_operand.hbm [shape: f32[2,32,32], index: 0, kind: input, shape index: {}]
  %s1 = inlined_call_operand.hbm [shape: f32[2,32,32], index: 1, kind: input, shape index: {}]
  %s2 = inlined_call_operand.hbm [shape: f32[32,32], index: 2, kind: input, shape index: {}]
  %s3 = inlined_call_operand.hbm [shape: f32[32,64], index: 3, kind: input, shape index: {}]
  %s4 = inlined_call_operand.hbm [shape: f32[32,128], index: 4, kind: input, shape index: {}]
  %s5 = inlined_call_operand.vmem [shape: f32[1,128], index: 5, kind: input, shape index: {}]
  %s6 = inlined_call_operand.hbm [shape: f32[2,32,128], index: 6, kind: output, shape index: {}]
  %s7 = sld [smem:[#allocation0]]
  $region85: #{tpu_custom_call.1} parent=0
    _
  %s9 = ssub.s32 1, %s7
  %s10 = scalar_select 0, %s9, %s7
  $region1: #{tpu_custom_call.1} parent=0
    #allocation5 [shape = 'u8[16384]{0}', space=vmem, size = 0x4000, scoped, tag = 'input window, operand 0']
    #allocation6 [shape = 's32[2]{0}', space=sflag, size = 0x8, scoped, tag = 'scoped memory for tpu_custom_call.1']
    #allocation7 [shape = 's32[2]{0}', space=sflag, size = 0x8, scoped, tag = 'scoped memory for tpu_custom_call.1']
    #allocation8 [shape = 'u8[32768]{0}', space=vmem, size = 0x8000, scoped, tag = 'input window, operand 1']
    #allocation9 [shape = 's32[2]{0}', space=sflag, size = 0x8, scoped, tag = 'scoped memory for tpu_custom_call.1']
    #allocation10 [shape = 'u8[16384]{0}', space=vmem, size = 0x4000, scoped, tag = 'input window, operand 2, single buffered']
    #allocation11 [shape = 'u8[16384]{0}', space=vmem, size = 0x4000, scoped, tag = 'input window, operand 3, single buffered']
    #allocation12 [shape = 's32[1]{0}', space=sflag, size = 0x4, scoped, tag = 'scoped memory for tpu_custom_call.1']
    #allocation13 [shape = 'u8[16384]{0}', space=vmem, size = 0x4000, scoped, tag = 'input window, operand 4, single buffered']
    #allocation14 [shape = 'u8[16384]{0}', space=vmem, size = 0x4000, scoped, tag = 'output window, operand 0']
    %11 = vsyncpa [#allocation6], 0
    %s12 = scalar_lea.sflag [#allocation6], 1
    %13 = vsyncpa %s12, 0
    %14 = vsyncpa [#allocation9], 0
    %s15 = scalar_lea.sflag [#allocation9], 1
    %16 = vsyncpa %s15, 0
    %17 = vsyncpa [#allocation12], 0
    %18 = vsyncpa [#allocation7], 0
    %s19 = scalar_lea.sflag [#allocation7], 1
    %20 = vsyncpa %s19, 0
    loop: start=0, step=1, limit=6
    $region2: #{tpu_custom_call.1} parent=1 // loop_pre_header
      _
    $region3: #{tpu_custom_call.1} parent=1 // loop_header
      %s22 = sphi 0, %s26
      %p23 = scmp.ge.s32.totalorder %s22, 6
      %s29 = sphi 0, %s41
      %s30 = sphi 0, %s37
      %s31 = sphi 0, %s29
      %s32 = sphi 0, %s30
      %s33 = sphi 0, %s31
      %s34 = sphi 0, %s32
      %s46 = sphi 0, %s48
      %s49 = sphi 0, %s46
      %s50 = sphi 0, %s49
      %s66 = sphi 0, %s50
      %s72 = sphi 0, %s74
      %s75 = sphi 0, %s72
      %s76 = sphi 0, %s75
      %s92 = sphi 0, %s76
      %s96 = sphi 0, %s96
      %s98 = sphi 0, %s96
      %s99 = sphi 0, %s98
      %s113 = sphi 0, %s99
      %s117 = sphi 0, %s117
      %s119 = sphi 0, %s117
      %s120 = sphi 0, %s119
      %s134 = sphi 0, %s120
      %s138 = sphi 0, %s138
      %s140 = sphi 0, %s138
      %s141 = sphi 0, %s140
      %s155 = sphi 0, %s141
      %s159 = sphi 0, %s159
      %s161 = sphi 0, %s159
      %s162 = sphi 0, %s161
      %s176 = sphi 0, %s162
      %s184 = sphi 0, %s186
      %s187 = sphi 0, %s184
      %s188 = sphi 0, %s187
      %s204 = sphi 0, %s188
    $region4: #{tpu_custom_call.1} parent=1 // loop_header_branch
      %25 = sbr.rel (%p23) target = $region8
    $region5: #{tpu_custom_call.1} parent=1 // loop_body
      %s27 = ssub.s32 %s22, 1
      %s28 = ssub.s32 %s22, 2
      %s35 = sadd.s32 1, %s30
      %p36 = scmp.ge.s32.totalorder %s35, 2
      %s37 = scalar_select %p36, 0, %s35
      %s38 = sadd.s32 1, %s29
      %s39 = scalar_select %p36, %s38, %s29
      %p40 = scmp.ge.s32.totalorder %s39, 2
      %s41 = scalar_select %p40, 0, %s39
      %s42 = ssub.s32 %s29, %s41
      %s43 = ssub.s32 %s30, %s37
      %s44 = sor.u32 %s42, %s43
      %p45 = scmp.eq.s32.totalorder %s44, 0
      %s47 = sadd.s32 %s46, 1
      %s48 = scalar_select %p45, %s46, %s47
      %p51 = pneg %p45
      %p52 = scmp.eq.s32.totalorder %s22, 3
      %p53 = por %p51, %p52
      %p54 = scmp.ne.s32.totalorder %s46, %s49
      %p55 = scmp.eq.s32.totalorder %s22, 0
      %p56 = por %p54, %p55
      %p57 = scmp.ne.s32.totalorder %s46, %s49
      %p58 = scmp.eq.s32.totalorder %s27, 3
      %p59 = por %p57, %p58
      %p60 = scmp.ne.s32.totalorder %s49, %s50
      %p61 = scmp.eq.s32.totalorder %s27, 0
      %p62 = por %p60, %p61
      %p63 = scmp.ne.s32.totalorder %s49, %s50
      %p64 = scmp.eq.s32.totalorder %s28, 3
      %p65 = por %p63, %p64
      %p67 = scmp.ne.s32.totalorder %s50, %s66
      %p68 = scmp.eq.s32.totalorder %s28, 0
      %p69 = por %p67, %p68
      %s70 = ssub.s32 %s29, %s41
      %p71 = scmp.eq.s32.totalorder %s70, 0
      %s73 = sadd.s32 %s72, 1
      %s74 = scalar_select %p71, %s72, %s73
      %p77 = pneg %p71
      %p78 = scmp.eq.s32.totalorder %s22, 3
      %p79 = por %p77, %p78
      %p80 = scmp.ne.s32.totalorder %s72, %s75
      %p81 = scmp.eq.s32.totalorder %s22, 0
      %p82 = por %p80, %p81
      %p83 = scmp.ne.s32.totalorder %s72, %s75
      %p84 = scmp.eq.s32.totalorder %s27, 3
      %p85 = por %p83, %p84
      %p86 = scmp.ne.s32.totalorder %s75, %s76
      %p87 = scmp.eq.s32.totalorder %s27, 0
      %p88 = por %p86, %p87
      %p89 = scmp.ne.s32.totalorder %s75, %s76
      %p90 = scmp.eq.s32.totalorder %s28, 3
      %p91 = por %p89, %p90
      %p93 = scmp.ne.s32.totalorder %s76, %s92
      %p94 = scmp.eq.s32.totalorder %s28, 0
      %p95 = por %p93, %p94
      %s97 = sadd.s32 %s96, 1
      %p100 = scmp.eq.s32.totalorder %s22, 3
      %p101 = scmp.ne.s32.totalorder %s96, %s98
      %p102 = scmp.eq.s32.totalorder %s22, 0
      %p103 = por %p101, %p102
      %p104 = scmp.ne.s32.totalorder %s96, %s98
      %p105 = scmp.eq.s32.totalorder %s27, 3
      %p106 = por %p104, %p105
      %p107 = scmp.ne.s32.totalorder %s98, %s99
      %p108 = scmp.eq.s32.totalorder %s27, 0
      %p109 = por %p107, %p108
      %p110 = scmp.ne.s32.totalorder %s98, %s99
      %p111 = scmp.eq.s32.totalorder %s28, 3
      %p112 = por %p110, %p111
      %p114 = scmp.ne.s32.totalorder %s99, %s113
      %p115 = scmp.eq.s32.totalorder %s28, 0
      %p116 = por %p114, %p115
      %s118 = sadd.s32 %s117, 1
      %p121 = scmp.eq.s32.totalorder %s22, 3
      %p122 = scmp.ne.s32.totalorder %s117, %s119
      %p123 = scmp.eq.s32.totalorder %s22, 0
      %p124 = por %p122, %p123
      %p125 = scmp.ne.s32.totalorder %s117, %s119
      %p126 = scmp.eq.s32.totalorder %s27, 3
      %p127 = por %p125, %p126
      %p128 = scmp.ne.s32.totalorder %s119, %s120
      %p129 = scmp.eq.s32.totalorder %s27, 0
      %p130 = por %p128, %p129
      %p131 = scmp.ne.s32.totalorder %s119, %s120
      %p132 = scmp.eq.s32.totalorder %s28, 3
      %p133 = por %p131, %p132
      %p135 = scmp.ne.s32.totalorder %s120, %s134
      %p136 = scmp.eq.s32.totalorder %s28, 0
      %p137 = por %p135, %p136
      %s139 = sadd.s32 %s138, 1
      %p142 = scmp.eq.s32.totalorder %s22, 3
      %p143 = scmp.ne.s32.totalorder %s138, %s140
      %p144 = scmp.eq.s32.totalorder %s22, 0
      %p145 = por %p143, %p144
      %p146 = scmp.ne.s32.totalorder %s138, %s140
      %p147 = scmp.eq.s32.totalorder %s27, 3
      %p148 = por %p146, %p147
      %p149 = scmp.ne.s32.totalorder %s140, %s141
      %p150 = scmp.eq.s32.totalorder %s27, 0
      %p151 = por %p149, %p150
      %p152 = scmp.ne.s32.totalorder %s140, %s141
      %p153 = scmp.eq.s32.totalorder %s28, 3
      %p154 = por %p152, %p153
      %p156 = scmp.ne.s32.totalorder %s141, %s155
      %p157 = scmp.eq.s32.totalorder %s28, 0
      %p158 = por %p156, %p157
      %s160 = sadd.s32 %s159, 1
      %p163 = scmp.eq.s32.totalorder %s22, 3
      %p164 = scmp.ne.s32.totalorder %s159, %s161
      %p165 = scmp.eq.s32.totalorder %s22, 0
      %p166 = por %p164, %p165
      %p167 = scmp.ne.s32.totalorder %s159, %s161
      %p168 = scmp.eq.s32.totalorder %s27, 3
      %p169 = por %p167, %p168
      %p170 = scmp.ne.s32.totalorder %s161, %s162
      %p171 = scmp.eq.s32.totalorder %s27, 0
      %p172 = por %p170, %p171
      %p173 = scmp.ne.s32.totalorder %s161, %s162
      %p174 = scmp.eq.s32.totalorder %s28, 3
      %p175 = por %p173, %p174
      %p177 = scmp.ne.s32.totalorder %s162, %s176
      %p178 = scmp.eq.s32.totalorder %s28, 0
      %p179 = por %p177, %p178
      %s180 = ssub.s32 %s29, %s41
      %s181 = ssub.s32 %s30, %s37
      %s182 = sor.u32 %s180, %s181
      %p183 = scmp.eq.s32.totalorder %s182, 0
      %s185 = sadd.s32 %s184, 1
      %s186 = scalar_select %p183, %s184, %s185
      %p189 = pneg %p183
      %p190 = scmp.eq.s32.totalorder %s22, 3
      %p191 = por %p189, %p190
      %p192 = scmp.ne.s32.totalorder %s184, %s187
      %p193 = scmp.eq.s32.totalorder %s22, 0
      %p194 = por %p192, %p193
      %p195 = scmp.ne.s32.totalorder %s184, %s187
      %p196 = scmp.eq.s32.totalorder %s27, 3
      %p197 = por %p195, %p196
      %p198 = scmp.ne.s32.totalorder %s187, %s188
      %p199 = scmp.eq.s32.totalorder %s27, 0
      %p200 = por %p198, %p199
      %p201 = scmp.ne.s32.totalorder %s187, %s188
      %p202 = scmp.eq.s32.totalorder %s28, 3
      %p203 = por %p201, %p202
      %p205 = scmp.ne.s32.totalorder %s188, %s204
      %p206 = scmp.eq.s32.totalorder %s28, 0
      %p207 = por %p205, %p206
      %p208 = scmp.le.s32.totalorder 1, %s22
      %p209 = scmp.lt.s32.totalorder %s22, 5
      %p210 = pnand %p208, %p209
      %p211 = pneg %p210
      // Predicated region
      $region9: #{tpu_custom_call.1} parent=5 // pred_check
        _
      $region10: #{tpu_custom_call.1} parent=5 // pred_check_branch
        %213 = sbr.rel (%p210) target = $region12
      $region11: #{tpu_custom_call.1} parent=5 // pred_region
        %s214 = ssub.s32 %s22, 1
        // Predicated region
        $region13: #{tpu_custom_call.1} parent=11 // pred_check
          %p215 = pneg %p109
        $region14: #{tpu_custom_call.1} parent=11 // pred_check_branch
          %217 = sbr.rel (%p215) target = $region16
        $region15: #{tpu_custom_call.1} parent=11 // pred_region
          %219 = vsyncadd [#allocation9], 0
          %s220 = sshll.u32 %s2, 4
          %s221 = int_to_ptr.hbm [resolvable:$true] %s220
          %s222 = sshll.u32 [#allocation10], 4
          %s223 = int_to_ptr.vmem [resolvable:$true] %s222
          %228 = dma.hbm_to_vmem [thread:$0]  %s221, 512, %s223, [#allocation9], 128, 128, 8
        $region16: #{tpu_custom_call.1} parent=11 // pred_fallthru
          _
        // Predicated region
        $region17: #{tpu_custom_call.1} parent=11 // pred_check
          %p229 = pneg %p130
        $region18: #{tpu_custom_call.1} parent=11 // pred_check_branch
          %231 = sbr.rel (%p229) target = $region20
        $region19: #{tpu_custom_call.1} parent=11 // pred_region
          %233 = vsyncadd [#allocation12], 0
          %s234 = sshll.u32 %s3, 4
          %s235 = int_to_ptr.hbm [resolvable:$true] %s234
          %s236 = sshll.u32 [#allocation11], 4
          %s237 = int_to_ptr.vmem [resolvable:$true] %s236
          %242 = dma.hbm_to_vmem [thread:$0]  %s235, 512, %s237, [#allocation12], 128, 128, 8
        $region20: #{tpu_custom_call.1} parent=11 // pred_fallthru
          _
        // Predicated region
        $region21: #{tpu_custom_call.1} parent=11 // pred_check
          %p243 = pneg %p151
        $region22: #{tpu_custom_call.1} parent=11 // pred_check_branch
          %245 = sbr.rel (%p243) target = $region24
        $region23: #{tpu_custom_call.1} parent=11 // pred_region
          %247 = vsyncadd [#allocation12], 0
          %s248 = sshll.u32 %s4, 4
          %s249 = int_to_ptr.hbm [resolvable:$true] %s248
          %s250 = sshll.u32 [#allocation13], 4
          %s251 = int_to_ptr.vmem [resolvable:$true] %s250
          %256 = dma.hbm_to_vmem [thread:$0]  %s249, 512, %s251, [#allocation12], 128, 128, 8
        $region24: #{tpu_custom_call.1} parent=11 // pred_fallthru
          _
        // Predicated region
        $region25: #{tpu_custom_call.1} parent=11 // pred_check
          %p257 = pneg %p172
        $region26: #{tpu_custom_call.1} parent=11 // pred_check_branch
          %259 = sbr.rel (%p257) target = $region28
        $region27: #{tpu_custom_call.1} parent=11 // pred_region
          _
        $region28: #{tpu_custom_call.1} parent=11 // pred_fallthru
          _
      $region12: #{tpu_custom_call.1} parent=5 // pred_fallthru
        _
      %p260 = scmp.lt.s32.totalorder %s22, 4
      // Predicated region
      $region29: #{tpu_custom_call.1} parent=5 // pred_check
        %p261 = pneg %p260
      $region30: #{tpu_custom_call.1} parent=5 // pred_check_branch
        %263 = sbr.rel (%p261) target = $region32
      $region31: #{tpu_custom_call.1} parent=5 // pred_region
        // Predicated region
        $region33: #{tpu_custom_call.1} parent=31 // pred_check
          %p264 = pneg %p56
        $region34: #{tpu_custom_call.1} parent=31 // pred_check_branch
          %266 = sbr.rel (%p264) target = $region36
        $region35: #{tpu_custom_call.1} parent=31 // pred_region
          %s267 = sand.u32 %s46, 1
          %s268 = scalar_lea.sflag [#allocation6], %s267
          %s269 = sand.u32 %s46, 1
          %s270 = smul.addr %s269, 16
          %s271 = scalar_lea.vmem [#allocation5], %s270
          %s272 = smul.u32 2, %s30
          %274 = vsyncadd %s268, 0
          %s275 = smul.addr %s29, 4
          %s276 = sadd.s32 %s272, %s275
          %s277 = smul.addr %s276, 8
          %s278 = scalar_lea.hbm %s0, %s277
          %s279 = sshll.u32 %s278, 4
          %s280 = int_to_ptr.hbm [resolvable:$true] %s279
          %s281 = sshll.u32 %s271, 4
          %s282 = int_to_ptr.vmem [resolvable:$true] %s281
          %287 = dma.hbm_to_vmem [thread:$0]  %s280, 256, %s282, %s268, 128, 128, 8
        $region36: #{tpu_custom_call.1} parent=31 // pred_fallthru
          _
        // Predicated region
        $region37: #{tpu_custom_call.1} parent=31 // pred_check
          %p288 = pneg %p82
        $region38: #{tpu_custom_call.1} parent=31 // pred_check_branch
          %290 = sbr.rel (%p288) target = $region40
        $region39: #{tpu_custom_call.1} parent=31 // pred_region
          %s291 = sand.u32 %s22, 1
          %s292 = scalar_lea.sflag [#allocation9], %s291
          %s293 = sand.u32 %s72, 1
          %s294 = smul.addr %s293, 32
          %s295 = scalar_lea.vmem [#allocation8], %s294
          %297 = vsyncadd %s292, 0
          %s298 = smul.addr %s29, 4
          %s299 = smul.addr %s298, 8
          %s300 = scalar_lea.hbm %s1, %s299
          %s301 = sshll.u32 %s300, 4
          %s302 = int_to_ptr.hbm [resolvable:$true] %s301
          %s303 = sshll.u32 %s295, 4
          %s304 = int_to_ptr.vmem [resolvable:$true] %s303
          %309 = dma.hbm_to_vmem [thread:$0]  %s302, 512, %s304, %s292, 128, 128, 8
        $region40: #{tpu_custom_call.1} parent=31 // pred_fallthru
          _
      $region32: #{tpu_custom_call.1} parent=5 // pred_fallthru
        _
      %p310 = scmp.le.s32.totalorder 1, %s22
      %p311 = scmp.lt.s32.totalorder %s22, 5
      %p312 = pnand %p310, %p311
      %p313 = pneg %p312
      // Predicated region
      $region41: #{tpu_custom_call.1} parent=5 // pred_check
        _
      $region42: #{tpu_custom_call.1} parent=5 // pred_check_branch
        %315 = sbr.rel (%p312) target = $region44
      $region43: #{tpu_custom_call.1} parent=5 // pred_region
        %s316 = ssub.s32 %s22, 1
        %s317 = sand.u32 %s49, 1
        %s318 = scalar_lea.sflag [#allocation6], %s317
        %s319 = sand.u32 %s49, 1
        %s320 = smul.addr %s319, 16
        %s321 = scalar_lea.vmem [#allocation5], %s320
        // Predicated region
        $region45: #{tpu_custom_call.1} parent=43 // pred_check
          %p322 = pneg %p62
        $region46: #{tpu_custom_call.1} parent=43 // pred_check_branch
          %324 = sbr.rel (%p322) target = $region48
        $region47: #{tpu_custom_call.1} parent=43 // pred_region
          %326 = dma.done %s318, 256
        $region48: #{tpu_custom_call.1} parent=43 // pred_fallthru
          _
        %s327 = sand.u32 %s27, 1
        %s328 = scalar_lea.sflag [#allocation9], %s327
        %s329 = sand.u32 %s75, 1
        %s330 = smul.addr %s329, 32
        %s331 = scalar_lea.vmem [#allocation8], %s330
        // Predicated region
        $region49: #{tpu_custom_call.1} parent=43 // pred_check
          %p332 = pneg %p88
        $region50: #{tpu_custom_call.1} parent=43 // pred_check_branch
          %334 = sbr.rel (%p332) target = $region52
        $region51: #{tpu_custom_call.1} parent=43 // pred_region
          %336 = dma.done %s328, 512
        $region52: #{tpu_custom_call.1} parent=43 // pred_fallthru
          _
        // Predicated region
        $region53: #{tpu_custom_call.1} parent=43 // pred_check
          %p337 = pneg %p109
        $region54: #{tpu_custom_call.1} parent=43 // pred_check_branch
          %339 = sbr.rel (%p337) target = $region56
        $region55: #{tpu_custom_call.1} parent=43 // pred_region
          %341 = dma.done [#allocation9], 512
        $region56: #{tpu_custom_call.1} parent=43 // pred_fallthru
          _
        // Predicated region
        $region57: #{tpu_custom_call.1} parent=43 // pred_check
          %p342 = pneg %p130
        $region58: #{tpu_custom_call.1} parent=43 // pred_check_branch
          %344 = sbr.rel (%p342) target = $region60
        $region59: #{tpu_custom_call.1} parent=43 // pred_region
          %346 = dma.done [#allocation12], 512
        $region60: #{tpu_custom_call.1} parent=43 // pred_fallthru
          _
        // Predicated region
        $region61: #{tpu_custom_call.1} parent=43 // pred_check
          %p347 = pneg %p151
        $region62: #{tpu_custom_call.1} parent=43 // pred_check_branch
          %349 = sbr.rel (%p347) target = $region64
        $region63: #{tpu_custom_call.1} parent=43 // pred_region
          %351 = dma.done [#allocation12], 512
        $region64: #{tpu_custom_call.1} parent=43 // pred_fallthru
          _
        %s352 = sand.u32 %s49, 1
        %s353 = scalar_lea.sflag [#allocation6], %s352
        %s354 = sand.u32 %s49, 1
        %s355 = smul.addr %s354, 16
        %s356 = scalar_lea.vmem [#allocation5], %s355
        %p357 = pneg %p62
        %p358 = pneg %p59
        %s359 = sand.u32 %s27, 1
        %s360 = scalar_lea.sflag [#allocation9], %s359
        %s361 = sand.u32 %s75, 1
        %s362 = smul.addr %s361, 32
        %s363 = scalar_lea.vmem [#allocation8], %s362
        %p364 = pneg %p88
        %p365 = pneg %p85
        %p366 = pneg %p109
        %p367 = pneg %p106
        %p368 = pneg %p130
        %p369 = pneg %p127
        %p370 = pneg %p151
        %p371 = pneg %p148
        %p372 = pneg %p172
        %p373 = pneg %p169
        %p374 = pneg %p200
        %p375 = pneg %p197
        %s376 = sand.u32 %s187, 1
        %s377 = scalar_lea.sflag [#allocation7], %s376
        %s378 = sand.u32 %s187, 1
        %s379 = smul.addr %s378, 16
        %s380 = scalar_lea.vmem [#allocation14], %s379
        %s381 = smul.u32 2, %s32
        %s382 = smul.u32 2, %s32
        %s383 = smul.u32 %s32, 16
        %v384 = vld [vmem:[%s321] sm:$0xff]
        %v385 = vld [vmem:[%s321 + $0x8] sm:$0xff]
        %v386 = vld [vmem:[%s331] sm:$0xff]
        %v387 = vld [vmem:[%s331 + $0x8] sm:$0xff]
        %v388 = vld [vmem:[%s331 + $0x10] sm:$0xff]
        %v389 = vld [vmem:[%s331 + $0x18] sm:$0xff]
        %v390 = vld [vmem:[#allocation10] sm:$0xff]
        %v391 = vld [vmem:[#allocation10 + $0x8] sm:$0xff]
        %v392 = vld [vmem:[#allocation10 + $0x10] sm:$0xff]
        %v393 = vld [vmem:[#allocation10 + $0x18] sm:$0xff]
        %vm394 = vcmask 261120
        %v396 = vsel %vm394, %v384, 0
        %v399 = vsel %vm394, %v385, 0
        %401 = vmatpush.msra.mxu0 0.0
        %402 = vmatpush.msra.mxu0 0.0
        %403 = vmatpush.msra.mxu0 0.0
        %404 = vmatpush.msra.mxu0 0.0
        %405 = vmatpush.msra.mxu0 0.0
        %406 = vmatpush.msra.mxu0 0.0
        %407 = vmatpush.msra.mxu0 0.0
        %408 = vmatpush.msra.mxu0 0.0
        %409 = vmatpush.msra.mxu0 0.0
        %410 = vmatpush.msra.mxu0 0.0
        %411 = vmatpush.msra.mxu0 0.0
        %412 = vmatpush.msra.mxu0 0.0
        %413 = vmatpush.msra.mxu0 %v393
        %414 = vmatpush.msra.mxu0 %v392
        %415 = vmatpush.msra.mxu0 %v391
        %416 = vmatpush.msra.mxu0 %v390
        %417 = vmatmul.f32.gmra.mxu0 %v396
        %v418 = vpop.f32.mrf.mxu0
        %v419 = vadd.f32 0.0, %v418
        %420 = vmatmul.f32.gmra.mxu0 %v399
        %v421 = vpop.f32.mrf.mxu0
        %v422 = vadd.f32 0.0, %v421
        %423 = vdwg.mxu0
        %v424 = vld [vmem:[#allocation11] sm:$0xff]
        %v425 = vld [vmem:[#allocation11 + $0x8] sm:$0xff]
        %v426 = vld [vmem:[#allocation11 + $0x10] sm:$0xff]
        %v427 = vld [vmem:[#allocation11 + $0x18] sm:$0xff]
        %v429 = vsel %vm394, %v386, 0
        %v432 = vsel %vm394, %v387, 0
        %v435 = vsel %vm394, %v388, 0
        %v438 = vsel %vm394, %v389, 0
        %440 = vmatpush.msra.mxu0 0.0
        %441 = vmatpush.msra.mxu0 0.0
        %442 = vmatpush.msra.mxu0 0.0
        %443 = vmatpush.msra.mxu0 0.0
        %444 = vmatpush.msra.mxu0 0.0
        %445 = vmatpush.msra.mxu0 0.0
        %446 = vmatpush.msra.mxu0 0.0
        %447 = vmatpush.msra.mxu0 0.0
        %448 = vmatpush.msra.mxu0 0.0
        %449 = vmatpush.msra.mxu0 0.0
        %450 = vmatpush.msra.mxu0 0.0
        %451 = vmatpush.msra.mxu0 0.0
        %452 = vmatpush.msra.mxu0 %v427
        %453 = vmatpush.msra.mxu0 %v426
        %454 = vmatpush.msra.mxu0 %v425
        %455 = vmatpush.msra.mxu0 %v424
        %456 = vmatmul.f32.gmra.mxu0 %v429
        %v457 = vpop.f32.mrf.mxu0
        %v458 = vadd.f32 0.0, %v457
        %459 = vmatmul.f32.gmra.mxu0 %v432
        %v460 = vpop.f32.mrf.mxu0
        %v461 = vadd.f32 0.0, %v460
        %462 = vmatmul.f32.gmra.mxu0 %v435
        %v463 = vpop.f32.mrf.mxu0
        %v464 = vadd.f32 0.0, %v463
        %465 = vmatmul.f32.gmra.mxu0 %v438
        %v466 = vpop.f32.mrf.mxu0
        %v467 = vadd.f32 0.0, %v466
        %468 = vdwg.mxu0
        %471 = vrot.lane.b32.xlu0 %v419, 120
        %v472 = vpop.permute.xlu0 %471
        %473 = vrot.lane.b32.xlu0 %v422, 120
        %v474 = vpop.permute.xlu0 %473
        %477 = vrot.lane.b32.xlu0 %v419, 112
        %v478 = vpop.permute.xlu0 %477
        %479 = vrot.lane.b32.xlu0 %v422, 112
        %v480 = vpop.permute.xlu0 %479
        %483 = vrot.lane.b32.xlu0 %v419, 104
        %v484 = vpop.permute.xlu0 %483
        %485 = vrot.lane.b32.xlu0 %v422, 104
        %v486 = vpop.permute.xlu0 %485
        %v489 = vrot.slane %v478, 4
        %vm490 = vcmask 1047556
        %v491 = vsel %vm490, %v489, %v419
        %v492 = vrot.slane %v419, 4
        %v493 = vsel %vm490, %v478, %v492
        %v495 = vunpack.c.l.s4 1983009808
        %v496 = vunpack.c.0.s8 %v495
        %v497 = vperm.slane %v491, %v496
        %v499 = vunpack.c.l.s4 1983009808
        %v500 = vunpack.c.0.s8 %v499
        %v501 = vperm.slane %v493, %v500
        %v502 = vrot.slane %v484, 4
        %v503 = vsel %vm490, %v502, %v472
        %v504 = vrot.slane %v472, 4
        %v505 = vsel %vm490, %v484, %v504
        %v507 = vunpack.c.l.s4 1983009808
        %v508 = vunpack.c.0.s8 %v507
        %v509 = vperm.slane %v503, %v508
        %v511 = vunpack.c.l.s4 1983009808
        %v512 = vunpack.c.0.s8 %v511
        %v513 = vperm.slane %v505, %v512
        %v514 = vrot.slane %v509, 4
        %v515 = vsel %vm490, %v514, %v497
        %v516 = vrot.slane %v497, 4
        %v517 = vsel %vm490, %v509, %v516
        %v519 = vunpack.c.l.s4 1934713408
        %v520 = vunpack.c.0.s8 %v519
        %v521 = vperm.slane %v515, %v520
        %v523 = vunpack.c.l.s4 1934713408
        %v524 = vunpack.c.0.s8 %v523
        %v525 = vperm.slane %v517, %v524
        %v526 = vrot.slane %v513, 4
        %v527 = vsel %vm490, %v526, %v501
        %v528 = vrot.slane %v501, 4
        %v529 = vsel %vm490, %v513, %v528
        %v531 = vunpack.c.l.s4 1934713408
        %v532 = vunpack.c.0.s8 %v531
        %v533 = vperm.slane %v527, %v532
        %v535 = vunpack.c.l.s4 1934713408
        %v536 = vunpack.c.0.s8 %v535
        %v537 = vperm.slane %v529, %v536
        %v538 = vrot.slane %v521, 4
        %v539 = vsel %vm490, 0.0, %v538
        %v540 = vrot.slane %v525, 4
        %v541 = vsel %vm490, 0.0, %v540
        %v542 = vrot.slane %v533, 4
        %v543 = vsel %vm490, 0.0, %v542
        %v544 = vrot.slane %v537, 4
        %v545 = vsel %vm490, 0.0, %v544
        %v546 = vrot.slane %v480, 4
        %v547 = vsel %vm490, %v546, %v422
        %v548 = vrot.slane %v422, 4
        %v549 = vsel %vm490, %v480, %v548
        %v551 = vunpack.c.l.s4 1983009808
        %v552 = vunpack.c.0.s8 %v551
        %v553 = vperm.slane %v547, %v552
        %v555 = vunpack.c.l.s4 1983009808
        %v556 = vunpack.c.0.s8 %v555
        %v557 = vperm.slane %v549, %v556
        %v558 = vrot.slane %v486, 4
        %v559 = vsel %vm490, %v558, %v474
        %v560 = vrot.slane %v474, 4
        %v561 = vsel %vm490, %v486, %v560
        %v563 = vunpack.c.l.s4 1983009808
        %v564 = vunpack.c.0.s8 %v563
        %v565 = vperm.slane %v559, %v564
        %v567 = vunpack.c.l.s4 1983009808
        %v568 = vunpack.c.0.s8 %v567
        %v569 = vperm.slane %v561, %v568
        %v570 = vrot.slane %v565, 4
        %v571 = vsel %vm490, %v570, %v553
        %v572 = vrot.slane %v553, 4
        %v573 = vsel %vm490, %v565, %v572
        %v575 = vunpack.c.l.s4 1934713408
        %v576 = vunpack.c.0.s8 %v575
        %v577 = vperm.slane %v571, %v576
        %v579 = vunpack.c.l.s4 1934713408
        %v580 = vunpack.c.0.s8 %v579
        %v581 = vperm.slane %v573, %v580
        %v582 = vrot.slane %v569, 4
        %v583 = vsel %vm490, %v582, %v557
        %v584 = vrot.slane %v557, 4
        %v585 = vsel %vm490, %v569, %v584
        %v587 = vunpack.c.l.s4 1934713408
        %v588 = vunpack.c.0.s8 %v587
        %v589 = vperm.slane %v583, %v588
        %v591 = vunpack.c.l.s4 1934713408
        %v592 = vunpack.c.0.s8 %v591
        %v593 = vperm.slane %v585, %v592
        %v594 = vrot.slane %v577, 4
        %v595 = vsel %vm490, 0.0, %v594
        %v596 = vrot.slane %v581, 4
        %v597 = vsel %vm490, 0.0, %v596
        %v598 = vrot.slane %v589, 4
        %v599 = vsel %vm490, 0.0, %v598
        %v600 = vrot.slane %v593, 4
        %v601 = vsel %vm490, 0.0, %v600
        %v602 = vsel %vm490, %v540, %v521
        %v604 = vunpack.c.l.s4 1983009808
        %v605 = vunpack.c.0.s8 %v604
        %v606 = vperm.slane %v602, %v605
        %v607 = vrot.slane %v541, 4
        %v608 = vsel %vm490, %v607, %v539
        %v610 = vunpack.c.l.s4 1983009808
        %v611 = vunpack.c.0.s8 %v610
        %v612 = vperm.slane %v608, %v611
        %v613 = vsel %vm490, %v544, %v533
        %v615 = vunpack.c.l.s4 1983009808
        %v616 = vunpack.c.0.s8 %v615
        %v617 = vperm.slane %v613, %v616
        %v618 = vrot.slane %v545, 4
        %v619 = vsel %vm490, %v618, %v543
        %v621 = vunpack.c.l.s4 1983009808
        %v622 = vunpack.c.0.s8 %v621
        %v623 = vperm.slane %v619, %v622
        %v624 = vrot.slane %v612, 4
        %v625 = vsel %vm490, %v624, %v606
        %v626 = vrot.slane %v606, 4
        %v627 = vsel %vm490, %v612, %v626
        %v629 = vunpack.c.l.s4 1934713408
        %v630 = vunpack.c.0.s8 %v629
        %v631 = vperm.slane %v625, %v630
        %v633 = vunpack.c.l.s4 1934713408
        %v634 = vunpack.c.0.s8 %v633
        %v635 = vperm.slane %v627, %v634
        %v636 = vrot.slane %v623, 4
        %v637 = vsel %vm490, %v636, %v617
        %v638 = vrot.slane %v617, 4
        %v639 = vsel %vm490, %v623, %v638
        %v641 = vunpack.c.l.s4 1934713408
        %v642 = vunpack.c.0.s8 %v641
        %v643 = vperm.slane %v637, %v642
        %v645 = vunpack.c.l.s4 1934713408
        %v646 = vunpack.c.0.s8 %v645
        %v647 = vperm.slane %v639, %v646
        %v648 = vrot.slane %v643, 4
        %v649 = vsel %vm490, %v648, %v631
        %v650 = vrot.slane %v631, 4
        %v651 = vsel %vm490, %v643, %v650
        %v652 = vrot.slane %v647, 4
        %v653 = vsel %vm490, %v652, %v635
        %v654 = vrot.slane %v635, 4
        %v655 = vsel %vm490, %v647, %v654
        %v656 = vsel %vm490, %v596, %v577
        %v658 = vunpack.c.l.s4 1983009808
        %v659 = vunpack.c.0.s8 %v658
        %v660 = vperm.slane %v656, %v659
        %v661 = vrot.slane %v597, 4
        %v662 = vsel %vm490, %v661, %v595
        %v664 = vunpack.c.l.s4 1983009808
        %v665 = vunpack.c.0.s8 %v664
        %v666 = vperm.slane %v662, %v665
        %v667 = vsel %vm490, %v600, %v589
        %v669 = vunpack.c.l.s4 1983009808
        %v670 = vunpack.c.0.s8 %v669
        %v671 = vperm.slane %v667, %v670
        %v672 = vrot.slane %v601, 4
        %v673 = vsel %vm490, %v672, %v599
        %v675 = vunpack.c.l.s4 1983009808
        %v676 = vunpack.c.0.s8 %v675
        %v677 = vperm.slane %v673, %v676
        %v678 = vrot.slane %v666, 4
        %v679 = vsel %vm490, %v678, %v660
        %v680 = vrot.slane %v660, 4
        %v681 = vsel %vm490, %v666, %v680
        %v683 = vunpack.c.l.s4 1934713408
        %v684 = vunpack.c.0.s8 %v683
        %v685 = vperm.slane %v679, %v684
        %v687 = vunpack.c.l.s4 1934713408
        %v688 = vunpack.c.0.s8 %v687
        %v689 = vperm.slane %v681, %v688
        %v690 = vrot.slane %v677, 4
        %v691 = vsel %vm490, %v690, %v671
        %v692 = vrot.slane %v671, 4
        %v693 = vsel %vm490, %v677, %v692
        %v695 = vunpack.c.l.s4 1934713408
        %v696 = vunpack.c.0.s8 %v695
        %v697 = vperm.slane %v691, %v696
        %v699 = vunpack.c.l.s4 1934713408
        %v700 = vunpack.c.0.s8 %v699
        %v701 = vperm.slane %v693, %v700
        %v702 = vrot.slane %v697, 4
        %v703 = vsel %vm490, %v702, %v685
        %v704 = vrot.slane %v685, 4
        %v705 = vsel %vm490, %v697, %v704
        %v706 = vrot.slane %v701, 4
        %v707 = vsel %vm490, %v706, %v689
        %v708 = vrot.slane %v689, 4
        %v709 = vsel %vm490, %v701, %v708
        %714 = vrot.lane.b32.xlu0 %v458, 120
        %v715 = vpop.permute.xlu0 %714
        %716 = vrot.lane.b32.xlu0 %v461, 120
        %v717 = vpop.permute.xlu0 %716
        %718 = vrot.lane.b32.xlu0 %v464, 120
        %v719 = vpop.permute.xlu0 %718
        %720 = vrot.lane.b32.xlu0 %v467, 120
        %v721 = vpop.permute.xlu0 %720
        %726 = vrot.lane.b32.xlu0 %v458, 112
        %v727 = vpop.permute.xlu0 %726
        %728 = vrot.lane.b32.xlu0 %v461, 112
        %v729 = vpop.permute.xlu0 %728
        %730 = vrot.lane.b32.xlu0 %v464, 112
        %v731 = vpop.permute.xlu0 %730
        %732 = vrot.lane.b32.xlu0 %v467, 112
        %v733 = vpop.permute.xlu0 %732
        %738 = vrot.lane.b32.xlu0 %v458, 104
        %v739 = vpop.permute.xlu0 %738
        %740 = vrot.lane.b32.xlu0 %v461, 104
        %v741 = vpop.permute.xlu0 %740
        %742 = vrot.lane.b32.xlu0 %v464, 104
        %v743 = vpop.permute.xlu0 %742
        %744 = vrot.lane.b32.xlu0 %v467, 104
        %v745 = vpop.permute.xlu0 %744
        %v750 = vrot.slane %v727, 4
        %v751 = vsel %vm490, %v750, %v458
        %v752 = vrot.slane %v458, 4
        %v753 = vsel %vm490, %v727, %v752
        %v755 = vunpack.c.l.s4 1983009808
        %v756 = vunpack.c.0.s8 %v755
        %v757 = vperm.slane %v751, %v756
        %v759 = vunpack.c.l.s4 1983009808
        %v760 = vunpack.c.0.s8 %v759
        %v761 = vperm.slane %v753, %v760
        %v762 = vrot.slane %v739, 4
        %v763 = vsel %vm490, %v762, %v715
        %v764 = vrot.slane %v715, 4
        %v765 = vsel %vm490, %v739, %v764
        %v767 = vunpack.c.l.s4 1983009808
        %v768 = vunpack.c.0.s8 %v767
        %v769 = vperm.slane %v763, %v768
        %v771 = vunpack.c.l.s4 1983009808
        %v772 = vunpack.c.0.s8 %v771
        %v773 = vperm.slane %v765, %v772
        %v774 = vrot.slane %v769, 4
        %v775 = vsel %vm490, %v774, %v757
        %v776 = vrot.slane %v757, 4
        %v777 = vsel %vm490, %v769, %v776
        %v779 = vunpack.c.l.s4 1934713408
        %v780 = vunpack.c.0.s8 %v779
        %v781 = vperm.slane %v775, %v780
        %v783 = vunpack.c.l.s4 1934713408
        %v784 = vunpack.c.0.s8 %v783
        %v785 = vperm.slane %v777, %v784
        %v786 = vrot.slane %v773, 4
        %v787 = vsel %vm490, %v786, %v761
        %v788 = vrot.slane %v761, 4
        %v789 = vsel %vm490, %v773, %v788
        %v791 = vunpack.c.l.s4 1934713408
        %v792 = vunpack.c.0.s8 %v791
        %v793 = vperm.slane %v787, %v792
        %v795 = vunpack.c.l.s4 1934713408
        %v796 = vunpack.c.0.s8 %v795
        %v797 = vperm.slane %v789, %v796
        %v798 = vrot.slane %v781, 4
        %v799 = vsel %vm490, 0.0, %v798
        %v800 = vrot.slane %v785, 4
        %v801 = vsel %vm490, 0.0, %v800
        %v802 = vrot.slane %v793, 4
        %v803 = vsel %vm490, 0.0, %v802
        %v804 = vrot.slane %v797, 4
        %v805 = vsel %vm490, 0.0, %v804
        %v806 = vrot.slane %v729, 4
        %v807 = vsel %vm490, %v806, %v461
        %v808 = vrot.slane %v461, 4
        %v809 = vsel %vm490, %v729, %v808
        %v811 = vunpack.c.l.s4 1983009808
        %v812 = vunpack.c.0.s8 %v811
        %v813 = vperm.slane %v807, %v812
        %v815 = vunpack.c.l.s4 1983009808
        %v816 = vunpack.c.0.s8 %v815
        %v817 = vperm.slane %v809, %v816
        %v818 = vrot.slane %v741, 4
        %v819 = vsel %vm490, %v818, %v717
        %v820 = vrot.slane %v717, 4
        %v821 = vsel %vm490, %v741, %v820
        %v823 = vunpack.c.l.s4 1983009808
        %v824 = vunpack.c.0.s8 %v823
        %v825 = vperm.slane %v819, %v824
        %v827 = vunpack.c.l.s4 1983009808
        %v828 = vunpack.c.0.s8 %v827
        %v829 = vperm.slane %v821, %v828
        %v830 = vrot.slane %v825, 4
        %v831 = vsel %vm490, %v830, %v813
        %v832 = vrot.slane %v813, 4
        %v833 = vsel %vm490, %v825, %v832
        %v835 = vunpack.c.l.s4 1934713408
        %v836 = vunpack.c.0.s8 %v835
        %v837 = vperm.slane %v831, %v836
        %v839 = vunpack.c.l.s4 1934713408
        %v840 = vunpack.c.0.s8 %v839
        %v841 = vperm.slane %v833, %v840
        %v842 = vrot.slane %v829, 4
        %v843 = vsel %vm490, %v842, %v817
        %v844 = vrot.slane %v817, 4
        %v845 = vsel %vm490, %v829, %v844
        %v847 = vunpack.c.l.s4 1934713408
        %v848 = vunpack.c.0.s8 %v847
        %v849 = vperm.slane %v843, %v848
        %v851 = vunpack.c.l.s4 1934713408
        %v852 = vunpack.c.0.s8 %v851
        %v853 = vperm.slane %v845, %v852
        %v854 = vrot.slane %v837, 4
        %v855 = vsel %vm490, 0.0, %v854
        %v856 = vrot.slane %v841, 4
        %v857 = vsel %vm490, 0.0, %v856
        %v858 = vrot.slane %v849, 4
        %v859 = vsel %vm490, 0.0, %v858
        %v860 = vrot.slane %v853, 4
        %v861 = vsel %vm490, 0.0, %v860
        %v862 = vrot.slane %v731, 4
        %v863 = vsel %vm490, %v862, %v464
        %v864 = vrot.slane %v464, 4
        %v865 = vsel %vm490, %v731, %v864
        %v867 = vunpack.c.l.s4 1983009808
        %v868 = vunpack.c.0.s8 %v867
        %v869 = vperm.slane %v863, %v868
        %v871 = vunpack.c.l.s4 1983009808
        %v872 = vunpack.c.0.s8 %v871
        %v873 = vperm.slane %v865, %v872
        %v874 = vrot.slane %v743, 4
        %v875 = vsel %vm490, %v874, %v719
        %v876 = vrot.slane %v719, 4
        %v877 = vsel %vm490, %v743, %v876
        %v879 = vunpack.c.l.s4 1983009808
        %v880 = vunpack.c.0.s8 %v879
        %v881 = vperm.slane %v875, %v880
        %v883 = vunpack.c.l.s4 1983009808
        %v884 = vunpack.c.0.s8 %v883
        %v885 = vperm.slane %v877, %v884
        %v886 = vrot.slane %v881, 4
        %v887 = vsel %vm490, %v886, %v869
        %v888 = vrot.slane %v869, 4
        %v889 = vsel %vm490, %v881, %v888
        %v891 = vunpack.c.l.s4 1934713408
        %v892 = vunpack.c.0.s8 %v891
        %v893 = vperm.slane %v887, %v892
        %v895 = vunpack.c.l.s4 1934713408
        %v896 = vunpack.c.0.s8 %v895
        %v897 = vperm.slane %v889, %v896
        %v898 = vrot.slane %v885, 4
        %v899 = vsel %vm490, %v898, %v873
        %v900 = vrot.slane %v873, 4
        %v901 = vsel %vm490, %v885, %v900
        %v903 = vunpack.c.l.s4 1934713408
        %v904 = vunpack.c.0.s8 %v903
        %v905 = vperm.slane %v899, %v904
        %v907 = vunpack.c.l.s4 1934713408
        %v908 = vunpack.c.0.s8 %v907
        %v909 = vperm.slane %v901, %v908
        %v910 = vrot.slane %v893, 4
        %v911 = vsel %vm490, 0.0, %v910
        %v912 = vrot.slane %v897, 4
        %v913 = vsel %vm490, 0.0, %v912
        %v914 = vrot.slane %v905, 4
        %v915 = vsel %vm490, 0.0, %v914
        %v916 = vrot.slane %v909, 4
        %v917 = vsel %vm490, 0.0, %v916
        %v918 = vrot.slane %v733, 4
        %v919 = vsel %vm490, %v918, %v467
        %v920 = vrot.slane %v467, 4
        %v921 = vsel %vm490, %v733, %v920
        %v923 = vunpack.c.l.s4 1983009808
        %v924 = vunpack.c.0.s8 %v923
        %v925 = vperm.slane %v919, %v924
        %v927 = vunpack.c.l.s4 1983009808
        %v928 = vunpack.c.0.s8 %v927
        %v929 = vperm.slane %v921, %v928
        %v930 = vrot.slane %v745, 4
        %v931 = vsel %vm490, %v930, %v721
        %v932 = vrot.slane %v721, 4
        %v933 = vsel %vm490, %v745, %v932
        %v935 = vunpack.c.l.s4 1983009808
        %v936 = vunpack.c.0.s8 %v935
        %v937 = vperm.slane %v931, %v936
        %v939 = vunpack.c.l.s4 1983009808
        %v940 = vunpack.c.0.s8 %v939
        %v941 = vperm.slane %v933, %v940
        %v942 = vrot.slane %v937, 4
        %v943 = vsel %vm490, %v942, %v925
        %v944 = vrot.slane %v925, 4
        %v945 = vsel %vm490, %v937, %v944
        %v947 = vunpack.c.l.s4 1934713408
        %v948 = vunpack.c.0.s8 %v947
        %v949 = vperm.slane %v943, %v948
        %v951 = vunpack.c.l.s4 1934713408
        %v952 = vunpack.c.0.s8 %v951
        %v953 = vperm.slane %v945, %v952
        %v954 = vrot.slane %v941, 4
        %v955 = vsel %vm490, %v954, %v929
        %v956 = vrot.slane %v929, 4
        %v957 = vsel %vm490, %v941, %v956
        %v959 = vunpack.c.l.s4 1934713408
        %v960 = vunpack.c.0.s8 %v959
        %v961 = vperm.slane %v955, %v960
        %v963 = vunpack.c.l.s4 1934713408
        %v964 = vunpack.c.0.s8 %v963
        %v965 = vperm.slane %v957, %v964
        %v966 = vrot.slane %v949, 4
        %v967 = vsel %vm490, 0.0, %v966
        %v968 = vrot.slane %v953, 4
        %v969 = vsel %vm490, 0.0, %v968
        %v970 = vrot.slane %v961, 4
        %v971 = vsel %vm490, 0.0, %v970
        %v972 = vrot.slane %v965, 4
        %v973 = vsel %vm490, 0.0, %v972
        %v974 = vsel %vm490, %v800, %v781
        %v976 = vunpack.c.l.s4 1983009808
        %v977 = vunpack.c.0.s8 %v976
        %v978 = vperm.slane %v974, %v977
        %v979 = vrot.slane %v801, 4
        %v980 = vsel %vm490, %v979, %v799
        %v982 = vunpack.c.l.s4 1983009808
        %v983 = vunpack.c.0.s8 %v982
        %v984 = vperm.slane %v980, %v983
        %v985 = vsel %vm490, %v804, %v793
        %v987 = vunpack.c.l.s4 1983009808
        %v988 = vunpack.c.0.s8 %v987
        %v989 = vperm.slane %v985, %v988
        %v990 = vrot.slane %v805, 4
        %v991 = vsel %vm490, %v990, %v803
        %v993 = vunpack.c.l.s4 1983009808
        %v994 = vunpack.c.0.s8 %v993
        %v995 = vperm.slane %v991, %v994
        %v996 = vrot.slane %v984, 4
        %v997 = vsel %vm490, %v996, %v978
        %v998 = vrot.slane %v978, 4
        %v999 = vsel %vm490, %v984, %v998
        %v1001 = vunpack.c.l.s4 1934713408
        %v1002 = vunpack.c.0.s8 %v1001
        %v1003 = vperm.slane %v997, %v1002
        %v1005 = vunpack.c.l.s4 1934713408
        %v1006 = vunpack.c.0.s8 %v1005
        %v1007 = vperm.slane %v999, %v1006
        %v1008 = vrot.slane %v995, 4
        %v1009 = vsel %vm490, %v1008, %v989
        %v1010 = vrot.slane %v989, 4
        %v1011 = vsel %vm490, %v995, %v1010
        %v1013 = vunpack.c.l.s4 1934713408
        %v1014 = vunpack.c.0.s8 %v1013
        %v1015 = vperm.slane %v1009, %v1014
        %v1017 = vunpack.c.l.s4 1934713408
        %v1018 = vunpack.c.0.s8 %v1017
        %v1019 = vperm.slane %v1011, %v1018
        %v1020 = vrot.slane %v1015, 4
        %v1021 = vsel %vm490, %v1020, %v1003
        %v1022 = vrot.slane %v1003, 4
        %v1023 = vsel %vm490, %v1015, %v1022
        %v1024 = vrot.slane %v1019, 4
        %v1025 = vsel %vm490, %v1024, %v1007
        %v1026 = vrot.slane %v1007, 4
        %v1027 = vsel %vm490, %v1019, %v1026
        %v1028 = vsel %vm490, %v856, %v837
        %v1030 = vunpack.c.l.s4 1983009808
        %v1031 = vunpack.c.0.s8 %v1030
        %v1032 = vperm.slane %v1028, %v1031
        %v1033 = vrot.slane %v857, 4
        %v1034 = vsel %vm490, %v1033, %v855
        %v1036 = vunpack.c.l.s4 1983009808
        %v1037 = vunpack.c.0.s8 %v1036
        %v1038 = vperm.slane %v1034, %v1037
        %v1039 = vsel %vm490, %v860, %v849
        %v1041 = vunpack.c.l.s4 1983009808
        %v1042 = vunpack.c.0.s8 %v1041
        %v1043 = vperm.slane %v1039, %v1042
        %v1044 = vrot.slane %v861, 4
        %v1045 = vsel %vm490, %v1044, %v859
        %v1047 = vunpack.c.l.s4 1983009808
        %v1048 = vunpack.c.0.s8 %v1047
        %v1049 = vperm.slane %v1045, %v1048
        %v1050 = vrot.slane %v1038, 4
        %v1051 = vsel %vm490, %v1050, %v1032
        %v1052 = vrot.slane %v1032, 4
        %v1053 = vsel %vm490, %v1038, %v1052
        %v1055 = vunpack.c.l.s4 1934713408
        %v1056 = vunpack.c.0.s8 %v1055
        %v1057 = vperm.slane %v1051, %v1056
        %v1059 = vunpack.c.l.s4 1934713408
        %v1060 = vunpack.c.0.s8 %v1059
        %v1061 = vperm.slane %v1053, %v1060
        %v1062 = vrot.slane %v1049, 4
        %v1063 = vsel %vm490, %v1062, %v1043
        %v1064 = vrot.slane %v1043, 4
        %v1065 = vsel %vm490, %v1049, %v1064
        %v1067 = vunpack.c.l.s4 1934713408
        %v1068 = vunpack.c.0.s8 %v1067
        %v1069 = vperm.slane %v1063, %v1068
        %v1071 = vunpack.c.l.s4 1934713408
        %v1072 = vunpack.c.0.s8 %v1071
        %v1073 = vperm.slane %v1065, %v1072
        %v1074 = vrot.slane %v1069, 4
        %v1075 = vsel %vm490, %v1074, %v1057
        %v1076 = vrot.slane %v1057, 4
        %v1077 = vsel %vm490, %v1069, %v1076
        %v1078 = vrot.slane %v1073, 4
        %v1079 = vsel %vm490, %v1078, %v1061
        %v1080 = vrot.slane %v1061, 4
        %v1081 = vsel %vm490, %v1073, %v1080
        %v1082 = vsel %vm490, %v912, %v893
        %v1084 = vunpack.c.l.s4 1983009808
        %v1085 = vunpack.c.0.s8 %v1084
        %v1086 = vperm.slane %v1082, %v1085
        %v1087 = vrot.slane %v913, 4
        %v1088 = vsel %vm490, %v1087, %v911
        %v1090 = vunpack.c.l.s4 1983009808
        %v1091 = vunpack.c.0.s8 %v1090
        %v1092 = vperm.slane %v1088, %v1091
        %v1093 = vsel %vm490, %v916, %v905
        %v1095 = vunpack.c.l.s4 1983009808
        %v1096 = vunpack.c.0.s8 %v1095
        %v1097 = vperm.slane %v1093, %v1096
        %v1098 = vrot.slane %v917, 4
        %v1099 = vsel %vm490, %v1098, %v915
        %v1101 = vunpack.c.l.s4 1983009808
        %v1102 = vunpack.c.0.s8 %v1101
        %v1103 = vperm.slane %v1099, %v1102
        %v1104 = vrot.slane %v1092, 4
        %v1105 = vsel %vm490, %v1104, %v1086
        %v1106 = vrot.slane %v1086, 4
        %v1107 = vsel %vm490, %v1092, %v1106
        %v1109 = vunpack.c.l.s4 1934713408
        %v1110 = vunpack.c.0.s8 %v1109
        %v1111 = vperm.slane %v1105, %v1110
        %v1113 = vunpack.c.l.s4 1934713408
        %v1114 = vunpack.c.0.s8 %v1113
        %v1115 = vperm.slane %v1107, %v1114
        %v1116 = vrot.slane %v1103, 4
        %v1117 = vsel %vm490, %v1116, %v1097
        %v1118 = vrot.slane %v1097, 4
        %v1119 = vsel %vm490, %v1103, %v1118
        %v1121 = vunpack.c.l.s4 1934713408
        %v1122 = vunpack.c.0.s8 %v1121
        %v1123 = vperm.slane %v1117, %v1122
        %v1125 = vunpack.c.l.s4 1934713408
        %v1126 = vunpack.c.0.s8 %v1125
        %v1127 = vperm.slane %v1119, %v1126
        %v1128 = vrot.slane %v1123, 4
        %v1129 = vsel %vm490, %v1128, %v1111
        %v1130 = vrot.slane %v1111, 4
        %v1131 = vsel %vm490, %v1123, %v1130
        %v1132 = vrot.slane %v1127, 4
        %v1133 = vsel %vm490, %v1132, %v1115
        %v1134 = vrot.slane %v1115, 4
        %v1135 = vsel %vm490, %v1127, %v1134
        %v1136 = vsel %vm490, %v968, %v949
        %v1138 = vunpack.c.l.s4 1983009808
        %v1139 = vunpack.c.0.s8 %v1138
        %v1140 = vperm.slane %v1136, %v1139
        %v1141 = vrot.slane %v969, 4
        %v1142 = vsel %vm490, %v1141, %v967
        %v1144 = vunpack.c.l.s4 1983009808
        %v1145 = vunpack.c.0.s8 %v1144
        %v1146 = vperm.slane %v1142, %v1145
        %v1147 = vsel %vm490, %v972, %v961
        %v1149 = vunpack.c.l.s4 1983009808
        %v1150 = vunpack.c.0.s8 %v1149
        %v1151 = vperm.slane %v1147, %v1150
        %v1152 = vrot.slane %v973, 4
        %v1153 = vsel %vm490, %v1152, %v971
        %v1155 = vunpack.c.l.s4 1983009808
        %v1156 = vunpack.c.0.s8 %v1155
        %v1157 = vperm.slane %v1153, %v1156
        %v1158 = vrot.slane %v1146, 4
        %v1159 = vsel %vm490, %v1158, %v1140
        %v1160 = vrot.slane %v1140, 4
        %v1161 = vsel %vm490, %v1146, %v1160
        %v1163 = vunpack.c.l.s4 1934713408
        %v1164 = vunpack.c.0.s8 %v1163
        %v1165 = vperm.slane %v1159, %v1164
        %v1167 = vunpack.c.l.s4 1934713408
        %v1168 = vunpack.c.0.s8 %v1167
        %v1169 = vperm.slane %v1161, %v1168
        %v1170 = vrot.slane %v1157, 4
        %v1171 = vsel %vm490, %v1170, %v1151
        %v1172 = vrot.slane %v1151, 4
        %v1173 = vsel %vm490, %v1157, %v1172
        %v1175 = vunpack.c.l.s4 1934713408
        %v1176 = vunpack.c.0.s8 %v1175
        %v1177 = vperm.slane %v1171, %v1176
        %v1179 = vunpack.c.l.s4 1934713408
        %v1180 = vunpack.c.0.s8 %v1179
        %v1181 = vperm.slane %v1173, %v1180
        %v1182 = vrot.slane %v1177, 4
        %v1183 = vsel %vm490, %v1182, %v1165
        %v1184 = vrot.slane %v1165, 4
        %v1185 = vsel %vm490, %v1177, %v1184
        %v1186 = vrot.slane %v1181, 4
        %v1187 = vsel %vm490, %v1186, %v1169
        %v1188 = vrot.slane %v1169, 4
        %v1189 = vsel %vm490, %v1181, %v1188
        %1190 = vrot.lane.b32.xlu0 %v458, 96
        %v1191 = vpop.permute.xlu0 %1190
        %1192 = vrot.lane.b32.xlu0 %v461, 96
        %v1193 = vpop.permute.xlu0 %1192
        %1194 = vrot.lane.b32.xlu0 %v464, 96
        %v1195 = vpop.permute.xlu0 %1194
        %1196 = vrot.lane.b32.xlu0 %v467, 96
        %v1197 = vpop.permute.xlu0 %1196
        %1198 = vrot.lane.b32.xlu0 %v715, 96
        %v1199 = vpop.permute.xlu0 %1198
        %1200 = vrot.lane.b32.xlu0 %v717, 96
        %v1201 = vpop.permute.xlu0 %1200
        %1202 = vrot.lane.b32.xlu0 %v719, 96
        %v1203 = vpop.permute.xlu0 %1202
        %1204 = vrot.lane.b32.xlu0 %v721, 96
        %v1205 = vpop.permute.xlu0 %1204
        %1206 = vrot.lane.b32.xlu0 %v727, 96
        %v1207 = vpop.permute.xlu0 %1206
        %1208 = vrot.lane.b32.xlu0 %v729, 96
        %v1209 = vpop.permute.xlu0 %1208
        %1210 = vrot.lane.b32.xlu0 %v731, 96
        %v1211 = vpop.permute.xlu0 %1210
        %1212 = vrot.lane.b32.xlu0 %v733, 96
        %v1213 = vpop.permute.xlu0 %1212
        %1214 = vrot.lane.b32.xlu0 %v739, 96
        %v1215 = vpop.permute.xlu0 %1214
        %1216 = vrot.lane.b32.xlu0 %v741, 96
        %v1217 = vpop.permute.xlu0 %1216
        %1218 = vrot.lane.b32.xlu0 %v743, 96
        %v1219 = vpop.permute.xlu0 %1218
        %1220 = vrot.lane.b32.xlu0 %v745, 96
        %v1221 = vpop.permute.xlu0 %1220
        %v1238 = vrot.slane %v1207, 4
        %v1239 = vsel %vm490, %v1238, %v1191
        %v1240 = vrot.slane %v1191, 4
        %v1241 = vsel %vm490, %v1207, %v1240
        %v1243 = vunpack.c.l.s4 1983009808
        %v1244 = vunpack.c.0.s8 %v1243
        %v1245 = vperm.slane %v1239, %v1244
        %v1247 = vunpack.c.l.s4 1983009808
        %v1248 = vunpack.c.0.s8 %v1247
        %v1249 = vperm.slane %v1241, %v1248
        %v1250 = vrot.slane %v1215, 4
        %v1251 = vsel %vm490, %v1250, %v1199
        %v1252 = vrot.slane %v1199, 4
        %v1253 = vsel %vm490, %v1215, %v1252
        %v1255 = vunpack.c.l.s4 1983009808
        %v1256 = vunpack.c.0.s8 %v1255
        %v1257 = vperm.slane %v1251, %v1256
        %v1259 = vunpack.c.l.s4 1983009808
        %v1260 = vunpack.c.0.s8 %v1259
        %v1261 = vperm.slane %v1253, %v1260
        %v1262 = vrot.slane %v1257, 4
        %v1263 = vsel %vm490, %v1262, %v1245
        %v1264 = vrot.slane %v1245, 4
        %v1265 = vsel %vm490, %v1257, %v1264
        %v1267 = vunpack.c.l.s4 1934713408
        %v1268 = vunpack.c.0.s8 %v1267
        %v1269 = vperm.slane %v1263, %v1268
        %v1271 = vunpack.c.l.s4 1934713408
        %v1272 = vunpack.c.0.s8 %v1271
        %v1273 = vperm.slane %v1265, %v1272
        %v1274 = vrot.slane %v1261, 4
        %v1275 = vsel %vm490, %v1274, %v1249
        %v1276 = vrot.slane %v1249, 4
        %v1277 = vsel %vm490, %v1261, %v1276
        %v1279 = vunpack.c.l.s4 1934713408
        %v1280 = vunpack.c.0.s8 %v1279
        %v1281 = vperm.slane %v1275, %v1280
        %v1283 = vunpack.c.l.s4 1934713408
        %v1284 = vunpack.c.0.s8 %v1283
        %v1285 = vperm.slane %v1277, %v1284
        %v1286 = vrot.slane %v1269, 4
        %v1287 = vsel %vm490, 0.0, %v1286
        %v1288 = vrot.slane %v1273, 4
        %v1289 = vsel %vm490, 0.0, %v1288
        %v1290 = vrot.slane %v1281, 4
        %v1291 = vsel %vm490, 0.0, %v1290
        %v1292 = vrot.slane %v1285, 4
        %v1293 = vsel %vm490, 0.0, %v1292
        %v1294 = vrot.slane %v1209, 4
        %v1295 = vsel %vm490, %v1294, %v1193
        %v1296 = vrot.slane %v1193, 4
        %v1297 = vsel %vm490, %v1209, %v1296
        %v1299 = vunpack.c.l.s4 1983009808
        %v1300 = vunpack.c.0.s8 %v1299
        %v1301 = vperm.slane %v1295, %v1300
        %v1303 = vunpack.c.l.s4 1983009808
        %v1304 = vunpack.c.0.s8 %v1303
        %v1305 = vperm.slane %v1297, %v1304
        %v1306 = vrot.slane %v1217, 4
        %v1307 = vsel %vm490, %v1306, %v1201
        %v1308 = vrot.slane %v1201, 4
        %v1309 = vsel %vm490, %v1217, %v1308
        %v1311 = vunpack.c.l.s4 1983009808
        %v1312 = vunpack.c.0.s8 %v1311
        %v1313 = vperm.slane %v1307, %v1312
        %v1315 = vunpack.c.l.s4 1983009808
        %v1316 = vunpack.c.0.s8 %v1315
        %v1317 = vperm.slane %v1309, %v1316
        %v1318 = vrot.slane %v1313, 4
        %v1319 = vsel %vm490, %v1318, %v1301
        %v1320 = vrot.slane %v1301, 4
        %v1321 = vsel %vm490, %v1313, %v1320
        %v1323 = vunpack.c.l.s4 1934713408
        %v1324 = vunpack.c.0.s8 %v1323
        %v1325 = vperm.slane %v1319, %v1324
        %v1327 = vunpack.c.l.s4 1934713408
        %v1328 = vunpack.c.0.s8 %v1327
        %v1329 = vperm.slane %v1321, %v1328
        %v1330 = vrot.slane %v1317, 4
        %v1331 = vsel %vm490, %v1330, %v1305
        %v1332 = vrot.slane %v1305, 4
        %v1333 = vsel %vm490, %v1317, %v1332
        %v1335 = vunpack.c.l.s4 1934713408
        %v1336 = vunpack.c.0.s8 %v1335
        %v1337 = vperm.slane %v1331, %v1336
        %v1339 = vunpack.c.l.s4 1934713408
        %v1340 = vunpack.c.0.s8 %v1339
        %v1341 = vperm.slane %v1333, %v1340
        %v1342 = vrot.slane %v1325, 4
        %v1343 = vsel %vm490, 0.0, %v1342
        %v1344 = vrot.slane %v1329, 4
        %v1345 = vsel %vm490, 0.0, %v1344
        %v1346 = vrot.slane %v1337, 4
        %v1347 = vsel %vm490, 0.0, %v1346
        %v1348 = vrot.slane %v1341, 4
        %v1349 = vsel %vm490, 0.0, %v1348
        %v1350 = vrot.slane %v1211, 4
        %v1351 = vsel %vm490, %v1350, %v1195
        %v1352 = vrot.slane %v1195, 4
        %v1353 = vsel %vm490, %v1211, %v1352
        %v1355 = vunpack.c.l.s4 1983009808
        %v1356 = vunpack.c.0.s8 %v1355
        %v1357 = vperm.slane %v1351, %v1356
        %v1359 = vunpack.c.l.s4 1983009808
        %v1360 = vunpack.c.0.s8 %v1359
        %v1361 = vperm.slane %v1353, %v1360
        %v1362 = vrot.slane %v1219, 4
        %v1363 = vsel %vm490, %v1362, %v1203
        %v1364 = vrot.slane %v1203, 4
        %v1365 = vsel %vm490, %v1219, %v1364
        %v1367 = vunpack.c.l.s4 1983009808
        %v1368 = vunpack.c.0.s8 %v1367
        %v1369 = vperm.slane %v1363, %v1368
        %v1371 = vunpack.c.l.s4 1983009808
        %v1372 = vunpack.c.0.s8 %v1371
        %v1373 = vperm.slane %v1365, %v1372
        %v1374 = vrot.slane %v1369, 4
        %v1375 = vsel %vm490, %v1374, %v1357
        %v1376 = vrot.slane %v1357, 4
        %v1377 = vsel %vm490, %v1369, %v1376
        %v1379 = vunpack.c.l.s4 1934713408
        %v1380 = vunpack.c.0.s8 %v1379
        %v1381 = vperm.slane %v1375, %v1380
        %v1383 = vunpack.c.l.s4 1934713408
        %v1384 = vunpack.c.0.s8 %v1383
        %v1385 = vperm.slane %v1377, %v1384
        %v1386 = vrot.slane %v1373, 4
        %v1387 = vsel %vm490, %v1386, %v1361
        %v1388 = vrot.slane %v1361, 4
        %v1389 = vsel %vm490, %v1373, %v1388
        %v1391 = vunpack.c.l.s4 1934713408
        %v1392 = vunpack.c.0.s8 %v1391
        %v1393 = vperm.slane %v1387, %v1392
        %v1395 = vunpack.c.l.s4 1934713408
        %v1396 = vunpack.c.0.s8 %v1395
        %v1397 = vperm.slane %v1389, %v1396
        %v1398 = vrot.slane %v1381, 4
        %v1399 = vsel %vm490, 0.0, %v1398
        %v1400 = vrot.slane %v1385, 4
        %v1401 = vsel %vm490, 0.0, %v1400
        %v1402 = vrot.slane %v1393, 4
        %v1403 = vsel %vm490, 0.0, %v1402
        %v1404 = vrot.slane %v1397, 4
        %v1405 = vsel %vm490, 0.0, %v1404
        %v1406 = vrot.slane %v1213, 4
        %v1407 = vsel %vm490, %v1406, %v1197
        %v1408 = vrot.slane %v1197, 4
        %v1409 = vsel %vm490, %v1213, %v1408
        %v1411 = vunpack.c.l.s4 1983009808
        %v1412 = vunpack.c.0.s8 %v1411
        %v1413 = vperm.slane %v1407, %v1412
        %v1415 = vunpack.c.l.s4 1983009808
        %v1416 = vunpack.c.0.s8 %v1415
        %v1417 = vperm.slane %v1409, %v1416
        %v1418 = vrot.slane %v1221, 4
        %v1419 = vsel %vm490, %v1418, %v1205
        %v1420 = vrot.slane %v1205, 4
        %v1421 = vsel %vm490, %v1221, %v1420
        %v1423 = vunpack.c.l.s4 1983009808
        %v1424 = vunpack.c.0.s8 %v1423
        %v1425 = vperm.slane %v1419, %v1424
        %v1427 = vunpack.c.l.s4 1983009808
        %v1428 = vunpack.c.0.s8 %v1427
        %v1429 = vperm.slane %v1421, %v1428
        %v1430 = vrot.slane %v1425, 4
        %v1431 = vsel %vm490, %v1430, %v1413
        %v1432 = vrot.slane %v1413, 4
        %v1433 = vsel %vm490, %v1425, %v1432
        %v1435 = vunpack.c.l.s4 1934713408
        %v1436 = vunpack.c.0.s8 %v1435
        %v1437 = vperm.slane %v1431, %v1436
        %v1439 = vunpack.c.l.s4 1934713408
        %v1440 = vunpack.c.0.s8 %v1439
        %v1441 = vperm.slane %v1433, %v1440
        %v1442 = vrot.slane %v1429, 4
        %v1443 = vsel %vm490, %v1442, %v1417
        %v1444 = vrot.slane %v1417, 4
        %v1445 = vsel %vm490, %v1429, %v1444
        %v1447 = vunpack.c.l.s4 1934713408
        %v1448 = vunpack.c.0.s8 %v1447
        %v1449 = vperm.slane %v1443, %v1448
        %v1451 = vunpack.c.l.s4 1934713408
        %v1452 = vunpack.c.0.s8 %v1451
        %v1453 = vperm.slane %v1445, %v1452
        %v1454 = vrot.slane %v1437, 4
        %v1455 = vsel %vm490, 0.0, %v1454
        %v1456 = vrot.slane %v1441, 4
        %v1457 = vsel %vm490, 0.0, %v1456
        %v1458 = vrot.slane %v1449, 4
        %v1459 = vsel %vm490, 0.0, %v1458
        %v1460 = vrot.slane %v1453, 4
        %v1461 = vsel %vm490, 0.0, %v1460
        %v1462 = vsel %vm490, %v1288, %v1269
        %v1464 = vunpack.c.l.s4 1983009808
        %v1465 = vunpack.c.0.s8 %v1464
        %v1466 = vperm.slane %v1462, %v1465
        %v1467 = vrot.slane %v1289, 4
        %v1468 = vsel %vm490, %v1467, %v1287
        %v1470 = vunpack.c.l.s4 1983009808
        %v1471 = vunpack.c.0.s8 %v1470
        %v1472 = vperm.slane %v1468, %v1471
        %v1473 = vsel %vm490, %v1292, %v1281
        %v1475 = vunpack.c.l.s4 1983009808
        %v1476 = vunpack.c.0.s8 %v1475
        %v1477 = vperm.slane %v1473, %v1476
        %v1478 = vrot.slane %v1293, 4
        %v1479 = vsel %vm490, %v1478, %v1291
        %v1481 = vunpack.c.l.s4 1983009808
        %v1482 = vunpack.c.0.s8 %v1481
        %v1483 = vperm.slane %v1479, %v1482
        %v1484 = vrot.slane %v1472, 4
        %v1485 = vsel %vm490, %v1484, %v1466
        %v1486 = vrot.slane %v1466, 4
        %v1487 = vsel %vm490, %v1472, %v1486
        %v1489 = vunpack.c.l.s4 1934713408
        %v1490 = vunpack.c.0.s8 %v1489
        %v1491 = vperm.slane %v1485, %v1490
        %v1493 = vunpack.c.l.s4 1934713408
        %v1494 = vunpack.c.0.s8 %v1493
        %v1495 = vperm.slane %v1487, %v1494
        %v1496 = vrot.slane %v1483, 4
        %v1497 = vsel %vm490, %v1496, %v1477
        %v1498 = vrot.slane %v1477, 4
        %v1499 = vsel %vm490, %v1483, %v1498
        %v1501 = vunpack.c.l.s4 1934713408
        %v1502 = vunpack.c.0.s8 %v1501
        %v1503 = vperm.slane %v1497, %v1502
        %v1505 = vunpack.c.l.s4 1934713408
        %v1506 = vunpack.c.0.s8 %v1505
        %v1507 = vperm.slane %v1499, %v1506
        %v1508 = vrot.slane %v1503, 4
        %v1509 = vsel %vm490, %v1508, %v1491
        %v1510 = vrot.slane %v1491, 4
        %v1511 = vsel %vm490, %v1503, %v1510
        %v1512 = vrot.slane %v1507, 4
        %v1513 = vsel %vm490, %v1512, %v1495
        %v1514 = vrot.slane %v1495, 4
        %v1515 = vsel %vm490, %v1507, %v1514
        %v1516 = vsel %vm490, %v1344, %v1325
        %v1518 = vunpack.c.l.s4 1983009808
        %v1519 = vunpack.c.0.s8 %v1518
        %v1520 = vperm.slane %v1516, %v1519
        %v1521 = vrot.slane %v1345, 4
        %v1522 = vsel %vm490, %v1521, %v1343
        %v1524 = vunpack.c.l.s4 1983009808
        %v1525 = vunpack.c.0.s8 %v1524
        %v1526 = vperm.slane %v1522, %v1525
        %v1527 = vsel %vm490, %v1348, %v1337
        %v1529 = vunpack.c.l.s4 1983009808
        %v1530 = vunpack.c.0.s8 %v1529
        %v1531 = vperm.slane %v1527, %v1530
        %v1532 = vrot.slane %v1349, 4
        %v1533 = vsel %vm490, %v1532, %v1347
        %v1535 = vunpack.c.l.s4 1983009808
        %v1536 = vunpack.c.0.s8 %v1535
        %v1537 = vperm.slane %v1533, %v1536
        %v1538 = vrot.slane %v1526, 4
        %v1539 = vsel %vm490, %v1538, %v1520
        %v1540 = vrot.slane %v1520, 4
        %v1541 = vsel %vm490, %v1526, %v1540
        %v1543 = vunpack.c.l.s4 1934713408
        %v1544 = vunpack.c.0.s8 %v1543
        %v1545 = vperm.slane %v1539, %v1544
        %v1547 = vunpack.c.l.s4 1934713408
        %v1548 = vunpack.c.0.s8 %v1547
        %v1549 = vperm.slane %v1541, %v1548
        %v1550 = vrot.slane %v1537, 4
        %v1551 = vsel %vm490, %v1550, %v1531
        %v1552 = vrot.slane %v1531, 4
        %v1553 = vsel %vm490, %v1537, %v1552
        %v1555 = vunpack.c.l.s4 1934713408
        %v1556 = vunpack.c.0.s8 %v1555
        %v1557 = vperm.slane %v1551, %v1556
        %v1559 = vunpack.c.l.s4 1934713408
        %v1560 = vunpack.c.0.s8 %v1559
        %v1561 = vperm.slane %v1553, %v1560
        %v1562 = vrot.slane %v1557, 4
        %v1563 = vsel %vm490, %v1562, %v1545
        %v1564 = vrot.slane %v1545, 4
        %v1565 = vsel %vm490, %v1557, %v1564
        %v1566 = vrot.slane %v1561, 4
        %v1567 = vsel %vm490, %v1566, %v1549
        %v1568 = vrot.slane %v1549, 4
        %v1569 = vsel %vm490, %v1561, %v1568
        %v1570 = vsel %vm490, %v1400, %v1381
        %v1572 = vunpack.c.l.s4 1983009808
        %v1573 = vunpack.c.0.s8 %v1572
        %v1574 = vperm.slane %v1570, %v1573
        %v1575 = vrot.slane %v1401, 4
        %v1576 = vsel %vm490, %v1575, %v1399
        %v1578 = vunpack.c.l.s4 1983009808
        %v1579 = vunpack.c.0.s8 %v1578
        %v1580 = vperm.slane %v1576, %v1579
        %v1581 = vsel %vm490, %v1404, %v1393
        %v1583 = vunpack.c.l.s4 1983009808
        %v1584 = vunpack.c.0.s8 %v1583
        %v1585 = vperm.slane %v1581, %v1584
        %v1586 = vrot.slane %v1405, 4
        %v1587 = vsel %vm490, %v1586, %v1403
        %v1589 = vunpack.c.l.s4 1983009808
        %v1590 = vunpack.c.0.s8 %v1589
        %v1591 = vperm.slane %v1587, %v1590
        %v1592 = vrot.slane %v1580, 4
        %v1593 = vsel %vm490, %v1592, %v1574
        %v1594 = vrot.slane %v1574, 4
        %v1595 = vsel %vm490, %v1580, %v1594
        %v1597 = vunpack.c.l.s4 1934713408
        %v1598 = vunpack.c.0.s8 %v1597
        %v1599 = vperm.slane %v1593, %v1598
        %v1601 = vunpack.c.l.s4 1934713408
        %v1602 = vunpack.c.0.s8 %v1601
        %v1603 = vperm.slane %v1595, %v1602
        %v1604 = vrot.slane %v1591, 4
        %v1605 = vsel %vm490, %v1604, %v1585
        %v1606 = vrot.slane %v1585, 4
        %v1607 = vsel %vm490, %v1591, %v1606
        %v1609 = vunpack.c.l.s4 1934713408
        %v1610 = vunpack.c.0.s8 %v1609
        %v1611 = vperm.slane %v1605, %v1610
        %v1613 = vunpack.c.l.s4 1934713408
        %v1614 = vunpack.c.0.s8 %v1613
        %v1615 = vperm.slane %v1607, %v1614
        %v1616 = vrot.slane %v1611, 4
        %v1617 = vsel %vm490, %v1616, %v1599
        %v1618 = vrot.slane %v1599, 4
        %v1619 = vsel %vm490, %v1611, %v1618
        %v1620 = vrot.slane %v1615, 4
        %v1621 = vsel %vm490, %v1620, %v1603
        %v1622 = vrot.slane %v1603, 4
        %v1623 = vsel %vm490, %v1615, %v1622
        %v1624 = vsel %vm490, %v1456, %v1437
        %v1626 = vunpack.c.l.s4 1983009808
        %v1627 = vunpack.c.0.s8 %v1626
        %v1628 = vperm.slane %v1624, %v1627
        %v1629 = vrot.slane %v1457, 4
        %v1630 = vsel %vm490, %v1629, %v1455
        %v1632 = vunpack.c.l.s4 1983009808
        %v1633 = vunpack.c.0.s8 %v1632
        %v1634 = vperm.slane %v1630, %v1633
        %v1635 = vsel %vm490, %v1460, %v1449
        %v1637 = vunpack.c.l.s4 1983009808
        %v1638 = vunpack.c.0.s8 %v1637
        %v1639 = vperm.slane %v1635, %v1638
        %v1640 = vrot.slane %v1461, 4
        %v1641 = vsel %vm490, %v1640, %v1459
        %v1643 = vunpack.c.l.s4 1983009808
        %v1644 = vunpack.c.0.s8 %v1643
        %v1645 = vperm.slane %v1641, %v1644
        %v1646 = vrot.slane %v1634, 4
        %v1647 = vsel %vm490, %v1646, %v1628
        %v1648 = vrot.slane %v1628, 4
        %v1649 = vsel %vm490, %v1634, %v1648
        %v1651 = vunpack.c.l.s4 1934713408
        %v1652 = vunpack.c.0.s8 %v1651
        %v1653 = vperm.slane %v1647, %v1652
        %v1655 = vunpack.c.l.s4 1934713408
        %v1656 = vunpack.c.0.s8 %v1655
        %v1657 = vperm.slane %v1649, %v1656
        %v1658 = vrot.slane %v1645, 4
        %v1659 = vsel %vm490, %v1658, %v1639
        %v1660 = vrot.slane %v1639, 4
        %v1661 = vsel %vm490, %v1645, %v1660
        %v1663 = vunpack.c.l.s4 1934713408
        %v1664 = vunpack.c.0.s8 %v1663
        %v1665 = vperm.slane %v1659, %v1664
        %v1667 = vunpack.c.l.s4 1934713408
        %v1668 = vunpack.c.0.s8 %v1667
        %v1669 = vperm.slane %v1661, %v1668
        %v1670 = vrot.slane %v1665, 4
        %v1671 = vsel %vm490, %v1670, %v1653
        %v1672 = vrot.slane %v1653, 4
        %v1673 = vsel %vm490, %v1665, %v1672
        %v1674 = vrot.slane %v1669, 4
        %v1675 = vsel %vm490, %v1674, %v1657
        %v1676 = vrot.slane %v1657, 4
        %v1677 = vsel %vm490, %v1669, %v1676
        %vm1678 = vcmask 7168
        %1679 = vst.msk [vmem:[#allocation2] sm:$0xff] %vm1678, -1e+30
        %1680 = vst.msk [vmem:[#allocation2 + $0x8] sm:$0xff] %vm1678, -1e+30
        %1681 = vst.msk [vmem:[#allocation2 + $0x10] sm:$0xff] %vm1678, -1e+30
        %1682 = vst.msk [vmem:[#allocation2 + $0x18] sm:$0xff] %vm1678, -1e+30
        %1683 = vst.msk [vmem:[#allocation2 + $0x20] sm:$0xff] %vm1678, -1e+30
        %1684 = vst.msk [vmem:[#allocation2 + $0x28] sm:$0xff] %vm1678, -1e+30
        %1685 = vst.msk [vmem:[#allocation2 + $0x30] sm:$0xff] %vm1678, -1e+30
        %1686 = vst.msk [vmem:[#allocation2 + $0x38] sm:$0xff] %vm1678, -1e+30
        %1687 = vst.msk [vmem:[#allocation3] sm:$0xff] %vm1678, 0.0
        %1688 = vst.msk [vmem:[#allocation3 + $0x8] sm:$0xff] %vm1678, 0.0
        %1689 = vst.msk [vmem:[#allocation3 + $0x10] sm:$0xff] %vm1678, 0.0
        %1690 = vst.msk [vmem:[#allocation3 + $0x18] sm:$0xff] %vm1678, 0.0
        %1691 = vst.msk [vmem:[#allocation3 + $0x20] sm:$0xff] %vm1678, 0.0
        %1692 = vst.msk [vmem:[#allocation3 + $0x28] sm:$0xff] %vm1678, 0.0
        %1693 = vst.msk [vmem:[#allocation3 + $0x30] sm:$0xff] %vm1678, 0.0
        %1694 = vst.msk [vmem:[#allocation3 + $0x38] sm:$0xff] %vm1678, 0.0
        %vm1695 = vcmask 64512
        %1696 = vst.msk [vmem:[#allocation4] sm:$0xff] %vm1695, 0.0
        %1697 = vst.msk [vmem:[#allocation4 + $0x8] sm:$0xff] %vm1695, 0.0
        %1698 = vst.msk [vmem:[#allocation4 + $0x10] sm:$0xff] %vm1695, 0.0
        %1699 = vst.msk [vmem:[#allocation4 + $0x18] sm:$0xff] %vm1695, 0.0
        %1700 = vst.msk [vmem:[#allocation4 + $0x20] sm:$0xff] %vm1695, 0.0
        %1701 = vst.msk [vmem:[#allocation4 + $0x28] sm:$0xff] %vm1695, 0.0
        %1702 = vst.msk [vmem:[#allocation4 + $0x30] sm:$0xff] %vm1695, 0.0
        %1703 = vst.msk [vmem:[#allocation4 + $0x38] sm:$0xff] %vm1695, 0.0
        %v1704 = vlaneseq
        %v1705 = vshrl.u32 %v1704, 7
        %v1706 = vadd.s32 %v1705, 8
        %v1707 = vstv %s383
        %v1708 = vadd.s32 %v1707, %v1705
        %v1709 = vadd.s32 %v1707, %v1706
        %s1710 = sadd.s32 %s383, 16
        %p1711 = scmp.gt.s32.totalorder %s1710, 0
        // Predicated region
        $region65: #{tpu_custom_call.1} parent=43 // pred_check
          %p1712 = pneg %p1711
        $region66: #{tpu_custom_call.1} parent=43 // pred_check_branch
          %1714 = sbr.rel (%p1712) target = $region68
        $region67: #{tpu_custom_call.1} parent=43 // pred_region
          %v1716 = vsel %vm1695, %v649, 0
          %v1719 = vsel %vm1695, %v703, 0
          %v1722 = vsel %vm1695, %v1021, 0
          %v1725 = vsel %vm1695, %v1075, 0
          %1727 = vmatpush.xpose.msra.mxu0 0.0
          %1728 = vmatpush.xpose.msra.mxu0 0.0
          %1729 = vmatpush.xpose.msra.mxu0 0.0
          %1730 = vmatpush.xpose.msra.mxu0 0.0
          %1731 = vmatpush.xpose.msra.mxu0 0.0
          %1732 = vmatpush.xpose.msra.mxu0 0.0
          %1733 = vmatpush.xpose.msra.mxu0 0.0
          %1734 = vmatpush.xpose.msra.mxu0 0.0
          %1735 = vmatpush.xpose.msra.mxu0 0.0
          %1736 = vmatpush.xpose.msra.mxu0 0.0
          %1737 = vmatpush.xpose.msra.mxu0 0.0
          %1738 = vmatpush.xpose.msra.mxu0 0.0
          %1739 = vmatpush.xpose.msra.mxu0 0.0
          %1740 = vmatpush.xpose.msra.mxu0 0.0
          %1741 = vmatpush.xpose.msra.mxu0 %v1725
          %1742 = vmatpush.xpose.msra.mxu0 %v1722
          %1743 = vmatmul.f32.gmra.mxu0 %v1716
          %v1744 = vpop.f32.mrf.mxu0
          %v1745 = vadd.f32 0.0, %v1744
          %1746 = vmatmul.f32.gmra.mxu0 %v1719
          %v1747 = vpop.f32.mrf.mxu0
          %v1748 = vadd.f32 0.0, %v1747
          %1749 = vdwg.mxu0
          %v1751 = vsel %vm1695, %v651, 0
          %v1754 = vsel %vm1695, %v705, 0
          %v1757 = vsel %vm1695, %v1023, 0
          %v1760 = vsel %vm1695, %v1077, 0
          %1762 = vmatpush.xpose.msra.mxu0 0.0
          %1763 = vmatpush.xpose.msra.mxu0 0.0
          %1764 = vmatpush.xpose.msra.mxu0 0.0
          %1765 = vmatpush.xpose.msra.mxu0 0.0
          %1766 = vmatpush.xpose.msra.mxu0 0.0
          %1767 = vmatpush.xpose.msra.mxu0 0.0
          %1768 = vmatpush.xpose.msra.mxu0 0.0
          %1769 = vmatpush.xpose.msra.mxu0 0.0
          %1770 = vmatpush.xpose.msra.mxu0 0.0
          %1771 = vmatpush.xpose.msra.mxu0 0.0
          %1772 = vmatpush.xpose.msra.mxu0 0.0
          %1773 = vmatpush.xpose.msra.mxu0 0.0
          %1774 = vmatpush.xpose.msra.mxu0 0.0
          %1775 = vmatpush.xpose.msra.mxu0 0.0
          %1776 = vmatpush.xpose.msra.mxu0 %v1760
          %1777 = vmatpush.xpose.msra.mxu0 %v1757
          %1778 = vmatmul.f32.gmra.mxu0 %v1751
          %v1779 = vpop.f32.mrf.mxu0
          %v1780 = vadd.f32 0.0, %v1779
          %1781 = vmatmul.f32.gmra.mxu0 %v1754
          %v1782 = vpop.f32.mrf.mxu0
          %v1783 = vadd.f32 0.0, %v1782
          %1784 = vdwg.mxu0
          %v1786 = vsel %vm1695, %v653, 0
          %v1789 = vsel %vm1695, %v707, 0
          %v1792 = vsel %vm1695, %v1025, 0
          %v1795 = vsel %vm1695, %v1079, 0
          %1797 = vmatpush.xpose.msra.mxu0 0.0
          %1798 = vmatpush.xpose.msra.mxu0 0.0
          %1799 = vmatpush.xpose.msra.mxu0 0.0
          %1800 = vmatpush.xpose.msra.mxu0 0.0
          %1801 = vmatpush.xpose.msra.mxu0 0.0
          %1802 = vmatpush.xpose.msra.mxu0 0.0
          %1803 = vmatpush.xpose.msra.mxu0 0.0
          %1804 = vmatpush.xpose.msra.mxu0 0.0
          %1805 = vmatpush.xpose.msra.mxu0 0.0
          %1806 = vmatpush.xpose.msra.mxu0 0.0
          %1807 = vmatpush.xpose.msra.mxu0 0.0
          %1808 = vmatpush.xpose.msra.mxu0 0.0
          %1809 = vmatpush.xpose.msra.mxu0 0.0
          %1810 = vmatpush.xpose.msra.mxu0 0.0
          %1811 = vmatpush.xpose.msra.mxu0 %v1795
          %1812 = vmatpush.xpose.msra.mxu0 %v1792
          %1813 = vmatmul.f32.gmra.mxu0 %v1786
          %v1814 = vpop.f32.mrf.mxu0
          %v1815 = vadd.f32 0.0, %v1814
          %1816 = vmatmul.f32.gmra.mxu0 %v1789
          %v1817 = vpop.f32.mrf.mxu0
          %v1818 = vadd.f32 0.0, %v1817
          %1819 = vdwg.mxu0
          %v1821 = vsel %vm1695, %v655, 0
          %v1824 = vsel %vm1695, %v709, 0
          %v1827 = vsel %vm1695, %v1027, 0
          %v1830 = vsel %vm1695, %v1081, 0
          %1832 = vmatpush.xpose.msra.mxu0 0.0
          %1833 = vmatpush.xpose.msra.mxu0 0.0
          %1834 = vmatpush.xpose.msra.mxu0 0.0
          %1835 = vmatpush.xpose.msra.mxu0 0.0
          %1836 = vmatpush.xpose.msra.mxu0 0.0
          %1837 = vmatpush.xpose.msra.mxu0 0.0
          %1838 = vmatpush.xpose.msra.mxu0 0.0
          %1839 = vmatpush.xpose.msra.mxu0 0.0
          %1840 = vmatpush.xpose.msra.mxu0 0.0
          %1841 = vmatpush.xpose.msra.mxu0 0.0
          %1842 = vmatpush.xpose.msra.mxu0 0.0
          %1843 = vmatpush.xpose.msra.mxu0 0.0
          %1844 = vmatpush.xpose.msra.mxu0 0.0
          %1845 = vmatpush.xpose.msra.mxu0 0.0
          %1846 = vmatpush.xpose.msra.mxu0 %v1830
          %1847 = vmatpush.xpose.msra.mxu0 %v1827
          %1848 = vmatmul.f32.gmra.mxu0 %v1821
          %v1849 = vpop.f32.mrf.mxu0
          %v1850 = vadd.f32 0.0, %v1849
          %1851 = vmatmul.f32.gmra.mxu0 %v1824
          %v1852 = vpop.f32.mrf.mxu0
          %v1853 = vadd.f32 0.0, %v1852
          %1854 = vdwg.mxu0
          %v1855 = vmul.f32 %v1745, 0.35355338
          %v1856 = vmul.f32 %v1748, 0.35355338
          %v1857 = vmul.f32 %v1780, 0.35355338
          %v1858 = vmul.f32 %v1783, 0.35355338
          %v1859 = vmul.f32 %v1815, 0.35355338
          %v1860 = vmul.f32 %v1818, 0.35355338
          %v1861 = vmul.f32 %v1850, 0.35355338
          %v1862 = vmul.f32 %v1853, 0.35355338
          %v1863 = vlaneseq
          %v1864 = vand.u32 %v1863, 127
          %vm1865 = vcmp.le.s32.totalorder %v1864, %v1708
          %vm1866 = vcmp.le.s32.totalorder %v1864, %v1709
          %v1867 = vsel %vm1865, 1, 0
          %v1868 = vsel %vm1866, 1, 0
          %vm1869 = vcmp.eq.s32.totalorder %v1867, 1
          %vm1870 = vcmp.eq.s32.totalorder %v1868, 1
          %v1871 = vsel %vm1869, %v1855, -1e+30
          %v1872 = vsel %vm1870, %v1856, -1e+30
          %v1873 = vsel %vm1869, %v1857, -1e+30
          %v1874 = vsel %vm1870, %v1858, -1e+30
          %v1875 = vsel %vm1869, %v1859, -1e+30
          %v1876 = vsel %vm1870, %v1860, -1e+30
          %v1877 = vsel %vm1869, %v1861, -1e+30
          %v1878 = vsel %vm1870, %v1862, -1e+30
          %v1879 = vld [vmem:[#allocation2] sm:$0xff]
          %v1880 = vld [vmem:[#allocation2 + $0x8] sm:$0xff]
          %v1881 = vld [vmem:[#allocation2 + $0x10] sm:$0xff]
          %v1882 = vld [vmem:[#allocation2 + $0x18] sm:$0xff]
          %v1883 = vld [vmem:[#allocation2 + $0x20] sm:$0xff]
          %v1884 = vld [vmem:[#allocation2 + $0x28] sm:$0xff]
          %v1885 = vld [vmem:[#allocation2 + $0x30] sm:$0xff]
          %v1886 = vld [vmem:[#allocation2 + $0x38] sm:$0xff]
          %vm1887 = vcmask 130048
          %v1888 = vsel %vm1887, %v1871, -inf
          %1889 = vmax.xlane.f32.xlu0 %v1888
          %v1890 = vpop.xlane.xlu0 %1889
          %v1891 = vsel %vm1887, %v1872, -inf
          %1892 = vmax.xlane.f32.xlu0 %v1891
          %v1893 = vpop.xlane.xlu0 %1892
          %v1894 = vsel %vm1887, %v1873, -inf
          %1895 = vmax.xlane.f32.xlu0 %v1894
          %v1896 = vpop.xlane.xlu0 %1895
          %v1897 = vsel %vm1887, %v1874, -inf
          %1898 = vmax.xlane.f32.xlu0 %v1897
          %v1899 = vpop.xlane.xlu0 %1898
          %v1900 = vsel %vm1887, %v1875, -inf
          %1901 = vmax.xlane.f32.xlu0 %v1900
          %v1902 = vpop.xlane.xlu0 %1901
          %v1903 = vsel %vm1887, %v1876, -inf
          %1904 = vmax.xlane.f32.xlu0 %v1903
          %v1905 = vpop.xlane.xlu0 %1904
          %v1906 = vsel %vm1887, %v1877, -inf
          %1907 = vmax.xlane.f32.xlu0 %v1906
          %v1908 = vpop.xlane.xlu0 %1907
          %v1909 = vsel %vm1887, %v1878, -inf
          %1910 = vmax.xlane.f32.xlu0 %v1909
          %v1911 = vpop.xlane.xlu0 %1910
          %v1912 = vmax.f32 %v1879, %v1890
          %v1913 = vmax.f32 %v1880, %v1893
          %v1914 = vmax.f32 %v1881, %v1896
          %v1915 = vmax.f32 %v1882, %v1899
          %v1916 = vmax.f32 %v1883, %v1902
          %v1917 = vmax.f32 %v1884, %v1905
          %v1918 = vmax.f32 %v1885, %v1908
          %v1919 = vmax.f32 %v1886, %v1911
          %v1920 = vsub.f32 %v1879, %v1912
          %v1921 = vsub.f32 %v1880, %v1913
          %v1922 = vsub.f32 %v1881, %v1914
          %v1923 = vsub.f32 %v1882, %v1915
          %v1924 = vsub.f32 %v1883, %v1916
          %v1925 = vsub.f32 %v1884, %v1917
          %v1926 = vsub.f32 %v1885, %v1918
          %v1927 = vsub.f32 %v1886, %v1919
          %v1928 = vmul.f32 %v1920, 1.442695
          %v1929 = vpow.pop %v1928
          %v1930 = vmul.f32 %v1921, 1.442695
          %v1931 = vpow.pop %v1930
          %v1932 = vmul.f32 %v1922, 1.442695
          %v1933 = vpow.pop %v1932
          %v1934 = vmul.f32 %v1923, 1.442695
          %v1935 = vpow.pop %v1934
          %v1936 = vmul.f32 %v1924, 1.442695
          %v1937 = vpow.pop %v1936
          %v1938 = vmul.f32 %v1925, 1.442695
          %v1939 = vpow.pop %v1938
          %v1940 = vmul.f32 %v1926, 1.442695
          %v1941 = vpow.pop %v1940
          %v1942 = vmul.f32 %v1927, 1.442695
          %v1943 = vpow.pop %v1942
          %1945 = vset.pattern.permute.xlu0 0
          %1946 = vperm.xlu0 %1945, %v1912
          %v1947 = vpop.permute.xlu0 %1946
          %1950 = vset.pattern.permute.xlu0 0
          %1951 = vperm.xlu0 %1950, %v1913
          %v1952 = vpop.permute.xlu0 %1951
          %1955 = vset.pattern.permute.xlu0 0
          %1956 = vperm.xlu0 %1955, %v1914
          %v1957 = vpop.permute.xlu0 %1956
          %1960 = vset.pattern.permute.xlu0 0
          %1961 = vperm.xlu0 %1960, %v1915
          %v1962 = vpop.permute.xlu0 %1961
          %1965 = vset.pattern.permute.xlu0 0
          %1966 = vperm.xlu0 %1965, %v1916
          %v1967 = vpop.permute.xlu0 %1966
          %1970 = vset.pattern.permute.xlu0 0
          %1971 = vperm.xlu0 %1970, %v1917
          %v1972 = vpop.permute.xlu0 %1971
          %1975 = vset.pattern.permute.xlu0 0
          %1976 = vperm.xlu0 %1975, %v1918
          %v1977 = vpop.permute.xlu0 %1976
          %1980 = vset.pattern.permute.xlu0 0
          %1981 = vperm.xlu0 %1980, %v1919
          %v1982 = vpop.permute.xlu0 %1981
          %v1984 = vsub.f32 %v1871, %v1947
          %v1985 = vsub.f32 %v1872, %v1952
          %v1986 = vsub.f32 %v1873, %v1957
          %v1987 = vsub.f32 %v1874, %v1962
          %v1988 = vsub.f32 %v1875, %v1967
          %v1989 = vsub.f32 %v1876, %v1972
          %v1990 = vsub.f32 %v1877, %v1977
          %v1991 = vsub.f32 %v1878, %v1982
          %v1992 = vmul.f32 %v1984, 1.442695
          %v1993 = vpow.pop %v1992
          %v1994 = vmul.f32 %v1985, 1.442695
          %v1995 = vpow.pop %v1994
          %v1996 = vmul.f32 %v1986, 1.442695
          %v1997 = vpow.pop %v1996
          %v1998 = vmul.f32 %v1987, 1.442695
          %v1999 = vpow.pop %v1998
          %v2000 = vmul.f32 %v1988, 1.442695
          %v2001 = vpow.pop %v2000
          %v2002 = vmul.f32 %v1989, 1.442695
          %v2003 = vpow.pop %v2002
          %v2004 = vmul.f32 %v1990, 1.442695
          %v2005 = vpow.pop %v2004
          %v2006 = vmul.f32 %v1991, 1.442695
          %v2007 = vpow.pop %v2006
          %v2008 = vld [vmem:[#allocation3] sm:$0xff]
          %v2009 = vld [vmem:[#allocation3 + $0x8] sm:$0xff]
          %v2010 = vld [vmem:[#allocation3 + $0x10] sm:$0xff]
          %v2011 = vld [vmem:[#allocation3 + $0x18] sm:$0xff]
          %v2012 = vld [vmem:[#allocation3 + $0x20] sm:$0xff]
          %v2013 = vld [vmem:[#allocation3 + $0x28] sm:$0xff]
          %v2014 = vld [vmem:[#allocation3 + $0x30] sm:$0xff]
          %v2015 = vld [vmem:[#allocation3 + $0x38] sm:$0xff]
          %v2016 = vmul.f32 %v1929, %v2008
          %v2017 = vmul.f32 %v1931, %v2009
          %v2018 = vmul.f32 %v1933, %v2010
          %v2019 = vmul.f32 %v1935, %v2011
          %v2020 = vmul.f32 %v1937, %v2012
          %v2021 = vmul.f32 %v1939, %v2013
          %v2022 = vmul.f32 %v1941, %v2014
          %v2023 = vmul.f32 %v1943, %v2015
          %v2024 = vsel %vm1887, %v1993, 0.0
          %2025 = vadd.xlane.f32.xlu0 %v2024
          %v2026 = vpop.xlane.xlu0 %2025
          %v2027 = vsel %vm1887, %v1995, 0.0
          %2028 = vadd.xlane.f32.xlu0 %v2027
          %v2029 = vpop.xlane.xlu0 %2028
          %v2030 = vsel %vm1887, %v1997, 0.0
          %2031 = vadd.xlane.f32.xlu0 %v2030
          %v2032 = vpop.xlane.xlu0 %2031
          %v2033 = vsel %vm1887, %v1999, 0.0
          %2034 = vadd.xlane.f32.xlu0 %v2033
          %v2035 = vpop.xlane.xlu0 %2034
          %v2036 = vsel %vm1887, %v2001, 0.0
          %2037 = vadd.xlane.f32.xlu0 %v2036
          %v2038 = vpop.xlane.xlu0 %2037
          %v2039 = vsel %vm1887, %v2003, 0.0
          %2040 = vadd.xlane.f32.xlu0 %v2039
          %v2041 = vpop.xlane.xlu0 %2040
          %v2042 = vsel %vm1887, %v2005, 0.0
          %2043 = vadd.xlane.f32.xlu0 %v2042
          %v2044 = vpop.xlane.xlu0 %2043
          %v2045 = vsel %vm1887, %v2007, 0.0
          %2046 = vadd.xlane.f32.xlu0 %v2045
          %v2047 = vpop.xlane.xlu0 %2046
          %v2048 = vadd.f32 %v2016, %v2026
          %v2049 = vadd.f32 %v2017, %v2029
          %v2050 = vadd.f32 %v2018, %v2032
          %v2051 = vadd.f32 %v2019, %v2035
          %v2052 = vadd.f32 %v2020, %v2038
          %v2053 = vadd.f32 %v2021, %v2041
          %v2054 = vadd.f32 %v2022, %v2044
          %v2055 = vadd.f32 %v2023, %v2047
          %2056 = vst.msk [vmem:[#allocation3] sm:$0xff] %vm1678, %v2048
          %2057 = vst.msk [vmem:[#allocation3 + $0x8] sm:$0xff] %vm1678, %v2049
          %2058 = vst.msk [vmem:[#allocation3 + $0x10] sm:$0xff] %vm1678, %v2050
          %2059 = vst.msk [vmem:[#allocation3 + $0x18] sm:$0xff] %vm1678, %v2051
          %2060 = vst.msk [vmem:[#allocation3 + $0x20] sm:$0xff] %vm1678, %v2052
          %2061 = vst.msk [vmem:[#allocation3 + $0x28] sm:$0xff] %vm1678, %v2053
          %2062 = vst.msk [vmem:[#allocation3 + $0x30] sm:$0xff] %vm1678, %v2054
          %2063 = vst.msk [vmem:[#allocation3 + $0x38] sm:$0xff] %vm1678, %v2055
          %v2064 = vld [vmem:[#allocation4] sm:$0xff]
          %v2065 = vld [vmem:[#allocation4 + $0x8] sm:$0xff]
          %v2066 = vld [vmem:[#allocation4 + $0x10] sm:$0xff]
          %v2067 = vld [vmem:[#allocation4 + $0x18] sm:$0xff]
          %v2068 = vld [vmem:[#allocation4 + $0x20] sm:$0xff]
          %v2069 = vld [vmem:[#allocation4 + $0x28] sm:$0xff]
          %v2070 = vld [vmem:[#allocation4 + $0x30] sm:$0xff]
          %v2071 = vld [vmem:[#allocation4 + $0x38] sm:$0xff]
          %2073 = vset.pattern.permute.xlu0 0
          %2074 = vperm.xlu0 %2073, %v1929
          %v2075 = vpop.permute.xlu0 %2074
          %2078 = vset.pattern.permute.xlu0 0
          %2079 = vperm.xlu0 %2078, %v1931
          %v2080 = vpop.permute.xlu0 %2079
          %2083 = vset.pattern.permute.xlu0 0
          %2084 = vperm.xlu0 %2083, %v1933
          %v2085 = vpop.permute.xlu0 %2084
          %2088 = vset.pattern.permute.xlu0 0
          %2089 = vperm.xlu0 %2088, %v1935
          %v2090 = vpop.permute.xlu0 %2089
          %2093 = vset.pattern.permute.xlu0 0
          %2094 = vperm.xlu0 %2093, %v1937
          %v2095 = vpop.permute.xlu0 %2094
          %2098 = vset.pattern.permute.xlu0 0
          %2099 = vperm.xlu0 %2098, %v1939
          %v2100 = vpop.permute.xlu0 %2099
          %2103 = vset.pattern.permute.xlu0 0
          %2104 = vperm.xlu0 %2103, %v1941
          %v2105 = vpop.permute.xlu0 %2104
          %2108 = vset.pattern.permute.xlu0 0
          %2109 = vperm.xlu0 %2108, %v1943
          %v2110 = vpop.permute.xlu0 %2109
          %v2112 = vmul.f32 %v2075, %v2064
          %v2113 = vmul.f32 %v2080, %v2065
          %v2114 = vmul.f32 %v2085, %v2066
          %v2115 = vmul.f32 %v2090, %v2067
          %v2116 = vmul.f32 %v2095, %v2068
          %v2117 = vmul.f32 %v2100, %v2069
          %v2118 = vmul.f32 %v2105, %v2070
          %v2119 = vmul.f32 %v2110, %v2071
          %v2121 = vsel %vm1887, %v1993, 0
          %v2124 = vsel %vm1887, %v1995, 0
          %2126 = vmatpush.msra.mxu0 0.0
          %2127 = vmatpush.msra.mxu0 0.0
          %2128 = vmatpush.msra.mxu0 0.0
          %2129 = vmatpush.msra.mxu0 0.0
          %2130 = vmatpush.msra.mxu0 0.0
          %2131 = vmatpush.msra.mxu0 0.0
          %2132 = vmatpush.msra.mxu0 0.0
          %2133 = vmatpush.msra.mxu0 0.0
          %2134 = vmatpush.msra.mxu0 0.0
          %2135 = vmatpush.msra.mxu0 0.0
          %2136 = vmatpush.msra.mxu0 0.0
          %2137 = vmatpush.msra.mxu0 0.0
          %2138 = vmatpush.msra.mxu0 0.0
          %2139 = vmatpush.msra.mxu0 0.0
          %2140 = vmatpush.msra.mxu0 %v1563
          %2141 = vmatpush.msra.mxu0 %v1509
          %2142 = vmatmul.f32.gmra.mxu0 %v2121
          %v2143 = vpop.f32.mrf.mxu0
          %v2144 = vadd.f32 0.0, %v2143
          %2145 = vmatmul.f32.gmra.mxu0 %v2124
          %v2146 = vpop.f32.mrf.mxu0
          %v2147 = vadd.f32 0.0, %v2146
          %2148 = vdwg.mxu0
          %v2150 = vsel %vm1887, %v1997, 0
          %v2153 = vsel %vm1887, %v1999, 0
          %2155 = vmatpush.msra.mxu0 0.0
          %2156 = vmatpush.msra.mxu0 0.0
          %2157 = vmatpush.msra.mxu0 0.0
          %2158 = vmatpush.msra.mxu0 0.0
          %2159 = vmatpush.msra.mxu0 0.0
          %2160 = vmatpush.msra.mxu0 0.0
          %2161 = vmatpush.msra.mxu0 0.0
          %2162 = vmatpush.msra.mxu0 0.0
          %2163 = vmatpush.msra.mxu0 0.0
          %2164 = vmatpush.msra.mxu0 0.0
          %2165 = vmatpush.msra.mxu0 0.0
          %2166 = vmatpush.msra.mxu0 0.0
          %2167 = vmatpush.msra.mxu0 0.0
          %2168 = vmatpush.msra.mxu0 0.0
          %2169 = vmatpush.msra.mxu0 %v1565
          %2170 = vmatpush.msra.mxu0 %v1511
          %2171 = vmatmul.f32.gmra.mxu0 %v2150
          %v2172 = vpop.f32.mrf.mxu0
          %v2173 = vadd.f32 0.0, %v2172
          %2174 = vmatmul.f32.gmra.mxu0 %v2153
          %v2175 = vpop.f32.mrf.mxu0
          %v2176 = vadd.f32 0.0, %v2175
          %2177 = vdwg.mxu0
          %v2179 = vsel %vm1887, %v2001, 0
          %v2182 = vsel %vm1887, %v2003, 0
          %2184 = vmatpush.msra.mxu0 0.0
          %2185 = vmatpush.msra.mxu0 0.0
          %2186 = vmatpush.msra.mxu0 0.0
          %2187 = vmatpush.msra.mxu0 0.0
          %2188 = vmatpush.msra.mxu0 0.0
          %2189 = vmatpush.msra.mxu0 0.0
          %2190 = vmatpush.msra.mxu0 0.0
          %2191 = vmatpush.msra.mxu0 0.0
          %2192 = vmatpush.msra.mxu0 0.0
          %2193 = vmatpush.msra.mxu0 0.0
          %2194 = vmatpush.msra.mxu0 0.0
          %2195 = vmatpush.msra.mxu0 0.0
          %2196 = vmatpush.msra.mxu0 0.0
          %2197 = vmatpush.msra.mxu0 0.0
          %2198 = vmatpush.msra.mxu0 %v1567
          %2199 = vmatpush.msra.mxu0 %v1513
          %2200 = vmatmul.f32.gmra.mxu0 %v2179
          %v2201 = vpop.f32.mrf.mxu0
          %v2202 = vadd.f32 0.0, %v2201
          %2203 = vmatmul.f32.gmra.mxu0 %v2182
          %v2204 = vpop.f32.mrf.mxu0
          %v2205 = vadd.f32 0.0, %v2204
          %2206 = vdwg.mxu0
          %v2208 = vsel %vm1887, %v2005, 0
          %v2211 = vsel %vm1887, %v2007, 0
          %2213 = vmatpush.msra.mxu0 0.0
          %2214 = vmatpush.msra.mxu0 0.0
          %2215 = vmatpush.msra.mxu0 0.0
          %2216 = vmatpush.msra.mxu0 0.0
          %2217 = vmatpush.msra.mxu0 0.0
          %2218 = vmatpush.msra.mxu0 0.0
          %2219 = vmatpush.msra.mxu0 0.0
          %2220 = vmatpush.msra.mxu0 0.0
          %2221 = vmatpush.msra.mxu0 0.0
          %2222 = vmatpush.msra.mxu0 0.0
          %2223 = vmatpush.msra.mxu0 0.0
          %2224 = vmatpush.msra.mxu0 0.0
          %2225 = vmatpush.msra.mxu0 0.0
          %2226 = vmatpush.msra.mxu0 0.0
          %2227 = vmatpush.msra.mxu0 %v1569
          %2228 = vmatpush.msra.mxu0 %v1515
          %2229 = vmatmul.f32.gmra.mxu0 %v2208
          %v2230 = vpop.f32.mrf.mxu0
          %v2231 = vadd.f32 0.0, %v2230
          %2232 = vmatmul.f32.gmra.mxu0 %v2211
          %v2233 = vpop.f32.mrf.mxu0
          %v2234 = vadd.f32 0.0, %v2233
          %2235 = vdwg.mxu0
          %v2236 = vadd.f32 %v2112, %v2144
          %v2237 = vadd.f32 %v2113, %v2147
          %v2238 = vadd.f32 %v2114, %v2173
          %v2239 = vadd.f32 %v2115, %v2176
          %v2240 = vadd.f32 %v2116, %v2202
          %v2241 = vadd.f32 %v2117, %v2205
          %v2242 = vadd.f32 %v2118, %v2231
          %v2243 = vadd.f32 %v2119, %v2234
          %2244 = vst.msk [vmem:[#allocation4] sm:$0xff] %vm1695, %v2236
          %2245 = vst.msk [vmem:[#allocation4 + $0x8] sm:$0xff] %vm1695, %v2237
          %2246 = vst.msk [vmem:[#allocation4 + $0x10] sm:$0xff] %vm1695, %v2238
          %2247 = vst.msk [vmem:[#allocation4 + $0x18] sm:$0xff] %vm1695, %v2239
          %2248 = vst.msk [vmem:[#allocation4 + $0x20] sm:$0xff] %vm1695, %v2240
          %2249 = vst.msk [vmem:[#allocation4 + $0x28] sm:$0xff] %vm1695, %v2241
          %2250 = vst.msk [vmem:[#allocation4 + $0x30] sm:$0xff] %vm1695, %v2242
          %2251 = vst.msk [vmem:[#allocation4 + $0x38] sm:$0xff] %vm1695, %v2243
          %2252 = vst.msk [vmem:[#allocation2] sm:$0xff] %vm1678, %v1912
          %2253 = vst.msk [vmem:[#allocation2 + $0x8] sm:$0xff] %vm1678, %v1913
          %2254 = vst.msk [vmem:[#allocation2 + $0x10] sm:$0xff] %vm1678, %v1914
          %2255 = vst.msk [vmem:[#allocation2 + $0x18] sm:$0xff] %vm1678, %v1915
          %2256 = vst.msk [vmem:[#allocation2 + $0x20] sm:$0xff] %vm1678, %v1916
          %2257 = vst.msk [vmem:[#allocation2 + $0x28] sm:$0xff] %vm1678, %v1917
          %2258 = vst.msk [vmem:[#allocation2 + $0x30] sm:$0xff] %vm1678, %v1918
          %2259 = vst.msk [vmem:[#allocation2 + $0x38] sm:$0xff] %vm1678, %v1919
        $region68: #{tpu_custom_call.1} parent=43 // pred_fallthru
          _
        %p2260 = scmp.gt.s32.totalorder %s1710, 16
        // Predicated region
        $region69: #{tpu_custom_call.1} parent=43 // pred_check
          %p2261 = pneg %p2260
        $region70: #{tpu_custom_call.1} parent=43 // pred_check_branch
          %2263 = sbr.rel (%p2261) target = $region72
        $region71: #{tpu_custom_call.1} parent=43 // pred_region
          %v2265 = vsel %vm1695, %v649, 0
          %v2268 = vsel %vm1695, %v703, 0
          %v2271 = vsel %vm1695, %v1129, 0
          %v2274 = vsel %vm1695, %v1183, 0
          %2276 = vmatpush.xpose.msra.mxu0 0.0
          %2277 = vmatpush.xpose.msra.mxu0 0.0
          %2278 = vmatpush.xpose.msra.mxu0 0.0
          %2279 = vmatpush.xpose.msra.mxu0 0.0
          %2280 = vmatpush.xpose.msra.mxu0 0.0
          %2281 = vmatpush.xpose.msra.mxu0 0.0
          %2282 = vmatpush.xpose.msra.mxu0 0.0
          %2283 = vmatpush.xpose.msra.mxu0 0.0
          %2284 = vmatpush.xpose.msra.mxu0 0.0
          %2285 = vmatpush.xpose.msra.mxu0 0.0
          %2286 = vmatpush.xpose.msra.mxu0 0.0
          %2287 = vmatpush.xpose.msra.mxu0 0.0
          %2288 = vmatpush.xpose.msra.mxu0 0.0
          %2289 = vmatpush.xpose.msra.mxu0 0.0
          %2290 = vmatpush.xpose.msra.mxu0 %v2274
          %2291 = vmatpush.xpose.msra.mxu0 %v2271
          %2292 = vmatmul.f32.gmra.mxu0 %v2265
          %v2293 = vpop.f32.mrf.mxu0
          %v2294 = vadd.f32 0.0, %v2293
          %2295 = vmatmul.f32.gmra.mxu0 %v2268
          %v2296 = vpop.f32.mrf.mxu0
          %v2297 = vadd.f32 0.0, %v2296
          %2298 = vdwg.mxu0
          %v2300 = vsel %vm1695, %v651, 0
          %v2303 = vsel %vm1695, %v705, 0
          %v2306 = vsel %vm1695, %v1131, 0
          %v2309 = vsel %vm1695, %v1185, 0
          %2311 = vmatpush.xpose.msra.mxu0 0.0
          %2312 = vmatpush.xpose.msra.mxu0 0.0
          %2313 = vmatpush.xpose.msra.mxu0 0.0
          %2314 = vmatpush.xpose.msra.mxu0 0.0
          %2315 = vmatpush.xpose.msra.mxu0 0.0
          %2316 = vmatpush.xpose.msra.mxu0 0.0
          %2317 = vmatpush.xpose.msra.mxu0 0.0
          %2318 = vmatpush.xpose.msra.mxu0 0.0
          %2319 = vmatpush.xpose.msra.mxu0 0.0
          %2320 = vmatpush.xpose.msra.mxu0 0.0
          %2321 = vmatpush.xpose.msra.mxu0 0.0
          %2322 = vmatpush.xpose.msra.mxu0 0.0
          %2323 = vmatpush.xpose.msra.mxu0 0.0
          %2324 = vmatpush.xpose.msra.mxu0 0.0
          %2325 = vmatpush.xpose.msra.mxu0 %v2309
          %2326 = vmatpush.xpose.msra.mxu0 %v2306
          %2327 = vmatmul.f32.gmra.mxu0 %v2300
          %v2328 = vpop.f32.mrf.mxu0
          %v2329 = vadd.f32 0.0, %v2328
          %2330 = vmatmul.f32.gmra.mxu0 %v2303
          %v2331 = vpop.f32.mrf.mxu0
          %v2332 = vadd.f32 0.0, %v2331
          %2333 = vdwg.mxu0
          %v2335 = vsel %vm1695, %v653, 0
          %v2338 = vsel %vm1695, %v707, 0
          %v2341 = vsel %vm1695, %v1133, 0
          %v2344 = vsel %vm1695, %v1187, 0
          %2346 = vmatpush.xpose.msra.mxu0 0.0
          %2347 = vmatpush.xpose.msra.mxu0 0.0
          %2348 = vmatpush.xpose.msra.mxu0 0.0
          %2349 = vmatpush.xpose.msra.mxu0 0.0
          %2350 = vmatpush.xpose.msra.mxu0 0.0
          %2351 = vmatpush.xpose.msra.mxu0 0.0
          %2352 = vmatpush.xpose.msra.mxu0 0.0
          %2353 = vmatpush.xpose.msra.mxu0 0.0
          %2354 = vmatpush.xpose.msra.mxu0 0.0
          %2355 = vmatpush.xpose.msra.mxu0 0.0
          %2356 = vmatpush.xpose.msra.mxu0 0.0
          %2357 = vmatpush.xpose.msra.mxu0 0.0
          %2358 = vmatpush.xpose.msra.mxu0 0.0
          %2359 = vmatpush.xpose.msra.mxu0 0.0
          %2360 = vmatpush.xpose.msra.mxu0 %v2344
          %2361 = vmatpush.xpose.msra.mxu0 %v2341
          %2362 = vmatmul.f32.gmra.mxu0 %v2335
          %v2363 = vpop.f32.mrf.mxu0
          %v2364 = vadd.f32 0.0, %v2363
          %2365 = vmatmul.f32.gmra.mxu0 %v2338
          %v2366 = vpop.f32.mrf.mxu0
          %v2367 = vadd.f32 0.0, %v2366
          %2368 = vdwg.mxu0
          %v2370 = vsel %vm1695, %v655, 0
          %v2373 = vsel %vm1695, %v709, 0
          %v2376 = vsel %vm1695, %v1135, 0
          %v2379 = vsel %vm1695, %v1189, 0
          %2381 = vmatpush.xpose.msra.mxu0 0.0
          %2382 = vmatpush.xpose.msra.mxu0 0.0
          %2383 = vmatpush.xpose.msra.mxu0 0.0
          %2384 = vmatpush.xpose.msra.mxu0 0.0
          %2385 = vmatpush.xpose.msra.mxu0 0.0
          %2386 = vmatpush.xpose.msra.mxu0 0.0
          %2387 = vmatpush.xpose.msra.mxu0 0.0
          %2388 = vmatpush.xpose.msra.mxu0 0.0
          %2389 = vmatpush.xpose.msra.mxu0 0.0
          %2390 = vmatpush.xpose.msra.mxu0 0.0
          %2391 = vmatpush.xpose.msra.mxu0 0.0
          %2392 = vmatpush.xpose.msra.mxu0 0.0
          %2393 = vmatpush.xpose.msra.mxu0 0.0
          %2394 = vmatpush.xpose.msra.mxu0 0.0
          %2395 = vmatpush.xpose.msra.mxu0 %v2379
          %2396 = vmatpush.xpose.msra.mxu0 %v2376
          %2397 = vmatmul.f32.gmra.mxu0 %v2370
          %v2398 = vpop.f32.mrf.mxu0
          %v2399 = vadd.f32 0.0, %v2398
          %2400 = vmatmul.f32.gmra.mxu0 %v2373
          %v2401 = vpop.f32.mrf.mxu0
          %v2402 = vadd.f32 0.0, %v2401
          %2403 = vdwg.mxu0
          %v2404 = vmul.f32 %v2294, 0.35355338
          %v2405 = vmul.f32 %v2297, 0.35355338
          %v2406 = vmul.f32 %v2329, 0.35355338
          %v2407 = vmul.f32 %v2332, 0.35355338
          %v2408 = vmul.f32 %v2364, 0.35355338
          %v2409 = vmul.f32 %v2367, 0.35355338
          %v2410 = vmul.f32 %v2399, 0.35355338
          %v2411 = vmul.f32 %v2402, 0.35355338
          %v2412 = vlaneseq
          %v2413 = vand.u32 %v2412, 127
          %v2414 = vadd.s32 %v2413, 16
          %vm2415 = vcmp.le.s32.totalorder %v2414, %v1708
          %vm2416 = vcmp.le.s32.totalorder %v2414, %v1709
          %v2417 = vsel %vm2415, 1, 0
          %v2418 = vsel %vm2416, 1, 0
          %vm2419 = vcmp.eq.s32.totalorder %v2417, 1
          %vm2420 = vcmp.eq.s32.totalorder %v2418, 1
          %v2421 = vsel %vm2419, %v2404, -1e+30
          %v2422 = vsel %vm2420, %v2405, -1e+30
          %v2423 = vsel %vm2419, %v2406, -1e+30
          %v2424 = vsel %vm2420, %v2407, -1e+30
          %v2425 = vsel %vm2419, %v2408, -1e+30
          %v2426 = vsel %vm2420, %v2409, -1e+30
          %v2427 = vsel %vm2419, %v2410, -1e+30
          %v2428 = vsel %vm2420, %v2411, -1e+30
          %v2429 = vld [vmem:[#allocation2] sm:$0xff]
          %v2430 = vld [vmem:[#allocation2 + $0x8] sm:$0xff]
          %v2431 = vld [vmem:[#allocation2 + $0x10] sm:$0xff]
          %v2432 = vld [vmem:[#allocation2 + $0x18] sm:$0xff]
          %v2433 = vld [vmem:[#allocation2 + $0x20] sm:$0xff]
          %v2434 = vld [vmem:[#allocation2 + $0x28] sm:$0xff]
          %v2435 = vld [vmem:[#allocation2 + $0x30] sm:$0xff]
          %v2436 = vld [vmem:[#allocation2 + $0x38] sm:$0xff]
          %vm2437 = vcmask 130048
          %v2438 = vsel %vm2437, %v2421, -inf
          %2439 = vmax.xlane.f32.xlu0 %v2438
          %v2440 = vpop.xlane.xlu0 %2439
          %v2441 = vsel %vm2437, %v2422, -inf
          %2442 = vmax.xlane.f32.xlu0 %v2441
          %v2443 = vpop.xlane.xlu0 %2442
          %v2444 = vsel %vm2437, %v2423, -inf
          %2445 = vmax.xlane.f32.xlu0 %v2444
          %v2446 = vpop.xlane.xlu0 %2445
          %v2447 = vsel %vm2437, %v2424, -inf
          %2448 = vmax.xlane.f32.xlu0 %v2447
          %v2449 = vpop.xlane.xlu0 %2448
          %v2450 = vsel %vm2437, %v2425, -inf
          %2451 = vmax.xlane.f32.xlu0 %v2450
          %v2452 = vpop.xlane.xlu0 %2451
          %v2453 = vsel %vm2437, %v2426, -inf
          %2454 = vmax.xlane.f32.xlu0 %v2453
          %v2455 = vpop.xlane.xlu0 %2454
          %v2456 = vsel %vm2437, %v2427, -inf
          %2457 = vmax.xlane.f32.xlu0 %v2456
          %v2458 = vpop.xlane.xlu0 %2457
          %v2459 = vsel %vm2437, %v2428, -inf
          %2460 = vmax.xlane.f32.xlu0 %v2459
          %v2461 = vpop.xlane.xlu0 %2460
          %v2462 = vmax.f32 %v2429, %v2440
          %v2463 = vmax.f32 %v2430, %v2443
          %v2464 = vmax.f32 %v2431, %v2446
          %v2465 = vmax.f32 %v2432, %v2449
          %v2466 = vmax.f32 %v2433, %v2452
          %v2467 = vmax.f32 %v2434, %v2455
          %v2468 = vmax.f32 %v2435, %v2458
          %v2469 = vmax.f32 %v2436, %v2461
          %v2470 = vsub.f32 %v2429, %v2462
          %v2471 = vsub.f32 %v2430, %v2463
          %v2472 = vsub.f32 %v2431, %v2464
          %v2473 = vsub.f32 %v2432, %v2465
          %v2474 = vsub.f32 %v2433, %v2466
          %v2475 = vsub.f32 %v2434, %v2467
          %v2476 = vsub.f32 %v2435, %v2468
          %v2477 = vsub.f32 %v2436, %v2469
          %v2478 = vmul.f32 %v2470, 1.442695
          %v2479 = vpow.pop %v2478
          %v2480 = vmul.f32 %v2471, 1.442695
          %v2481 = vpow.pop %v2480
          %v2482 = vmul.f32 %v2472, 1.442695
          %v2483 = vpow.pop %v2482
          %v2484 = vmul.f32 %v2473, 1.442695
          %v2485 = vpow.pop %v2484
          %v2486 = vmul.f32 %v2474, 1.442695
          %v2487 = vpow.pop %v2486
          %v2488 = vmul.f32 %v2475, 1.442695
          %v2489 = vpow.pop %v2488
          %v2490 = vmul.f32 %v2476, 1.442695
          %v2491 = vpow.pop %v2490
          %v2492 = vmul.f32 %v2477, 1.442695
          %v2493 = vpow.pop %v2492
          %2495 = vset.pattern.permute.xlu0 0
          %2496 = vperm.xlu0 %2495, %v2462
          %v2497 = vpop.permute.xlu0 %2496
          %2500 = vset.pattern.permute.xlu0 0
          %2501 = vperm.xlu0 %2500, %v2463
          %v2502 = vpop.permute.xlu0 %2501
          %2505 = vset.pattern.permute.xlu0 0
          %2506 = vperm.xlu0 %2505, %v2464
          %v2507 = vpop.permute.xlu0 %2506
          %2510 = vset.pattern.permute.xlu0 0
          %2511 = vperm.xlu0 %2510, %v2465
          %v2512 = vpop.permute.xlu0 %2511
          %2515 = vset.pattern.permute.xlu0 0
          %2516 = vperm.xlu0 %2515, %v2466
          %v2517 = vpop.permute.xlu0 %2516
          %2520 = vset.pattern.permute.xlu0 0
          %2521 = vperm.xlu0 %2520, %v2467
          %v2522 = vpop.permute.xlu0 %2521
          %2525 = vset.pattern.permute.xlu0 0
          %2526 = vperm.xlu0 %2525, %v2468
          %v2527 = vpop.permute.xlu0 %2526
          %2530 = vset.pattern.permute.xlu0 0
          %2531 = vperm.xlu0 %2530, %v2469
          %v2532 = vpop.permute.xlu0 %2531
          %v2534 = vsub.f32 %v2421, %v2497
          %v2535 = vsub.f32 %v2422, %v2502
          %v2536 = vsub.f32 %v2423, %v2507
          %v2537 = vsub.f32 %v2424, %v2512
          %v2538 = vsub.f32 %v2425, %v2517
          %v2539 = vsub.f32 %v2426, %v2522
          %v2540 = vsub.f32 %v2427, %v2527
          %v2541 = vsub.f32 %v2428, %v2532
          %v2542 = vmul.f32 %v2534, 1.442695
          %v2543 = vpow.pop %v2542
          %v2544 = vmul.f32 %v2535, 1.442695
          %v2545 = vpow.pop %v2544
          %v2546 = vmul.f32 %v2536, 1.442695
          %v2547 = vpow.pop %v2546
          %v2548 = vmul.f32 %v2537, 1.442695
          %v2549 = vpow.pop %v2548
          %v2550 = vmul.f32 %v2538, 1.442695
          %v2551 = vpow.pop %v2550
          %v2552 = vmul.f32 %v2539, 1.442695
          %v2553 = vpow.pop %v2552
          %v2554 = vmul.f32 %v2540, 1.442695
          %v2555 = vpow.pop %v2554
          %v2556 = vmul.f32 %v2541, 1.442695
          %v2557 = vpow.pop %v2556
          %v2558 = vld [vmem:[#allocation3] sm:$0xff]
          %v2559 = vld [vmem:[#allocation3 + $0x8] sm:$0xff]
          %v2560 = vld [vmem:[#allocation3 + $0x10] sm:$0xff]
          %v2561 = vld [vmem:[#allocation3 + $0x18] sm:$0xff]
          %v2562 = vld [vmem:[#allocation3 + $0x20] sm:$0xff]
          %v2563 = vld [vmem:[#allocation3 + $0x28] sm:$0xff]
          %v2564 = vld [vmem:[#allocation3 + $0x30] sm:$0xff]
          %v2565 = vld [vmem:[#allocation3 + $0x38] sm:$0xff]
          %v2566 = vmul.f32 %v2479, %v2558
          %v2567 = vmul.f32 %v2481, %v2559
          %v2568 = vmul.f32 %v2483, %v2560
          %v2569 = vmul.f32 %v2485, %v2561
          %v2570 = vmul.f32 %v2487, %v2562
          %v2571 = vmul.f32 %v2489, %v2563
          %v2572 = vmul.f32 %v2491, %v2564
          %v2573 = vmul.f32 %v2493, %v2565
          %v2574 = vsel %vm2437, %v2543, 0.0
          %2575 = vadd.xlane.f32.xlu0 %v2574
          %v2576 = vpop.xlane.xlu0 %2575
          %v2577 = vsel %vm2437, %v2545, 0.0
          %2578 = vadd.xlane.f32.xlu0 %v2577
          %v2579 = vpop.xlane.xlu0 %2578
          %v2580 = vsel %vm2437, %v2547, 0.0
          %2581 = vadd.xlane.f32.xlu0 %v2580
          %v2582 = vpop.xlane.xlu0 %2581
          %v2583 = vsel %vm2437, %v2549, 0.0
          %2584 = vadd.xlane.f32.xlu0 %v2583
          %v2585 = vpop.xlane.xlu0 %2584
          %v2586 = vsel %vm2437, %v2551, 0.0
          %2587 = vadd.xlane.f32.xlu0 %v2586
          %v2588 = vpop.xlane.xlu0 %2587
          %v2589 = vsel %vm2437, %v2553, 0.0
          %2590 = vadd.xlane.f32.xlu0 %v2589
          %v2591 = vpop.xlane.xlu0 %2590
          %v2592 = vsel %vm2437, %v2555, 0.0
          %2593 = vadd.xlane.f32.xlu0 %v2592
          %v2594 = vpop.xlane.xlu0 %2593
          %v2595 = vsel %vm2437, %v2557, 0.0
          %2596 = vadd.xlane.f32.xlu0 %v2595
          %v2597 = vpop.xlane.xlu0 %2596
          %v2598 = vadd.f32 %v2566, %v2576
          %v2599 = vadd.f32 %v2567, %v2579
          %v2600 = vadd.f32 %v2568, %v2582
          %v2601 = vadd.f32 %v2569, %v2585
          %v2602 = vadd.f32 %v2570, %v2588
          %v2603 = vadd.f32 %v2571, %v2591
          %v2604 = vadd.f32 %v2572, %v2594
          %v2605 = vadd.f32 %v2573, %v2597
          %2606 = vst.msk [vmem:[#allocation3] sm:$0xff] %vm1678, %v2598
          %2607 = vst.msk [vmem:[#allocation3 + $0x8] sm:$0xff] %vm1678, %v2599
          %2608 = vst.msk [vmem:[#allocation3 + $0x10] sm:$0xff] %vm1678, %v2600
          %2609 = vst.msk [vmem:[#allocation3 + $0x18] sm:$0xff] %vm1678, %v2601
          %2610 = vst.msk [vmem:[#allocation3 + $0x20] sm:$0xff] %vm1678, %v2602
          %2611 = vst.msk [vmem:[#allocation3 + $0x28] sm:$0xff] %vm1678, %v2603
          %2612 = vst.msk [vmem:[#allocation3 + $0x30] sm:$0xff] %vm1678, %v2604
          %2613 = vst.msk [vmem:[#allocation3 + $0x38] sm:$0xff] %vm1678, %v2605
          %v2614 = vld [vmem:[#allocation4] sm:$0xff]
          %v2615 = vld [vmem:[#allocation4 + $0x8] sm:$0xff]
          %v2616 = vld [vmem:[#allocation4 + $0x10] sm:$0xff]
          %v2617 = vld [vmem:[#allocation4 + $0x18] sm:$0xff]
          %v2618 = vld [vmem:[#allocation4 + $0x20] sm:$0xff]
          %v2619 = vld [vmem:[#allocation4 + $0x28] sm:$0xff]
          %v2620 = vld [vmem:[#allocation4 + $0x30] sm:$0xff]
          %v2621 = vld [vmem:[#allocation4 + $0x38] sm:$0xff]
          %2623 = vset.pattern.permute.xlu0 0
          %2624 = vperm.xlu0 %2623, %v2479
          %v2625 = vpop.permute.xlu0 %2624
          %2628 = vset.pattern.permute.xlu0 0
          %2629 = vperm.xlu0 %2628, %v2481
          %v2630 = vpop.permute.xlu0 %2629
          %2633 = vset.pattern.permute.xlu0 0
          %2634 = vperm.xlu0 %2633, %v2483
          %v2635 = vpop.permute.xlu0 %2634
          %2638 = vset.pattern.permute.xlu0 0
          %2639 = vperm.xlu0 %2638, %v2485
          %v2640 = vpop.permute.xlu0 %2639
          %2643 = vset.pattern.permute.xlu0 0
          %2644 = vperm.xlu0 %2643, %v2487
          %v2645 = vpop.permute.xlu0 %2644
          %2648 = vset.pattern.permute.xlu0 0
          %2649 = vperm.xlu0 %2648, %v2489
          %v2650 = vpop.permute.xlu0 %2649
          %2653 = vset.pattern.permute.xlu0 0
          %2654 = vperm.xlu0 %2653, %v2491
          %v2655 = vpop.permute.xlu0 %2654
          %2658 = vset.pattern.permute.xlu0 0
          %2659 = vperm.xlu0 %2658, %v2493
          %v2660 = vpop.permute.xlu0 %2659
          %v2662 = vmul.f32 %v2625, %v2614
          %v2663 = vmul.f32 %v2630, %v2615
          %v2664 = vmul.f32 %v2635, %v2616
          %v2665 = vmul.f32 %v2640, %v2617
          %v2666 = vmul.f32 %v2645, %v2618
          %v2667 = vmul.f32 %v2650, %v2619
          %v2668 = vmul.f32 %v2655, %v2620
          %v2669 = vmul.f32 %v2660, %v2621
          %v2671 = vsel %vm2437, %v2543, 0
          %v2674 = vsel %vm2437, %v2545, 0
          %2676 = vmatpush.msra.mxu0 0.0
          %2677 = vmatpush.msra.mxu0 0.0
          %2678 = vmatpush.msra.mxu0 0.0
          %2679 = vmatpush.msra.mxu0 0.0
          %2680 = vmatpush.msra.mxu0 0.0
          %2681 = vmatpush.msra.mxu0 0.0
          %2682 = vmatpush.msra.mxu0 0.0
          %2683 = vmatpush.msra.mxu0 0.0
          %2684 = vmatpush.msra.mxu0 0.0
          %2685 = vmatpush.msra.mxu0 0.0
          %2686 = vmatpush.msra.mxu0 0.0
          %2687 = vmatpush.msra.mxu0 0.0
          %2688 = vmatpush.msra.mxu0 0.0
          %2689 = vmatpush.msra.mxu0 0.0
          %2690 = vmatpush.msra.mxu0 %v1671
          %2691 = vmatpush.msra.mxu0 %v1617
          %2692 = vmatmul.f32.gmra.mxu0 %v2671
          %v2693 = vpop.f32.mrf.mxu0
          %v2694 = vadd.f32 0.0, %v2693
          %2695 = vmatmul.f32.gmra.mxu0 %v2674
          %v2696 = vpop.f32.mrf.mxu0
          %v2697 = vadd.f32 0.0, %v2696
          %2698 = vdwg.mxu0
          %v2700 = vsel %vm2437, %v2547, 0
          %v2703 = vsel %vm2437, %v2549, 0
          %2705 = vmatpush.msra.mxu0 0.0
          %2706 = vmatpush.msra.mxu0 0.0
          %2707 = vmatpush.msra.mxu0 0.0
          %2708 = vmatpush.msra.mxu0 0.0
          %2709 = vmatpush.msra.mxu0 0.0
          %2710 = vmatpush.msra.mxu0 0.0
          %2711 = vmatpush.msra.mxu0 0.0
          %2712 = vmatpush.msra.mxu0 0.0
          %2713 = vmatpush.msra.mxu0 0.0
          %2714 = vmatpush.msra.mxu0 0.0
          %2715 = vmatpush.msra.mxu0 0.0
          %2716 = vmatpush.msra.mxu0 0.0
          %2717 = vmatpush.msra.mxu0 0.0
          %2718 = vmatpush.msra.mxu0 0.0
          %2719 = vmatpush.msra.mxu0 %v1673
          %2720 = vmatpush.msra.mxu0 %v1619
          %2721 = vmatmul.f32.gmra.mxu0 %v2700
          %v2722 = vpop.f32.mrf.mxu0
          %v2723 = vadd.f32 0.0, %v2722
          %2724 = vmatmul.f32.gmra.mxu0 %v2703
          %v2725 = vpop.f32.mrf.mxu0
          %v2726 = vadd.f32 0.0, %v2725
          %2727 = vdwg.mxu0
          %v2729 = vsel %vm2437, %v2551, 0
          %v2732 = vsel %vm2437, %v2553, 0
          %2734 = vmatpush.msra.mxu0 0.0
          %2735 = vmatpush.msra.mxu0 0.0
          %2736 = vmatpush.msra.mxu0 0.0
          %2737 = vmatpush.msra.mxu0 0.0
          %2738 = vmatpush.msra.mxu0 0.0
          %2739 = vmatpush.msra.mxu0 0.0
          %2740 = vmatpush.msra.mxu0 0.0
          %2741 = vmatpush.msra.mxu0 0.0
          %2742 = vmatpush.msra.mxu0 0.0
          %2743 = vmatpush.msra.mxu0 0.0
          %2744 = vmatpush.msra.mxu0 0.0
          %2745 = vmatpush.msra.mxu0 0.0
          %2746 = vmatpush.msra.mxu0 0.0
          %2747 = vmatpush.msra.mxu0 0.0
          %2748 = vmatpush.msra.mxu0 %v1675
          %2749 = vmatpush.msra.mxu0 %v1621
          %2750 = vmatmul.f32.gmra.mxu0 %v2729
          %v2751 = vpop.f32.mrf.mxu0
          %v2752 = vadd.f32 0.0, %v2751
          %2753 = vmatmul.f32.gmra.mxu0 %v2732
          %v2754 = vpop.f32.mrf.mxu0
          %v2755 = vadd.f32 0.0, %v2754
          %2756 = vdwg.mxu0
          %v2758 = vsel %vm2437, %v2555, 0
          %v2761 = vsel %vm2437, %v2557, 0
          %2763 = vmatpush.msra.mxu0 0.0
          %2764 = vmatpush.msra.mxu0 0.0
          %2765 = vmatpush.msra.mxu0 0.0
          %2766 = vmatpush.msra.mxu0 0.0
          %2767 = vmatpush.msra.mxu0 0.0
          %2768 = vmatpush.msra.mxu0 0.0
          %2769 = vmatpush.msra.mxu0 0.0
          %2770 = vmatpush.msra.mxu0 0.0
          %2771 = vmatpush.msra.mxu0 0.0
          %2772 = vmatpush.msra.mxu0 0.0
          %2773 = vmatpush.msra.mxu0 0.0
          %2774 = vmatpush.msra.mxu0 0.0
          %2775 = vmatpush.msra.mxu0 0.0
          %2776 = vmatpush.msra.mxu0 0.0
          %2777 = vmatpush.msra.mxu0 %v1677
          %2778 = vmatpush.msra.mxu0 %v1623
          %2779 = vmatmul.f32.gmra.mxu0 %v2758
          %v2780 = vpop.f32.mrf.mxu0
          %v2781 = vadd.f32 0.0, %v2780
          %2782 = vmatmul.f32.gmra.mxu0 %v2761
          %v2783 = vpop.f32.mrf.mxu0
          %v2784 = vadd.f32 0.0, %v2783
          %2785 = vdwg.mxu0
          %v2786 = vadd.f32 %v2662, %v2694
          %v2787 = vadd.f32 %v2663, %v2697
          %v2788 = vadd.f32 %v2664, %v2723
          %v2789 = vadd.f32 %v2665, %v2726
          %v2790 = vadd.f32 %v2666, %v2752
          %v2791 = vadd.f32 %v2667, %v2755
          %v2792 = vadd.f32 %v2668, %v2781
          %v2793 = vadd.f32 %v2669, %v2784
          %2794 = vst.msk [vmem:[#allocation4] sm:$0xff] %vm1695, %v2786
          %2795 = vst.msk [vmem:[#allocation4 + $0x8] sm:$0xff] %vm1695, %v2787
          %2796 = vst.msk [vmem:[#allocation4 + $0x10] sm:$0xff] %vm1695, %v2788
          %2797 = vst.msk [vmem:[#allocation4 + $0x18] sm:$0xff] %vm1695, %v2789
          %2798 = vst.msk [vmem:[#allocation4 + $0x20] sm:$0xff] %vm1695, %v2790
          %2799 = vst.msk [vmem:[#allocation4 + $0x28] sm:$0xff] %vm1695, %v2791
          %2800 = vst.msk [vmem:[#allocation4 + $0x30] sm:$0xff] %vm1695, %v2792
          %2801 = vst.msk [vmem:[#allocation4 + $0x38] sm:$0xff] %vm1695, %v2793
          %2802 = vst.msk [vmem:[#allocation2] sm:$0xff] %vm1678, %v2462
          %2803 = vst.msk [vmem:[#allocation2 + $0x8] sm:$0xff] %vm1678, %v2463
          %2804 = vst.msk [vmem:[#allocation2 + $0x10] sm:$0xff] %vm1678, %v2464
          %2805 = vst.msk [vmem:[#allocation2 + $0x18] sm:$0xff] %vm1678, %v2465
          %2806 = vst.msk [vmem:[#allocation2 + $0x20] sm:$0xff] %vm1678, %v2466
          %2807 = vst.msk [vmem:[#allocation2 + $0x28] sm:$0xff] %vm1678, %v2467
          %2808 = vst.msk [vmem:[#allocation2 + $0x30] sm:$0xff] %vm1678, %v2468
          %2809 = vst.msk [vmem:[#allocation2 + $0x38] sm:$0xff] %vm1678, %v2469
        $region72: #{tpu_custom_call.1} parent=43 // pred_fallthru
          _
        %v2810 = vld [vmem:[#allocation4] sm:$0xff]
        %v2811 = vld [vmem:[#allocation4 + $0x8] sm:$0xff]
        %v2812 = vld [vmem:[#allocation4 + $0x10] sm:$0xff]
        %v2813 = vld [vmem:[#allocation4 + $0x18] sm:$0xff]
        %v2814 = vld [vmem:[#allocation4 + $0x20] sm:$0xff]
        %v2815 = vld [vmem:[#allocation4 + $0x28] sm:$0xff]
        %v2816 = vld [vmem:[#allocation4 + $0x30] sm:$0xff]
        %v2817 = vld [vmem:[#allocation4 + $0x38] sm:$0xff]
        %v2818 = vld [vmem:[#allocation3] sm:$0xff]
        %v2819 = vld [vmem:[#allocation3 + $0x8] sm:$0xff]
        %v2820 = vld [vmem:[#allocation3 + $0x10] sm:$0xff]
        %v2821 = vld [vmem:[#allocation3 + $0x18] sm:$0xff]
        %v2822 = vld [vmem:[#allocation3 + $0x20] sm:$0xff]
        %v2823 = vld [vmem:[#allocation3 + $0x28] sm:$0xff]
        %v2824 = vld [vmem:[#allocation3 + $0x30] sm:$0xff]
        %v2825 = vld [vmem:[#allocation3 + $0x38] sm:$0xff]
        %v2826 = vrcp.pop %v2818
        %v2827 = vmul.f32 %v2818, %v2826
        %v2828 = vsub.f32 1.0, %v2827
        %v2829 = vmul.f32 %v2826, %v2828
        %v2830 = vadd.f32 %v2826, %v2829
        %vm2831 = vweird.f32 %v2818
        %vm2832 = vweird.f32 %v2826
        %vm2833 = vmor %vm2831, %vm2832
        %v2834 = vsel %vm2833, %v2826, %v2830
        %v2835 = vand.u32 2147483647, %v2818
        %vm2836 = vcmp.eq.f32.partialorder %v2835, 8.507059e+37
        %v2837 = vand.u32 %v2818, 2147483648
        %v2838 = vor.u32 1.1754944e-38, %v2837
        %v2839 = vsel %vm2836, %v2838, %v2834
        %v2840 = vrcp.pop %v2819
        %v2841 = vmul.f32 %v2819, %v2840
        %v2842 = vsub.f32 1.0, %v2841
        %v2843 = vmul.f32 %v2840, %v2842
        %v2844 = vadd.f32 %v2840, %v2843
        %vm2845 = vweird.f32 %v2819
        %vm2846 = vweird.f32 %v2840
        %vm2847 = vmor %vm2845, %vm2846
        %v2848 = vsel %vm2847, %v2840, %v2844
        %v2849 = vand.u32 2147483647, %v2819
        %vm2850 = vcmp.eq.f32.partialorder %v2849, 8.507059e+37
        %v2851 = vand.u32 %v2819, 2147483648
        %v2852 = vor.u32 1.1754944e-38, %v2851
        %v2853 = vsel %vm2850, %v2852, %v2848
        %v2854 = vrcp.pop %v2820
        %v2855 = vmul.f32 %v2820, %v2854
        %v2856 = vsub.f32 1.0, %v2855
        %v2857 = vmul.f32 %v2854, %v2856
        %v2858 = vadd.f32 %v2854, %v2857
        %vm2859 = vweird.f32 %v2820
        %vm2860 = vweird.f32 %v2854
        %vm2861 = vmor %vm2859, %vm2860
        %v2862 = vsel %vm2861, %v2854, %v2858
        %v2863 = vand.u32 2147483647, %v2820
        %vm2864 = vcmp.eq.f32.partialorder %v2863, 8.507059e+37
        %v2865 = vand.u32 %v2820, 2147483648
        %v2866 = vor.u32 1.1754944e-38, %v2865
        %v2867 = vsel %vm2864, %v2866, %v2862
        %v2868 = vrcp.pop %v2821
        %v2869 = vmul.f32 %v2821, %v2868
        %v2870 = vsub.f32 1.0, %v2869
        %v2871 = vmul.f32 %v2868, %v2870
        %v2872 = vadd.f32 %v2868, %v2871
        %vm2873 = vweird.f32 %v2821
        %vm2874 = vweird.f32 %v2868
        %vm2875 = vmor %vm2873, %vm2874
        %v2876 = vsel %vm2875, %v2868, %v2872
        %v2877 = vand.u32 2147483647, %v2821
        %vm2878 = vcmp.eq.f32.partialorder %v2877, 8.507059e+37
        %v2879 = vand.u32 %v2821, 2147483648
        %v2880 = vor.u32 1.1754944e-38, %v2879
        %v2881 = vsel %vm2878, %v2880, %v2876
        %v2882 = vrcp.pop %v2822
        %v2883 = vmul.f32 %v2822, %v2882
        %v2884 = vsub.f32 1.0, %v2883
        %v2885 = vmul.f32 %v2882, %v2884
        %v2886 = vadd.f32 %v2882, %v2885
        %vm2887 = vweird.f32 %v2822
        %vm2888 = vweird.f32 %v2882
        %vm2889 = vmor %vm2887, %vm2888
        %v2890 = vsel %vm2889, %v2882, %v2886
        %v2891 = vand.u32 2147483647, %v2822
        %vm2892 = vcmp.eq.f32.partialorder %v2891, 8.507059e+37
        %v2893 = vand.u32 %v2822, 2147483648
        %v2894 = vor.u32 1.1754944e-38, %v2893
        %v2895 = vsel %vm2892, %v2894, %v2890
        %v2896 = vrcp.pop %v2823
        %v2897 = vmul.f32 %v2823, %v2896
        %v2898 = vsub.f32 1.0, %v2897
        %v2899 = vmul.f32 %v2896, %v2898
        %v2900 = vadd.f32 %v2896, %v2899
        %vm2901 = vweird.f32 %v2823
        %vm2902 = vweird.f32 %v2896
        %vm2903 = vmor %vm2901, %vm2902
        %v2904 = vsel %vm2903, %v2896, %v2900
        %v2905 = vand.u32 2147483647, %v2823
        %vm2906 = vcmp.eq.f32.partialorder %v2905, 8.507059e+37
        %v2907 = vand.u32 %v2823, 2147483648
        %v2908 = vor.u32 1.1754944e-38, %v2907
        %v2909 = vsel %vm2906, %v2908, %v2904
        %v2910 = vrcp.pop %v2824
        %v2911 = vmul.f32 %v2824, %v2910
        %v2912 = vsub.f32 1.0, %v2911
        %v2913 = vmul.f32 %v2910, %v2912
        %v2914 = vadd.f32 %v2910, %v2913
        %vm2915 = vweird.f32 %v2824
        %vm2916 = vweird.f32 %v2910
        %vm2917 = vmor %vm2915, %vm2916
        %v2918 = vsel %vm2917, %v2910, %v2914
        %v2919 = vand.u32 2147483647, %v2824
        %vm2920 = vcmp.eq.f32.partialorder %v2919, 8.507059e+37
        %v2921 = vand.u32 %v2824, 2147483648
        %v2922 = vor.u32 1.1754944e-38, %v2921
        %v2923 = vsel %vm2920, %v2922, %v2918
        %v2924 = vrcp.pop %v2825
        %v2925 = vmul.f32 %v2825, %v2924
        %v2926 = vsub.f32 1.0, %v2925
        %v2927 = vmul.f32 %v2924, %v2926
        %v2928 = vadd.f32 %v2924, %v2927
        %vm2929 = vweird.f32 %v2825
        %vm2930 = vweird.f32 %v2924
        %vm2931 = vmor %vm2929, %vm2930
        %v2932 = vsel %vm2931, %v2924, %v2928
        %v2933 = vand.u32 2147483647, %v2825
        %vm2934 = vcmp.eq.f32.partialorder %v2933, 8.507059e+37
        %v2935 = vand.u32 %v2825, 2147483648
        %v2936 = vor.u32 1.1754944e-38, %v2935
        %v2937 = vsel %vm2934, %v2936, %v2932
        %2939 = vset.pattern.permute.xlu0 0
        %2940 = vperm.xlu0 %2939, %v2839
        %v2941 = vpop.permute.xlu0 %2940
        %2944 = vset.pattern.permute.xlu0 0
        %2945 = vperm.xlu0 %2944, %v2853
        %v2946 = vpop.permute.xlu0 %2945
        %2949 = vset.pattern.permute.xlu0 0
        %2950 = vperm.xlu0 %2949, %v2867
        %v2951 = vpop.permute.xlu0 %2950
        %2954 = vset.pattern.permute.xlu0 0
        %2955 = vperm.xlu0 %2954, %v2881
        %v2956 = vpop.permute.xlu0 %2955
        %2959 = vset.pattern.permute.xlu0 0
        %2960 = vperm.xlu0 %2959, %v2895
        %v2961 = vpop.permute.xlu0 %2960
        %2964 = vset.pattern.permute.xlu0 0
        %2965 = vperm.xlu0 %2964, %v2909
        %v2966 = vpop.permute.xlu0 %2965
        %2969 = vset.pattern.permute.xlu0 0
        %2970 = vperm.xlu0 %2969, %v2923
        %v2971 = vpop.permute.xlu0 %2970
        %2974 = vset.pattern.permute.xlu0 0
        %2975 = vperm.xlu0 %2974, %v2937
        %v2976 = vpop.permute.xlu0 %2975
        %v2978 = vmul.f32 %v2810, %v2941
        %v2979 = vmul.f32 %v2811, %v2946
        %v2980 = vmul.f32 %v2812, %v2951
        %v2981 = vmul.f32 %v2813, %v2956
        %v2982 = vmul.f32 %v2814, %v2961
        %v2983 = vmul.f32 %v2815, %v2966
        %v2984 = vmul.f32 %v2816, %v2971
        %v2985 = vmul.f32 %v2817, %v2976
        %v2986 = vrot.slane %v2982, 4
        %v2987 = vsel %vm490, %v2986, %v2978
        %v2988 = vrot.slane %v2978, 4
        %v2989 = vsel %vm490, %v2982, %v2988
        %v2991 = vunpack.c.l.s4 1983009808
        %v2992 = vunpack.c.0.s8 %v2991
        %v2993 = vperm.slane %v2987, %v2992
        %v2995 = vunpack.c.l.s4 1983009808
        %v2996 = vunpack.c.0.s8 %v2995
        %v2997 = vperm.slane %v2989, %v2996
        %v2998 = vrot.slane %v2984, 4
        %v2999 = vsel %vm490, %v2998, %v2980
        %v3000 = vrot.slane %v2980, 4
        %v3001 = vsel %vm490, %v2984, %v3000
        %v3003 = vunpack.c.l.s4 1983009808
        %v3004 = vunpack.c.0.s8 %v3003
        %v3005 = vperm.slane %v2999, %v3004
        %v3007 = vunpack.c.l.s4 1983009808
        %v3008 = vunpack.c.0.s8 %v3007
        %v3009 = vperm.slane %v3001, %v3008
        %v3010 = vrot.slane %v3005, 4
        %v3011 = vsel %vm490, %v3010, %v2993
        %v3012 = vrot.slane %v2993, 4
        %v3013 = vsel %vm490, %v3005, %v3012
        %v3015 = vunpack.c.l.s4 1934713408
        %v3016 = vunpack.c.0.s8 %v3015
        %v3017 = vperm.slane %v3011, %v3016
        %v3019 = vunpack.c.l.s4 1934713408
        %v3020 = vunpack.c.0.s8 %v3019
        %v3021 = vperm.slane %v3013, %v3020
        %v3022 = vrot.slane %v3009, 4
        %v3023 = vsel %vm490, %v3022, %v2997
        %v3024 = vrot.slane %v2997, 4
        %v3025 = vsel %vm490, %v3009, %v3024
        %v3027 = vunpack.c.l.s4 1934713408
        %v3028 = vunpack.c.0.s8 %v3027
        %v3029 = vperm.slane %v3023, %v3028
        %v3031 = vunpack.c.l.s4 1934713408
        %v3032 = vunpack.c.0.s8 %v3031
        %v3033 = vperm.slane %v3025, %v3032
        %v3034 = vrot.slane %v3017, 4
        %v3035 = vsel %vm490, 0.0, %v3034
        %v3036 = vrot.slane %v3021, 4
        %v3037 = vsel %vm490, 0.0, %v3036
        %v3038 = vrot.slane %v3029, 4
        %v3039 = vsel %vm490, 0.0, %v3038
        %v3040 = vrot.slane %v3033, 4
        %v3041 = vsel %vm490, 0.0, %v3040
        %v3042 = vrot.slane %v2983, 4
        %v3043 = vsel %vm490, %v3042, %v2979
        %v3044 = vrot.slane %v2979, 4
        %v3045 = vsel %vm490, %v2983, %v3044
        %v3047 = vunpack.c.l.s4 1983009808
        %v3048 = vunpack.c.0.s8 %v3047
        %v3049 = vperm.slane %v3043, %v3048
        %v3051 = vunpack.c.l.s4 1983009808
        %v3052 = vunpack.c.0.s8 %v3051
        %v3053 = vperm.slane %v3045, %v3052
        %v3054 = vrot.slane %v2985, 4
        %v3055 = vsel %vm490, %v3054, %v2981
        %v3056 = vrot.slane %v2981, 4
        %v3057 = vsel %vm490, %v2985, %v3056
        %v3059 = vunpack.c.l.s4 1983009808
        %v3060 = vunpack.c.0.s8 %v3059
        %v3061 = vperm.slane %v3055, %v3060
        %v3063 = vunpack.c.l.s4 1983009808
        %v3064 = vunpack.c.0.s8 %v3063
        %v3065 = vperm.slane %v3057, %v3064
        %v3066 = vrot.slane %v3061, 4
        %v3067 = vsel %vm490, %v3066, %v3049
        %v3068 = vrot.slane %v3049, 4
        %v3069 = vsel %vm490, %v3061, %v3068
        %v3071 = vunpack.c.l.s4 1934713408
        %v3072 = vunpack.c.0.s8 %v3071
        %v3073 = vperm.slane %v3067, %v3072
        %v3075 = vunpack.c.l.s4 1934713408
        %v3076 = vunpack.c.0.s8 %v3075
        %v3077 = vperm.slane %v3069, %v3076
        %v3078 = vrot.slane %v3065, 4
        %v3079 = vsel %vm490, %v3078, %v3053
        %v3080 = vrot.slane %v3053, 4
        %v3081 = vsel %vm490, %v3065, %v3080
        %v3083 = vunpack.c.l.s4 1934713408
        %v3084 = vunpack.c.0.s8 %v3083
        %v3085 = vperm.slane %v3079, %v3084
        %v3087 = vunpack.c.l.s4 1934713408
        %v3088 = vunpack.c.0.s8 %v3087
        %v3089 = vperm.slane %v3081, %v3088
        %v3090 = vrot.slane %v3073, 4
        %v3091 = vsel %vm490, 0.0, %v3090
        %v3092 = vrot.slane %v3077, 4
        %v3093 = vsel %vm490, 0.0, %v3092
        %v3094 = vrot.slane %v3085, 4
        %v3095 = vsel %vm490, 0.0, %v3094
        %v3096 = vrot.slane %v3089, 4
        %v3097 = vsel %vm490, 0.0, %v3096
        %v3098 = vsel %vm490, %v3036, %v3017
        %v3100 = vunpack.c.l.s4 1983009808
        %v3101 = vunpack.c.0.s8 %v3100
        %v3102 = vperm.slane %v3098, %v3101
        %v3103 = vrot.slane %v3037, 4
        %v3104 = vsel %vm490, %v3103, %v3035
        %v3106 = vunpack.c.l.s4 1983009808
        %v3107 = vunpack.c.0.s8 %v3106
        %v3108 = vperm.slane %v3104, %v3107
        %v3109 = vsel %vm490, %v3040, %v3029
        %v3111 = vunpack.c.l.s4 1983009808
        %v3112 = vunpack.c.0.s8 %v3111
        %v3113 = vperm.slane %v3109, %v3112
        %v3114 = vrot.slane %v3041, 4
        %v3115 = vsel %vm490, %v3114, %v3039
        %v3117 = vunpack.c.l.s4 1983009808
        %v3118 = vunpack.c.0.s8 %v3117
        %v3119 = vperm.slane %v3115, %v3118
        %v3120 = vrot.slane %v3108, 4
        %v3121 = vsel %vm490, %v3120, %v3102
        %v3122 = vrot.slane %v3102, 4
        %v3123 = vsel %vm490, %v3108, %v3122
        %v3125 = vunpack.c.l.s4 1934713408
        %v3126 = vunpack.c.0.s8 %v3125
        %v3127 = vperm.slane %v3121, %v3126
        %v3129 = vunpack.c.l.s4 1934713408
        %v3130 = vunpack.c.0.s8 %v3129
        %v3131 = vperm.slane %v3123, %v3130
        %v3132 = vrot.slane %v3119, 4
        %v3133 = vsel %vm490, %v3132, %v3113
        %v3134 = vrot.slane %v3113, 4
        %v3135 = vsel %vm490, %v3119, %v3134
        %v3137 = vunpack.c.l.s4 1934713408
        %v3138 = vunpack.c.0.s8 %v3137
        %v3139 = vperm.slane %v3133, %v3138
        %v3141 = vunpack.c.l.s4 1934713408
        %v3142 = vunpack.c.0.s8 %v3141
        %v3143 = vperm.slane %v3135, %v3142
        %v3144 = vrot.slane %v3139, 4
        %v3145 = vsel %vm490, %v3144, %v3127
        %v3146 = vrot.slane %v3127, 4
        %v3147 = vsel %vm490, %v3139, %v3146
        %v3148 = vrot.slane %v3143, 4
        %v3149 = vsel %vm490, %v3148, %v3131
        %v3150 = vrot.slane %v3131, 4
        %v3151 = vsel %vm490, %v3143, %v3150
        %v3152 = vsel %vm490, %v3092, %v3073
        %v3154 = vunpack.c.l.s4 1983009808
        %v3155 = vunpack.c.0.s8 %v3154
        %v3156 = vperm.slane %v3152, %v3155
        %v3157 = vrot.slane %v3093, 4
        %v3158 = vsel %vm490, %v3157, %v3091
        %v3160 = vunpack.c.l.s4 1983009808
        %v3161 = vunpack.c.0.s8 %v3160
        %v3162 = vperm.slane %v3158, %v3161
        %v3163 = vsel %vm490, %v3096, %v3085
        %v3165 = vunpack.c.l.s4 1983009808
        %v3166 = vunpack.c.0.s8 %v3165
        %v3167 = vperm.slane %v3163, %v3166
        %v3168 = vrot.slane %v3097, 4
        %v3169 = vsel %vm490, %v3168, %v3095
        %v3171 = vunpack.c.l.s4 1983009808
        %v3172 = vunpack.c.0.s8 %v3171
        %v3173 = vperm.slane %v3169, %v3172
        %v3174 = vrot.slane %v3162, 4
        %v3175 = vsel %vm490, %v3174, %v3156
        %v3176 = vrot.slane %v3156, 4
        %v3177 = vsel %vm490, %v3162, %v3176
        %v3179 = vunpack.c.l.s4 1934713408
        %v3180 = vunpack.c.0.s8 %v3179
        %v3181 = vperm.slane %v3175, %v3180
        %v3183 = vunpack.c.l.s4 1934713408
        %v3184 = vunpack.c.0.s8 %v3183
        %v3185 = vperm.slane %v3177, %v3184
        %v3186 = vrot.slane %v3173, 4
        %v3187 = vsel %vm490, %v3186, %v3167
        %v3188 = vrot.slane %v3167, 4
        %v3189 = vsel %vm490, %v3173, %v3188
        %v3191 = vunpack.c.l.s4 1934713408
        %v3192 = vunpack.c.0.s8 %v3191
        %v3193 = vperm.slane %v3187, %v3192
        %v3195 = vunpack.c.l.s4 1934713408
        %v3196 = vunpack.c.0.s8 %v3195
        %v3197 = vperm.slane %v3189, %v3196
        %v3198 = vrot.slane %v3193, 4
        %v3199 = vsel %vm490, %v3198, %v3181
        %v3200 = vrot.slane %v3181, 4
        %v3201 = vsel %vm490, %v3193, %v3200
        %v3202 = vrot.slane %v3197, 4
        %v3203 = vsel %vm490, %v3202, %v3185
        %v3204 = vrot.slane %v3185, 4
        %v3205 = vsel %vm490, %v3197, %v3204
        %3208 = vrot.lane.b32.xlu0 %v3147, 8
        %v3209 = vpop.permute.xlu0 %3208
        %3210 = vrot.lane.b32.xlu0 %v3201, 8
        %v3211 = vpop.permute.xlu0 %3210
        %3216 = vrot.lane.b32.xlu0 %v3149, 16
        %v3217 = vpop.permute.xlu0 %3216
        %3218 = vrot.lane.b32.xlu0 %v3203, 16
        %v3219 = vpop.permute.xlu0 %3218
        %3224 = vrot.lane.b32.xlu0 %v3151, 24
        %v3225 = vpop.permute.xlu0 %3224
        %3226 = vrot.lane.b32.xlu0 %v3205, 24
        %v3227 = vpop.permute.xlu0 %3226
        %v3230 = vsel %vm1695, %v3145, %v3209
        %v3231 = vsel %vm1695, %v3199, %v3211
        %vm3232 = vcmask 130048
        %v3233 = vsel %vm3232, %v3230, %v3217
        %v3234 = vsel %vm3232, %v3231, %v3219
        %vm3235 = vcmask 195584
        %v3236 = vsel %vm3235, %v3233, %v3225
        %v3237 = vsel %vm3235, %v3234, %v3227
        %v3238 = vld [vmem:[#allocation13] sm:$0xff]
        %v3239 = vld [vmem:[#allocation13 + $0x8] sm:$0xff]
        %v3240 = vld [vmem:[#allocation13 + $0x10] sm:$0xff]
        %v3241 = vld [vmem:[#allocation13 + $0x18] sm:$0xff]
        %v3242 = vld [vmem:[%s5] sm:$0x1]
        %v3244 = vperm.slane %v3242, 0
        %v3247 = vsel %vm394, %v3236, 0
        %v3250 = vsel %vm394, %v3237, 0
        %3252 = vmatpush.msra.mxu0 0.0
        %3253 = vmatpush.msra.mxu0 0.0
        %3254 = vmatpush.msra.mxu0 0.0
        %3255 = vmatpush.msra.mxu0 0.0
        %3256 = vmatpush.msra.mxu0 0.0
        %3257 = vmatpush.msra.mxu0 0.0
        %3258 = vmatpush.msra.mxu0 0.0
        %3259 = vmatpush.msra.mxu0 0.0
        %3260 = vmatpush.msra.mxu0 0.0
        %3261 = vmatpush.msra.mxu0 0.0
        %3262 = vmatpush.msra.mxu0 0.0
        %3263 = vmatpush.msra.mxu0 0.0
        %3264 = vmatpush.msra.mxu0 %v3241
        %3265 = vmatpush.msra.mxu0 %v3240
        %3266 = vmatpush.msra.mxu0 %v3239
        %3267 = vmatpush.msra.mxu0 %v3238
        %3268 = vmatmul.f32.gmra.mxu0 %v3247
        %v3269 = vpop.f32.mrf.mxu0
        %v3270 = vadd.f32 %v3244, %v3269
        %3271 = vmatmul.f32.gmra.mxu0 %v3250
        %v3272 = vpop.f32.mrf.mxu0
        %v3273 = vadd.f32 %v3244, %v3272
        %3274 = vdwg.mxu0
        %3275 = vst [vmem:[%s380] sm:$0xff] %v3270
        %3276 = vst [vmem:[%s380 + $0x8] sm:$0xff] %v3273
        %s3277 = sand.u32 %s187, 1
        %s3278 = scalar_lea.sflag [#allocation7], %s3277
        %s3279 = sand.u32 %s187, 1
        %s3280 = smul.addr %s3279, 16
        %s3281 = scalar_lea.vmem [#allocation14], %s3280
        // Predicated region
        $region73: #{tpu_custom_call.1} parent=43 // pred_check
          %p3282 = pneg %p197
        $region74: #{tpu_custom_call.1} parent=43 // pred_check_branch
          %3284 = sbr.rel (%p3282) target = $region76
        $region75: #{tpu_custom_call.1} parent=43 // pred_region
          %s3285 = smul.u32 2, %s32
          %3287 = vsyncadd %s3278, 0
          %s3288 = smul.addr %s31, 4
          %s3289 = sadd.s32 %s3285, %s3288
          %s3290 = smul.addr %s3289, 8
          %s3291 = scalar_lea.hbm %s6, %s3290
          %s3292 = sshll.u32 %s3281, 4
          %s3293 = int_to_ptr.vmem [resolvable:$true] %s3292
          %s3294 = sshll.u32 %s3291, 4
          %s3295 = int_to_ptr.hbm [resolvable:$true] %s3294
          %3300 = dma.vmem_to_hbm [thread:$0]  %s3293, 256, %s3295, %s3278, 128, 128, 8
        $region76: #{tpu_custom_call.1} parent=43 // pred_fallthru
          _
      $region44: #{tpu_custom_call.1} parent=5 // pred_fallthru
        _
      %p3301 = scmp.le.s32.totalorder 2, %s22
      // Predicated region
      $region77: #{tpu_custom_call.1} parent=5 // pred_check
        %p3302 = pneg %p3301
      $region78: #{tpu_custom_call.1} parent=5 // pred_check_branch
        %3304 = sbr.rel (%p3302) target = $region80
      $region79: #{tpu_custom_call.1} parent=5 // pred_region
        %s3305 = ssub.s32 %s22, 2
        // Predicated region
        $region81: #{tpu_custom_call.1} parent=79 // pred_check
          %p3306 = pneg %p203
        $region82: #{tpu_custom_call.1} parent=79 // pred_check_branch
          %3308 = sbr.rel (%p3306) target = $region84
        $region83: #{tpu_custom_call.1} parent=79 // pred_region
          %s3309 = sand.u32 %s188, 1
          %s3310 = scalar_lea.sflag [#allocation7], %s3309
          %s3311 = sand.u32 %s188, 1
          %s3312 = smul.addr %s3311, 16
          %s3313 = scalar_lea.vmem [#allocation14], %s3312
          %3315 = dma.done %s3310, 256
        $region84: #{tpu_custom_call.1} parent=79 // pred_fallthru
          _
      $region80: #{tpu_custom_call.1} parent=5 // pred_fallthru
        _
    $region6: #{tpu_custom_call.1} parent=1 // loop_footer
      %s26 = sadd.s32 1, %s22
    $region7: #{tpu_custom_call.1} parent=1 // loop_footer_branch
      %21 = sbr.rel target = $region3
    $region8: #{tpu_custom_call.1} parent=1 // loop_exit
      _
    %3316 = vsyncpa [#allocation6], 1
    %s3317 = scalar_lea.sflag [#allocation6], 1
    %3318 = vsyncpa %s3317, 1
    %3319 = vsyncpa [#allocation9], 1
    %s3320 = scalar_lea.sflag [#allocation9], 1
    %3321 = vsyncpa %s3320, 1
    %3322 = vsyncpa [#allocation12], 1
    %3323 = vsyncpa [#allocation7], 1
    %s3324 = scalar_lea.sflag [#allocation7], 1
    %3325 = vsyncpa %s3324, 1

</llo_original>
